<compile_context>
chip_gen: v7x
topology: tpu7x:2x2x1
jax: 0.10.0
libtpu: 0.0.40
codegen_flags: <defaults>
</compile_context>

<pallas_src>
import functools

import numpy as np
import jax
import jax.numpy as jnp
from jax.experimental import pallas as pl
from jax.experimental.pallas import tpu as pltpu

# Set to jnp.bfloat16 on v6e/v7x for ~2-4x MXU throughput (accumulation stays
# f32 via preferred_element_type; bias/ReLU/sigmoid epilogues stay f32).  Kept
# f32 here so the in-script numpy cross-check passes with a tight tolerance.
MXU_DTYPE = jnp.float32

_COMPILER_PARAMS = pltpu.CompilerParams(dimension_semantics=("arbitrary",))


def _dot(a, b):
    return jnp.dot(a.astype(MXU_DTYPE), b.astype(MXU_DTYPE),
                   preferred_element_type=jnp.float32)


def _full_spec(shape):
    return pl.BlockSpec(shape, lambda i, _n=len(shape): (0,) * _n)


# ----------------------------------------------------------------------------
# The single fused kernel.
# ----------------------------------------------------------------------------
def _model1_kernel(x_ref, a_ref, pool_ref, w1_ref, b1_ref, w2_ref, b2_ref,
                   prot_ref, pw1_ref, pb1_ref, pw2_ref, pb2_ref,
                   fc1wg_ref, fc1wp_ref, fc1b_ref, fc2w_ref, fc2b_ref,
                   fc3w_ref, fc3b_ref, outw_ref, outb_ref,
                   o_ref,
                   xpad_ref, pat1_ref, pat2_ref, pflat_ref,
                   *, B, K, L, pad, L1, L2, C, O1, O2):
    # ---- graph branch: (GCNConv + BN + ReLU) x2, then global_mean_pool ----
    # BN eval stats and the GCN bias are pre-folded into w*/b*; Dropout = id.
    xw1 = _dot(x_ref[...], w1_ref[...])
    h1 = jnp.maximum(_dot(a_ref[...], xw1) + b1_ref[...], 0.0)
    xw2 = _dot(h1, w2_ref[...])
    h2 = jnp.maximum(_dot(a_ref[...], xw2) + b2_ref[...], 0.0)
    g = _dot(pool_ref[...], h2)                       # (B, H) — stays in vregs

    # ---- protein branch: pad -> conv1 -> ReLU -> conv2 -> ReLU ----
    # Zero-pad inside the kernel (VMEM scratch); no wrapper-side jnp.pad.
    xpad_ref[...] = jnp.zeros_like(xpad_ref)
    xpad_ref[:, pad:pad + L, :] = prot_ref[...]

    # conv1 as ONE matmul: assemble the (B*L1, K*C) im2col block in VMEM.
    for b in range(B):                                # B, K small & static
        for k in range(K):
            pat1_ref[b * L1:(b + 1) * L1, k * C:(k + 1) * C] = \
                xpad_ref[b, k:k + L1, :]
    p1 = jnp.maximum(_dot(pat1_ref[...], pw1_ref[...]) + pb1_ref[...], 0.0)  # (B*L1, O1)

    # conv2 as ONE matmul: (B*L2, K*O1) patch block built from p1 (in vregs).
    for b in range(B):
        for k in range(K):
            pat2_ref[b * L2:(b + 1) * L2, k * O1:(k + 1) * O1] = \
                p1[b * L1 + k:b * L1 + k + L2, :]
    p2 = jnp.maximum(_dot(pat2_ref[...], pw2_ref[...]) + pb2_ref[...], 0.0)  # (B*L2, O2)

    # torch reshape(B, -1): pack p2 rows into a lane-dense (B, L2*O2) scratch.
    # (fc1_wp rows were pre-permuted to this (l, c) order in prepare_params.)
    for b in range(B):
        for l in range(L2):
            pflat_ref[b:b + 1, l * O2:(l + 1) * O2] = \
                p2[b * L2 + l:b * L2 + l + 1, :]

    # ---- MLP head; torch.concatenate folded away by splitting fc1 ----
    z = _dot(g, fc1wg_ref[...]) + _dot(pflat_ref[...], fc1wp_ref[...]) + fc1b_ref[...]
    z = jnp.maximum(z, 0.0)
    z = jnp.maximum(_dot(z, fc2w_ref[...]) + fc2b_ref[...], 0.0)
    z = jnp.maximum(_dot(z, fc3w_ref[...]) + fc3b_ref[...], 0.0)
    o_ref[...] = jax.nn.sigmoid(_dot(z, outw_ref[...]) + outb_ref[...]).astype(o_ref.dtype)


# ----------------------------------------------------------------------------
# Model1 forward (inference mode).  ONE pallas_call total.
# ----------------------------------------------------------------------------
def model1_forward(params, x, a_hat, pool_mat, protein_blc):
    N, F = x.shape
    B, L, C = protein_blc.shape
    H = params["w1f"].shape[1]
    KC, O1 = params["pw1"].shape
    KO1, O2 = params["pw2"].shape
    K = KC // C
    assert K >= 2, "kernel_size must be >= 2 (padding = kernel_size - 2)"
    assert KO1 == K * O1
    pad = K - 2
    Lp = L + 2 * pad
    L1 = Lp - K + 1
    L2 = L1 - K + 1
    D1 = params["fc1_wg"].shape[1]
    D2 = params["fc2_w"].shape[1]
    D3 = params["fc3_w"].shape[1]
    OPAD = params["out_w_pad"].shape[1]

    kernel = functools.partial(_model1_kernel, B=B, K=K, L=L, pad=pad,
                               L1=L1, L2=L2, C=C, O1=O1, O2=O2)

    args = (x, a_hat, pool_mat,
            params["w1f"], params["b1f"], params["w2f"], params["b2f"],
            protein_blc,
            params["pw1"], params["pb1"], params["pw2"], params["pb2"],
            params["fc1_wg"], params["fc1_wp"], params["fc1_b"],
            params["fc2_w"], params["fc2_b"], params["fc3_w"], params["fc3_b"],
            params["out_w_pad"], params["out_b_pad"])

    flops = 2 * (N * F * H + N * N * H + N * H * H + N * N * H + B * N * H
                 + B * L1 * KC * O1 + B * L2 * KO1 * O2
                 + B * (H * D1 + L2 * O2 * D1 + D1 * D2 + D2 * D3 + D3 * OPAD))
    bytes_accessed = 4 * (sum(int(np.prod(a.shape)) for a in args) + B * OPAD)
    cost = pl.CostEstimate(flops=int(flops), transcendentals=int(B * OPAD),
                           bytes_accessed=int(bytes_accessed))

    out_pad = pl.pallas_call(
        kernel,
        out_shape=jax.ShapeDtypeStruct((B, OPAD), jnp.float32),
        grid=(1,),
        in_specs=[_full_spec(a.shape) for a in args],
        out_specs=_full_spec((B, OPAD)),
        scratch_shapes=[
            pltpu.VMEM((B, Lp, C), jnp.float32),         # padded protein
            pltpu.VMEM((B * L1, K * C), jnp.float32),    # conv1 im2col block
            pltpu.VMEM((B * L2, K * O1), jnp.float32),   # conv2 im2col block
            pltpu.VMEM((B, L2 * O2), jnp.float32),       # flattened conv output
        ],
        compiler_params=_COMPILER_PARAMS,
        cost_estimate=cost,
    )(*args)
    return out_pad[:, :1]        # slice the real scalar off the 128-lane slab


# ----------------------------------------------------------------------------
# Parameter construction (torch-like "raw" params) + trace-time folding.
# ----------------------------------------------------------------------------
def init_raw_params(key, input_dim, hidden_dim, protein_size, kernel_size, L_prot):
    dim1 = protein_size // 2
    dim2 = protein_size // 4
    pad1 = kernel_size - 2
    L1 = L_prot + 2 * pad1 - kernel_size + 1
    L2 = L1 - kernel_size + 1
    concat_dim = hidden_dim + dim2 * L2          # LazyLinear fc1 in-features
    ks = jax.random.split(key, 18)

    def lin(k, fan_in, fan_out):
        return jax.random.normal(k, (fan_in, fan_out), jnp.float32) / jnp.sqrt(fan_in)

    raw = dict(
        w1=lin(ks[0], input_dim, hidden_dim),
        b1=0.05 * jax.random.normal(ks[1], (hidden_dim,), jnp.float32),
        w2=lin(ks[2], hidden_dim, hidden_dim),
        b2=0.05 * jax.random.normal(ks[3], (hidden_dim,), jnp.float32),
        bn1_gamma=1.0 + 0.1 * jax.random.normal(ks[4], (hidden_dim,), jnp.float32),
        bn1_beta=0.1 * jax.random.normal(ks[5], (hidden_dim,), jnp.float32),
        bn1_mean=jnp.zeros((hidden_dim,), jnp.float32),   # running stats (fresh BN)
        bn1_var=jnp.ones((hidden_dim,), jnp.float32),
        bn2_gamma=1.0 + 0.1 * jax.random.normal(ks[6], (hidden_dim,), jnp.float32),
        bn2_beta=0.1 * jax.random.normal(ks[7], (hidden_dim,), jnp.float32),
        bn2_mean=jnp.zeros((hidden_dim,), jnp.float32),
        bn2_var=jnp.ones((hidden_dim,), jnp.float32),
        pw1=jax.random.normal(ks[8], (dim1, protein_size, kernel_size), jnp.float32)
            / jnp.sqrt(protein_size * kernel_size),
        pb1=0.05 * jax.random.normal(ks[9], (dim1,), jnp.float32),
        pw2=jax.random.normal(ks[10], (dim2, dim1, kernel_size), jnp.float32)
            / jnp.sqrt(dim1 * kernel_size),
        pb2=0.05 * jax.random.normal(ks[11], (dim2,), jnp.float32),
        fc1_w=lin(ks[12], concat_dim, 256),
        fc1_b=jnp.zeros((256,), jnp.float32),
        fc2_w=lin(ks[13], 256, 128),
        fc2_b=jnp.zeros((128,), jnp.float32),
        fc3_w=lin(ks[14], 128, 64),
        fc3_b=jnp.zeros((64,), jnp.float32),
        out_w=lin(ks[15], 64, 1),
        out_b=jnp.zeros((1,), jnp.float32),
    )
    meta = dict(dim2=dim2, L2=L2, concat_dim=concat_dim)
    return raw, meta


def prepare_params(raw, hidden_dim, dim2, L2, lane_pad=128, eps=1e-5):
    """Trace-time folding into kernel-ready parameters."""
    def fold(w, b, gamma, beta, mean, var):
        scale = gamma / jnp.sqrt(var + eps)          # BN eval fold (running stats)
        shift = beta - mean * scale
        return w * scale[None, :], (b * scale + shift)[None, :]

    w1f, b1f = fold(raw["w1"], raw["b1"], raw["bn1_gamma"], raw["bn1_beta"],
                    raw["bn1_mean"], raw["bn1_var"])
    w2f, b2f = fold(raw["w2"], raw["b2"], raw["bn2_gamma"], raw["bn2_beta"],
                    raw["bn2_mean"], raw["bn2_var"])

    # Conv weights (O, C, K) -> (K, C, O) -> flat (K*C, O): the conv becomes a
    # single im2col matmul in the kernel (patch lane index = k*C + c).
    O1, C, K = raw["pw1"].shape
    O2 = raw["pw2"].shape[0]
    pw1 = jnp.transpose(raw["pw1"], (2, 1, 0)).reshape(K * C, O1)
    pw2 = jnp.transpose(raw["pw2"], (2, 1, 0)).reshape(K * O1, O2)

    # fc1 split (folds away the concatenate).  Torch flatten of (B, C, L2)
    # gives row index c*L2 + l; the kernel packs rows in (l, c) order, so
    # permute the protein-half rows accordingly.
    n1 = raw["fc1_w"].shape[1]
    fc1_wg = raw["fc1_w"][:hidden_dim]
    fc1_wp = raw["fc1_w"][hidden_dim:].reshape(dim2, L2, n1)
    fc1_wp = jnp.transpose(fc1_wp, (1, 0, 2)).reshape(L2 * dim2, n1)

    # Pad the 1-wide output layer to 128 lanes (lane-dense final store).
    out_w_pad = jnp.zeros((raw["out_w"].shape[0], lane_pad), jnp.float32)
    out_w_pad = out_w_pad.at[:, :raw["out_w"].shape[1]].set(raw["out_w"])
    out_b_pad = jnp.zeros((1, lane_pad), jnp.float32)
    out_b_pad = out_b_pad.at[0, :raw["out_b"].shape[0]].set(raw["out_b"])

    return dict(
        w1f=w1f, b1f=b1f, w2f=w2f, b2f=b2f,
        pw1=pw1, pb1=raw["pb1"].reshape(1, -1),
        pw2=pw2, pb2=raw["pb2"].reshape(1, -1),
        fc1_wg=fc1_wg, fc1_wp=fc1_wp, fc1_b=raw["fc1_b"].reshape(1, -1),
        fc2_w=raw["fc2_w"], fc2_b=raw["fc2_b"].reshape(1, -1),
        fc3_w=raw["fc3_w"], fc3_b=raw["fc3_b"].reshape(1, -1),
        out_w_pad=out_w_pad, out_b_pad=out_b_pad,
    )


def build_gcn_matrices(edge_index, batch, num_nodes, num_graphs):
    """Dense GCN-normalized adjacency D^-1/2 (A+I) D^-1/2 and mean-pool matrix."""
    src, dst = edge_index[0], edge_index[1]
    A = jnp.zeros((num_nodes, num_nodes), jnp.float32)
    A = A.at[dst, src].add(1.0)            # messages flow src -> dst (PyG convention)
    A = A + jnp.eye(num_nodes, dtype=jnp.float32)
    deg = A.sum(axis=1)
    dinv = 1.0 / jnp.sqrt(deg)
    a_hat = dinv[:, None] * A * dinv[None, :]

    onehot = (batch[None, :] == jnp.arange(num_graphs)[:, None]).astype(jnp.float32)
    pool_mat = onehot / onehot.sum(axis=1, keepdims=True)
    return a_hat, pool_mat


# ----------------------------------------------------------------------------
# Pure-numpy reference that follows the PyTorch forward exactly (NCL conv,
# c-major flatten, explicit concat), for a correctness cross-check.
# ----------------------------------------------------------------------------
def numpy_reference(raw, x, a_hat, pool_mat, protein_blc, kernel_size, eps=1e-5):
    r = {k: np.asarray(v, np.float32) for k, v in raw.items()}
    x = np.asarray(x, np.float32)
    A = np.asarray(a_hat, np.float32)
    pm = np.asarray(pool_mat, np.float32)
    pr = np.asarray(protein_blc, np.float32)

    def bn(z, g, b, m, v):
        return (z - m) / np.sqrt(v + eps) * g + b

    h = A @ (x @ r["w1"]) + r["b1"]
    h = np.maximum(bn(h, r["bn1_gamma"], r["bn1_beta"], r["bn1_mean"], r["bn1_var"]), 0.0)
    h = A @ (h @ r["w2"]) + r["b2"]
    h = np.maximum(bn(h, r["bn2_gamma"], r["bn2_beta"], r["bn2_mean"], r["bn2_var"]), 0.0)
    g = pm @ h

    K = kernel_size
    pad = K - 2
    pt = np.transpose(pr, (0, 2, 1))                                  # (B, C, L)
    ptp = np.pad(pt, ((0, 0), (0, 0), (pad, pad)))
    L1 = ptp.shape[2] - K + 1
    patches = np.stack([ptp[:, :, l:l + K] for l in range(L1)], axis=1)   # (B,L1,C,K)
    p1 = np.maximum(np.einsum("blck,ock->bol", patches, r["pw1"])
                    + r["pb1"][None, :, None], 0.0)                   # (B, O1, L1)
    L2 = L1 - K + 1
    patches2 = np.stack([p1[:, :, l:l + K] for l in range(L2)], axis=1)
    p2 = np.maximum(np.einsum("blck,ock->bol", patches2, r["pw2"])
                    + r["pb2"][None, :, None], 0.0)                   # (B, O2, L2)
    p_flat = p2.reshape(p2.shape[0], -1)

    z = np.concatenate([g, p_flat], axis=1)
    z = np.maximum(z @ r["fc1_w"] + r["fc1_b"], 0.0)
    z = np.maximum(z @ r["fc2_w"] + r["fc2_b"], 0.0)
    z = np.maximum(z @ r["fc3_w"] + r["fc3_b"], 0.0)
    z = z @ r["out_w"] + r["out_b"]
    return 1.0 / (1.0 + np.exp(-z))


# ----------------------------------------------------------------------------
if __name__ == "__main__":
    # small configuration consistent with Model1.__init__
    input_dim = 16
    hidden_dim = 32
    protein_size = 64            # -> dim1 = 32, dim2 = 16
    kernel_size = 10             # -> padding = 8
    B = 2                        # graphs / proteins per batch
    N_nodes = 12                 # total nodes over the batch
    L_prot = 8                   # protein sequence length

    key = jax.random.PRNGKey(0)
    k_x, k_p, k_params = jax.random.split(key, 3)

    # graph batch: nodes 0..5 -> graph 0, nodes 6..11 -> graph 1; symmetric ring edges
    x_nodes = jax.random.normal(k_x, (N_nodes, input_dim), jnp.float32)
    ring = [(0, 1), (1, 2), (2, 3), (3, 4), (4, 5), (5, 0)]
    edges = []
    for off in (0, 6):
        for (a, b) in ring:
            edges.append((a + off, b + off))
            edges.append((b + off, a + off))
    edge_index = jnp.array(edges, dtype=jnp.int32).T           # (2, 24)
    batch = jnp.array([0] * 6 + [1] * 6, dtype=jnp.int32)

    # protein_data as fed to forward(): (B, L, protein_size); torch's
    # permute(0,2,1) is handled by the channels-last layout in the kernel.
    protein_data = jax.random.normal(k_p, (B, L_prot, protein_size), jnp.float32)

    raw, meta = init_raw_params(k_params, input_dim, hidden_dim, protein_size,
                                kernel_size, L_prot)
    params = prepare_params(raw, hidden_dim, meta["dim2"], meta["L2"])
    a_hat, pool_mat = build_gcn_matrices(edge_index, batch, N_nodes, B)

    fwd = jax.jit(model1_forward)
    out = jax.block_until_ready(fwd(params, x_nodes, a_hat, pool_mat, protein_data))

    assert out.shape == (B, 1), out.shape
    assert bool(jnp.all((out >= 0.0) & (out <= 1.0)))

    ref = numpy_reference(raw, x_nodes, a_hat, pool_mat, protein_data, kernel_size)
    assert np.allclose(np.asarray(out), ref, atol=2e-2), (np.asarray(out), ref)

    print("KERNEL_OK")
</pallas_src>

<mosaic_0001>
module attributes {stable_mosaic.version = 11 : i64} {
  func.func @_model1_kernel(%arg0: i32, %arg1: memref<12x16xf32, #tpu.memory_space<vmem>>, %arg2: memref<12x12xf32, #tpu.memory_space<vmem>>, %arg3: memref<2x12xf32, #tpu.memory_space<vmem>>, %arg4: memref<16x32xf32, #tpu.memory_space<vmem>>, %arg5: memref<1x32xf32, #tpu.memory_space<vmem>>, %arg6: memref<32x32xf32, #tpu.memory_space<vmem>>, %arg7: memref<1x32xf32, #tpu.memory_space<vmem>>, %arg8: memref<2x8x64xf32, #tpu.memory_space<vmem>>, %arg9: memref<640x32xf32, #tpu.memory_space<vmem>>, %arg10: memref<1x32xf32, #tpu.memory_space<vmem>>, %arg11: memref<320x16xf32, #tpu.memory_space<vmem>>, %arg12: memref<1x16xf32, #tpu.memory_space<vmem>>, %arg13: memref<32x256xf32, #tpu.memory_space<vmem>>, %arg14: memref<96x256xf32, #tpu.memory_space<vmem>>, %arg15: memref<1x256xf32, #tpu.memory_space<vmem>>, %arg16: memref<256x128xf32, #tpu.memory_space<vmem>>, %arg17: memref<1x128xf32, #tpu.memory_space<vmem>>, %arg18: memref<128x64xf32, #tpu.memory_space<vmem>>, %arg19: memref<1x64xf32, #tpu.memory_space<vmem>>, %arg20: memref<64x128xf32, #tpu.memory_space<vmem>>, %arg21: memref<1x128xf32, #tpu.memory_space<vmem>>, %arg22: memref<2x128xf32, #tpu.memory_space<vmem>>, %arg23: memref<2x24x64xf32, #tpu.memory_space<vmem>>, %arg24: memref<30x640xf32, #tpu.memory_space<vmem>>, %arg25: memref<12x320xf32, #tpu.memory_space<vmem>>, %arg26: memref<2x96xf32, #tpu.memory_space<vmem>>) attributes {dimension_semantics = [#tpu.dimension_semantics<arbitrary>], iteration_bounds = array<i64: 1>, scalar_prefetch = 0 : i64, scratch_operands = 4 : i64, tpu.core_type = #tpu.core_type<tc>, window_params = [{pipeline_mode = #tpu.pipeline_mode<synchronous>, transform_indices = @transform_0, window_bounds = array<i64: 12, 16>}, {pipeline_mode = #tpu.pipeline_mode<synchronous>, transform_indices = @transform_1, window_bounds = array<i64: 12, 12>}, {pipeline_mode = #tpu.pipeline_mode<synchronous>, transform_indices = @transform_2, window_bounds = array<i64: 2, 12>}, {pipeline_mode = #tpu.pipeline_mode<synchronous>, transform_indices = @transform_3, window_bounds = array<i64: 16, 32>}, {pipeline_mode = #tpu.pipeline_mode<synchronous>, transform_indices = @transform_4, window_bounds = array<i64: 1, 32>}, {pipeline_mode = #tpu.pipeline_mode<synchronous>, transform_indices = @transform_5, window_bounds = array<i64: 32, 32>}, {pipeline_mode = #tpu.pipeline_mode<synchronous>, transform_indices = @transform_6, window_bounds = array<i64: 1, 32>}, {pipeline_mode = #tpu.pipeline_mode<synchronous>, transform_indices = @transform_7, window_bounds = array<i64: 2, 8, 64>}, {pipeline_mode = #tpu.pipeline_mode<synchronous>, transform_indices = @transform_8, window_bounds = array<i64: 640, 32>}, {pipeline_mode = #tpu.pipeline_mode<synchronous>, transform_indices = @transform_9, window_bounds = array<i64: 1, 32>}, {pipeline_mode = #tpu.pipeline_mode<synchronous>, transform_indices = @transform_10, window_bounds = array<i64: 320, 16>}, {pipeline_mode = #tpu.pipeline_mode<synchronous>, transform_indices = @transform_11, window_bounds = array<i64: 1, 16>}, {pipeline_mode = #tpu.pipeline_mode<synchronous>, transform_indices = @transform_12, window_bounds = array<i64: 32, 256>}, {pipeline_mode = #tpu.pipeline_mode<synchronous>, transform_indices = @transform_13, window_bounds = array<i64: 96, 256>}, {pipeline_mode = #tpu.pipeline_mode<synchronous>, transform_indices = @transform_14, window_bounds = array<i64: 1, 256>}, {pipeline_mode = #tpu.pipeline_mode<synchronous>, transform_indices = @transform_15, window_bounds = array<i64: 256, 128>}, {pipeline_mode = #tpu.pipeline_mode<synchronous>, transform_indices = @transform_16, window_bounds = array<i64: 1, 128>}, {pipeline_mode = #tpu.pipeline_mode<synchronous>, transform_indices = @transform_17, window_bounds = array<i64: 128, 64>}, {pipeline_mode = #tpu.pipeline_mode<synchronous>, transform_indices = @transform_18, window_bounds = array<i64: 1, 64>}, {pipeline_mode = #tpu.pipeline_mode<synchronous>, transform_indices = @transform_19, window_bounds = array<i64: 64, 128>}, {pipeline_mode = #tpu.pipeline_mode<synchronous>, transform_indices = @transform_20, window_bounds = array<i64: 1, 128>}, {pipeline_mode = #tpu.pipeline_mode<synchronous>, transform_indices = @transform_21, window_bounds = array<i64: 2, 128>}]} {
    %c0 = arith.constant 0 : index
    %c0_0 = arith.constant 0 : index
    %0 = vector.load %arg1[%c0, %c0_0] : memref<12x16xf32, #tpu.memory_space<vmem>>, vector<12x16xf32>
    %c0_1 = arith.constant 0 : index
    %c0_2 = arith.constant 0 : index
    %1 = vector.load %arg4[%c0_1, %c0_2] : memref<16x32xf32, #tpu.memory_space<vmem>>, vector<16x32xf32>
    %cst = arith.constant dense<0.000000e+00> : vector<12x32xf32>
    %2 = tpu.matmul %0, %1, %cst {dimension_numbers = #tpu.dot_dimension_numbers<[1], [0], [0], [1], [0, 0, 1, 1], [], []>} : vector<12x16xf32>, vector<16x32xf32>, vector<12x32xf32> -> vector<12x32xf32>
    %c0_3 = arith.constant 0 : index
    %c0_4 = arith.constant 0 : index
    %3 = vector.load %arg2[%c0_3, %c0_4] : memref<12x12xf32, #tpu.memory_space<vmem>>, vector<12x12xf32>
    %cst_5 = arith.constant dense<0.000000e+00> : vector<12x32xf32>
    %4 = tpu.matmul %3, %2, %cst_5 {dimension_numbers = #tpu.dot_dimension_numbers<[1], [0], [0], [1], [0, 0, 1, 1], [], []>} : vector<12x12xf32>, vector<12x32xf32>, vector<12x32xf32> -> vector<12x32xf32>
    %c0_6 = arith.constant 0 : index
    %c0_7 = arith.constant 0 : index
    %5 = vector.load %arg5[%c0_6, %c0_7] : memref<1x32xf32, #tpu.memory_space<vmem>>, vector<1x32xf32>
    %6 = vector.broadcast %5 : vector<1x32xf32> to vector<12x32xf32>
    %7 = arith.addf %4, %6 : vector<12x32xf32>
    %cst_8 = arith.constant 0.000000e+00 : f32
    %8 = vector.broadcast %cst_8 : f32 to vector<12x32xf32>
    %9 = arith.maximumf %7, %8 : vector<12x32xf32>
    %c0_9 = arith.constant 0 : index
    %c0_10 = arith.constant 0 : index
    %10 = vector.load %arg6[%c0_9, %c0_10] : memref<32x32xf32, #tpu.memory_space<vmem>>, vector<32x32xf32>
    %cst_11 = arith.constant dense<0.000000e+00> : vector<12x32xf32>
    %11 = tpu.matmul %9, %10, %cst_11 {dimension_numbers = #tpu.dot_dimension_numbers<[1], [0], [0], [1], [0, 0, 1, 1], [], []>} : vector<12x32xf32>, vector<32x32xf32>, vector<12x32xf32> -> vector<12x32xf32>
    %c0_12 = arith.constant 0 : index
    %c0_13 = arith.constant 0 : index
    %12 = vector.load %arg2[%c0_12, %c0_13] : memref<12x12xf32, #tpu.memory_space<vmem>>, vector<12x12xf32>
    %cst_14 = arith.constant dense<0.000000e+00> : vector<12x32xf32>
    %13 = tpu.matmul %12, %11, %cst_14 {dimension_numbers = #tpu.dot_dimension_numbers<[1], [0], [0], [1], [0, 0, 1, 1], [], []>} : vector<12x12xf32>, vector<12x32xf32>, vector<12x32xf32> -> vector<12x32xf32>
    %c0_15 = arith.constant 0 : index
    %c0_16 = arith.constant 0 : index
    %14 = vector.load %arg7[%c0_15, %c0_16] : memref<1x32xf32, #tpu.memory_space<vmem>>, vector<1x32xf32>
    %15 = vector.broadcast %14 : vector<1x32xf32> to vector<12x32xf32>
    %16 = arith.addf %13, %15 : vector<12x32xf32>
    %cst_17 = arith.constant 0.000000e+00 : f32
    %17 = vector.broadcast %cst_17 : f32 to vector<12x32xf32>
    %18 = arith.maximumf %16, %17 : vector<12x32xf32>
    %c0_18 = arith.constant 0 : index
    %c0_19 = arith.constant 0 : index
    %19 = vector.load %arg3[%c0_18, %c0_19] : memref<2x12xf32, #tpu.memory_space<vmem>>, vector<2x12xf32>
    %cst_20 = arith.constant dense<0.000000e+00> : vector<2x32xf32>
    %20 = tpu.matmul %19, %18, %cst_20 {dimension_numbers = #tpu.dot_dimension_numbers<[1], [0], [0], [1], [0, 0, 1, 1], [], []>} : vector<2x12xf32>, vector<12x32xf32>, vector<2x32xf32> -> vector<2x32xf32>
    %cst_21 = arith.constant 0.000000e+00 : f32
    %21 = vector.broadcast %cst_21 : f32 to vector<2x24x64xf32>
    %c0_22 = arith.constant 0 : index
    %c0_23 = arith.constant 0 : index
    %c0_24 = arith.constant 0 : index
    %22 = vector.load %arg23[%c0_22, %c0_23, %c0_24] : memref<2x24x64xf32, #tpu.memory_space<vmem>>, vector<2x24x64xf32>
    tpu.vector_store %arg23[%c0_22, %c0_23, %c0_24], %21 {strides = array<i32>} : memref<2x24x64xf32, #tpu.memory_space<vmem>>, vector<2x24x64xf32>,
    %c0_25 = arith.constant 0 : index
    %c0_26 = arith.constant 0 : index
    %c0_27 = arith.constant 0 : index
    %23 = vector.load %arg8[%c0_25, %c0_26, %c0_27] : memref<2x8x64xf32, #tpu.memory_space<vmem>>, vector<2x8x64xf32>
    %c0_28 = arith.constant 0 : index
    %c8 = arith.constant 8 : index
    %c0_29 = arith.constant 0 : index
    %24 = vector.load %arg23[%c0_28, %c8, %c0_29] : memref<2x24x64xf32, #tpu.memory_space<vmem>>, vector<2x8x64xf32>
    tpu.vector_store %arg23[%c0_28, %c8, %c0_29], %23 {strides = array<i32>} : memref<2x24x64xf32, #tpu.memory_space<vmem>>, vector<2x8x64xf32>,
    %c0_30 = arith.constant 0 : index
    %c0_31 = arith.constant 0 : index
    %c0_32 = arith.constant 0 : index
    %25 = vector.load %arg23[%c0_30, %c0_31, %c0_32] : memref<2x24x64xf32, #tpu.memory_space<vmem>>, vector<1x15x64xf32>
    %26 = vector.shape_cast %25 : vector<1x15x64xf32> to vector<15x64xf32>
    %c0_33 = arith.constant 0 : index
    %c0_34 = arith.constant 0 : index
    %27 = vector.load %arg24[%c0_33, %c0_34] : memref<30x640xf32, #tpu.memory_space<vmem>>, vector<15x64xf32>
    tpu.vector_store %arg24[%c0_33, %c0_34], %26 {strides = array<i32>} : memref<30x640xf32, #tpu.memory_space<vmem>>, vector<15x64xf32>,
    %c0_35 = arith.constant 0 : index
    %c1 = arith.constant 1 : index
    %c0_36 = arith.constant 0 : index
    %28 = vector.load %arg23[%c0_35, %c1, %c0_36] : memref<2x24x64xf32, #tpu.memory_space<vmem>>, vector<1x15x64xf32>
    %29 = vector.shape_cast %28 : vector<1x15x64xf32> to vector<15x64xf32>
    %c0_37 = arith.constant 0 : index
    %c64 = arith.constant 64 : index
    %30 = vector.load %arg24[%c0_37, %c64] : memref<30x640xf32, #tpu.memory_space<vmem>>, vector<15x64xf32>
    tpu.vector_store %arg24[%c0_37, %c64], %29 {strides = array<i32>} : memref<30x640xf32, #tpu.memory_space<vmem>>, vector<15x64xf32>,
    %c0_38 = arith.constant 0 : index
    %c2 = arith.constant 2 : index
    %c0_39 = arith.constant 0 : index
    %31 = vector.load %arg23[%c0_38, %c2, %c0_39] : memref<2x24x64xf32, #tpu.memory_space<vmem>>, vector<1x15x64xf32>
    %32 = vector.shape_cast %31 : vector<1x15x64xf32> to vector<15x64xf32>
    %c0_40 = arith.constant 0 : index
    %c128 = arith.constant 128 : index
    %33 = vector.load %arg24[%c0_40, %c128] : memref<30x640xf32, #tpu.memory_space<vmem>>, vector<15x64xf32>
    tpu.vector_store %arg24[%c0_40, %c128], %32 {strides = array<i32>} : memref<30x640xf32, #tpu.memory_space<vmem>>, vector<15x64xf32>,
    %c0_41 = arith.constant 0 : index
    %c3 = arith.constant 3 : index
    %c0_42 = arith.constant 0 : index
    %34 = vector.load %arg23[%c0_41, %c3, %c0_42] : memref<2x24x64xf32, #tpu.memory_space<vmem>>, vector<1x15x64xf32>
    %35 = vector.shape_cast %34 : vector<1x15x64xf32> to vector<15x64xf32>
    %c0_43 = arith.constant 0 : index
    %c192 = arith.constant 192 : index
    %36 = vector.load %arg24[%c0_43, %c192] : memref<30x640xf32, #tpu.memory_space<vmem>>, vector<15x64xf32>
    tpu.vector_store %arg24[%c0_43, %c192], %35 {strides = array<i32>} : memref<30x640xf32, #tpu.memory_space<vmem>>, vector<15x64xf32>,
    %c0_44 = arith.constant 0 : index
    %c4 = arith.constant 4 : index
    %c0_45 = arith.constant 0 : index
    %37 = vector.load %arg23[%c0_44, %c4, %c0_45] : memref<2x24x64xf32, #tpu.memory_space<vmem>>, vector<1x15x64xf32>
    %38 = vector.shape_cast %37 : vector<1x15x64xf32> to vector<15x64xf32>
    %c0_46 = arith.constant 0 : index
    %c256 = arith.constant 256 : index
    %39 = vector.load %arg24[%c0_46, %c256] : memref<30x640xf32, #tpu.memory_space<vmem>>, vector<15x64xf32>
    tpu.vector_store %arg24[%c0_46, %c256], %38 {strides = array<i32>} : memref<30x640xf32, #tpu.memory_space<vmem>>, vector<15x64xf32>,
    %c0_47 = arith.constant 0 : index
    %c5 = arith.constant 5 : index
    %c0_48 = arith.constant 0 : index
    %40 = vector.load %arg23[%c0_47, %c5, %c0_48] : memref<2x24x64xf32, #tpu.memory_space<vmem>>, vector<1x15x64xf32>
    %41 = vector.shape_cast %40 : vector<1x15x64xf32> to vector<15x64xf32>
    %c0_49 = arith.constant 0 : index
    %c320 = arith.constant 320 : index
    %42 = vector.load %arg24[%c0_49, %c320] : memref<30x640xf32, #tpu.memory_space<vmem>>, vector<15x64xf32>
    tpu.vector_store %arg24[%c0_49, %c320], %41 {strides = array<i32>} : memref<30x640xf32, #tpu.memory_space<vmem>>, vector<15x64xf32>,
    %c0_50 = arith.constant 0 : index
    %c6 = arith.constant 6 : index
    %c0_51 = arith.constant 0 : index
    %43 = vector.load %arg23[%c0_50, %c6, %c0_51] : memref<2x24x64xf32, #tpu.memory_space<vmem>>, vector<1x15x64xf32>
    %44 = vector.shape_cast %43 : vector<1x15x64xf32> to vector<15x64xf32>
    %c0_52 = arith.constant 0 : index
    %c384 = arith.constant 384 : index
    %45 = vector.load %arg24[%c0_52, %c384] : memref<30x640xf32, #tpu.memory_space<vmem>>, vector<15x64xf32>
    tpu.vector_store %arg24[%c0_52, %c384], %44 {strides = array<i32>} : memref<30x640xf32, #tpu.memory_space<vmem>>, vector<15x64xf32>,
    %c0_53 = arith.constant 0 : index
    %c7 = arith.constant 7 : index
    %c0_54 = arith.constant 0 : index
    %46 = vector.load %arg23[%c0_53, %c7, %c0_54] : memref<2x24x64xf32, #tpu.memory_space<vmem>>, vector<1x15x64xf32>
    %47 = vector.shape_cast %46 : vector<1x15x64xf32> to vector<15x64xf32>
    %c0_55 = arith.constant 0 : index
    %c448 = arith.constant 448 : index
    %48 = vector.load %arg24[%c0_55, %c448] : memref<30x640xf32, #tpu.memory_space<vmem>>, vector<15x64xf32>
    tpu.vector_store %arg24[%c0_55, %c448], %47 {strides = array<i32>} : memref<30x640xf32, #tpu.memory_space<vmem>>, vector<15x64xf32>,
    %c0_56 = arith.constant 0 : index
    %c8_57 = arith.constant 8 : index
    %c0_58 = arith.constant 0 : index
    %49 = vector.load %arg23[%c0_56, %c8_57, %c0_58] : memref<2x24x64xf32, #tpu.memory_space<vmem>>, vector<1x15x64xf32>
    %50 = vector.shape_cast %49 : vector<1x15x64xf32> to vector<15x64xf32>
    %c0_59 = arith.constant 0 : index
    %c512 = arith.constant 512 : index
    %51 = vector.load %arg24[%c0_59, %c512] : memref<30x640xf32, #tpu.memory_space<vmem>>, vector<15x64xf32>
    tpu.vector_store %arg24[%c0_59, %c512], %50 {strides = array<i32>} : memref<30x640xf32, #tpu.memory_space<vmem>>, vector<15x64xf32>,
    %c0_60 = arith.constant 0 : index
    %c9 = arith.constant 9 : index
    %c0_61 = arith.constant 0 : index
    %52 = vector.load %arg23[%c0_60, %c9, %c0_61] : memref<2x24x64xf32, #tpu.memory_space<vmem>>, vector<1x15x64xf32>
    %53 = vector.shape_cast %52 : vector<1x15x64xf32> to vector<15x64xf32>
    %c0_62 = arith.constant 0 : index
    %c576 = arith.constant 576 : index
    %54 = vector.load %arg24[%c0_62, %c576] : memref<30x640xf32, #tpu.memory_space<vmem>>, vector<15x64xf32>
    tpu.vector_store %arg24[%c0_62, %c576], %53 {strides = array<i32>} : memref<30x640xf32, #tpu.memory_space<vmem>>, vector<15x64xf32>,
    %c1_63 = arith.constant 1 : index
    %c0_64 = arith.constant 0 : index
    %c0_65 = arith.constant 0 : index
    %55 = vector.load %arg23[%c1_63, %c0_64, %c0_65] : memref<2x24x64xf32, #tpu.memory_space<vmem>>, vector<1x15x64xf32>
    %56 = vector.shape_cast %55 : vector<1x15x64xf32> to vector<15x64xf32>
    %c15 = arith.constant 15 : index
    %c0_66 = arith.constant 0 : index
    %57 = vector.load %arg24[%c15, %c0_66] : memref<30x640xf32, #tpu.memory_space<vmem>>, vector<15x64xf32>
    tpu.vector_store %arg24[%c15, %c0_66], %56 {strides = array<i32>} : memref<30x640xf32, #tpu.memory_space<vmem>>, vector<15x64xf32>,
    %c1_67 = arith.constant 1 : index
    %c1_68 = arith.constant 1 : index
    %c0_69 = arith.constant 0 : index
    %58 = vector.load %arg23[%c1_67, %c1_68, %c0_69] : memref<2x24x64xf32, #tpu.memory_space<vmem>>, vector<1x15x64xf32>
    %59 = vector.shape_cast %58 : vector<1x15x64xf32> to vector<15x64xf32>
    %c15_70 = arith.constant 15 : index
    %c64_71 = arith.constant 64 : index
    %60 = vector.load %arg24[%c15_70, %c64_71] : memref<30x640xf32, #tpu.memory_space<vmem>>, vector<15x64xf32>
    tpu.vector_store %arg24[%c15_70, %c64_71], %59 {strides = array<i32>} : memref<30x640xf32, #tpu.memory_space<vmem>>, vector<15x64xf32>,
    %c1_72 = arith.constant 1 : index
    %c2_73 = arith.constant 2 : index
    %c0_74 = arith.constant 0 : index
    %61 = vector.load %arg23[%c1_72, %c2_73, %c0_74] : memref<2x24x64xf32, #tpu.memory_space<vmem>>, vector<1x15x64xf32>
    %62 = vector.shape_cast %61 : vector<1x15x64xf32> to vector<15x64xf32>
    %c15_75 = arith.constant 15 : index
    %c128_76 = arith.constant 128 : index
    %63 = vector.load %arg24[%c15_75, %c128_76] : memref<30x640xf32, #tpu.memory_space<vmem>>, vector<15x64xf32>
    tpu.vector_store %arg24[%c15_75, %c128_76], %62 {strides = array<i32>} : memref<30x640xf32, #tpu.memory_space<vmem>>, vector<15x64xf32>,
    %c1_77 = arith.constant 1 : index
    %c3_78 = arith.constant 3 : index
    %c0_79 = arith.constant 0 : index
    %64 = vector.load %arg23[%c1_77, %c3_78, %c0_79] : memref<2x24x64xf32, #tpu.memory_space<vmem>>, vector<1x15x64xf32>
    %65 = vector.shape_cast %64 : vector<1x15x64xf32> to vector<15x64xf32>
    %c15_80 = arith.constant 15 : index
    %c192_81 = arith.constant 192 : index
    %66 = vector.load %arg24[%c15_80, %c192_81] : memref<30x640xf32, #tpu.memory_space<vmem>>, vector<15x64xf32>
    tpu.vector_store %arg24[%c15_80, %c192_81], %65 {strides = array<i32>} : memref<30x640xf32, #tpu.memory_space<vmem>>, vector<15x64xf32>,
    %c1_82 = arith.constant 1 : index
    %c4_83 = arith.constant 4 : index
    %c0_84 = arith.constant 0 : index
    %67 = vector.load %arg23[%c1_82, %c4_83, %c0_84] : memref<2x24x64xf32, #tpu.memory_space<vmem>>, vector<1x15x64xf32>
    %68 = vector.shape_cast %67 : vector<1x15x64xf32> to vector<15x64xf32>
    %c15_85 = arith.constant 15 : index
    %c256_86 = arith.constant 256 : index
    %69 = vector.load %arg24[%c15_85, %c256_86] : memref<30x640xf32, #tpu.memory_space<vmem>>, vector<15x64xf32>
    tpu.vector_store %arg24[%c15_85, %c256_86], %68 {strides = array<i32>} : memref<30x640xf32, #tpu.memory_space<vmem>>, vector<15x64xf32>,
    %c1_87 = arith.constant 1 : index
    %c5_88 = arith.constant 5 : index
    %c0_89 = arith.constant 0 : index
    %70 = vector.load %arg23[%c1_87, %c5_88, %c0_89] : memref<2x24x64xf32, #tpu.memory_space<vmem>>, vector<1x15x64xf32>
    %71 = vector.shape_cast %70 : vector<1x15x64xf32> to vector<15x64xf32>
    %c15_90 = arith.constant 15 : index
    %c320_91 = arith.constant 320 : index
    %72 = vector.load %arg24[%c15_90, %c320_91] : memref<30x640xf32, #tpu.memory_space<vmem>>, vector<15x64xf32>
    tpu.vector_store %arg24[%c15_90, %c320_91], %71 {strides = array<i32>} : memref<30x640xf32, #tpu.memory_space<vmem>>, vector<15x64xf32>,
    %c1_92 = arith.constant 1 : index
    %c6_93 = arith.constant 6 : index
    %c0_94 = arith.constant 0 : index
    %73 = vector.load %arg23[%c1_92, %c6_93, %c0_94] : memref<2x24x64xf32, #tpu.memory_space<vmem>>, vector<1x15x64xf32>
    %74 = vector.shape_cast %73 : vector<1x15x64xf32> to vector<15x64xf32>
    %c15_95 = arith.constant 15 : index
    %c384_96 = arith.constant 384 : index
    %75 = vector.load %arg24[%c15_95, %c384_96] : memref<30x640xf32, #tpu.memory_space<vmem>>, vector<15x64xf32>
    tpu.vector_store %arg24[%c15_95, %c384_96], %74 {strides = array<i32>} : memref<30x640xf32, #tpu.memory_space<vmem>>, vector<15x64xf32>,
    %c1_97 = arith.constant 1 : index
    %c7_98 = arith.constant 7 : index
    %c0_99 = arith.constant 0 : index
    %76 = vector.load %arg23[%c1_97, %c7_98, %c0_99] : memref<2x24x64xf32, #tpu.memory_space<vmem>>, vector<1x15x64xf32>
    %77 = vector.shape_cast %76 : vector<1x15x64xf32> to vector<15x64xf32>
    %c15_100 = arith.constant 15 : index
    %c448_101 = arith.constant 448 : index
    %78 = vector.load %arg24[%c15_100, %c448_101] : memref<30x640xf32, #tpu.memory_space<vmem>>, vector<15x64xf32>
    tpu.vector_store %arg24[%c15_100, %c448_101], %77 {strides = array<i32>} : memref<30x640xf32, #tpu.memory_space<vmem>>, vector<15x64xf32>,
    %c1_102 = arith.constant 1 : index
    %c8_103 = arith.constant 8 : index
    %c0_104 = arith.constant 0 : index
    %79 = vector.load %arg23[%c1_102, %c8_103, %c0_104] : memref<2x24x64xf32, #tpu.memory_space<vmem>>, vector<1x15x64xf32>
    %80 = vector.shape_cast %79 : vector<1x15x64xf32> to vector<15x64xf32>
    %c15_105 = arith.constant 15 : index
    %c512_106 = arith.constant 512 : index
    %81 = vector.load %arg24[%c15_105, %c512_106] : memref<30x640xf32, #tpu.memory_space<vmem>>, vector<15x64xf32>
    tpu.vector_store %arg24[%c15_105, %c512_106], %80 {strides = array<i32>} : memref<30x640xf32, #tpu.memory_space<vmem>>, vector<15x64xf32>,
    %c1_107 = arith.constant 1 : index
    %c9_108 = arith.constant 9 : index
    %c0_109 = arith.constant 0 : index
    %82 = vector.load %arg23[%c1_107, %c9_108, %c0_109] : memref<2x24x64xf32, #tpu.memory_space<vmem>>, vector<1x15x64xf32>
    %83 = vector.shape_cast %82 : vector<1x15x64xf32> to vector<15x64xf32>
    %c15_110 = arith.constant 15 : index
    %c576_111 = arith.constant 576 : index
    %84 = vector.load %arg24[%c15_110, %c576_111] : memref<30x640xf32, #tpu.memory_space<vmem>>, vector<15x64xf32>
    tpu.vector_store %arg24[%c15_110, %c576_111], %83 {strides = array<i32>} : memref<30x640xf32, #tpu.memory_space<vmem>>, vector<15x64xf32>,
    %c0_112 = arith.constant 0 : index
    %c0_113 = arith.constant 0 : index
    %85 = vector.load %arg24[%c0_112, %c0_113] : memref<30x640xf32, #tpu.memory_space<vmem>>, vector<30x640xf32>
    %c0_114 = arith.constant 0 : index
    %c0_115 = arith.constant 0 : index
    %86 = vector.load %arg9[%c0_114, %c0_115] : memref<640x32xf32, #tpu.memory_space<vmem>>, vector<640x32xf32>
    %cst_116 = arith.constant dense<0.000000e+00> : vector<30x32xf32>
    %87 = tpu.matmul %85, %86, %cst_116 {dimension_numbers = #tpu.dot_dimension_numbers<[1], [0], [0], [1], [0, 0, 1, 1], [], []>} : vector<30x640xf32>, vector<640x32xf32>, vector<30x32xf32> -> vector<30x32xf32>
    %c0_117 = arith.constant 0 : index
    %c0_118 = arith.constant 0 : index
    %88 = vector.load %arg10[%c0_117, %c0_118] : memref<1x32xf32, #tpu.memory_space<vmem>>, vector<1x32xf32>
    %89 = vector.broadcast %88 : vector<1x32xf32> to vector<30x32xf32>
    %90 = arith.addf %87, %89 : vector<30x32xf32>
    %cst_119 = arith.constant 0.000000e+00 : f32
    %91 = vector.broadcast %cst_119 : f32 to vector<30x32xf32>
    %92 = arith.maximumf %90, %91 : vector<30x32xf32>
    %93 = vector.extract_strided_slice %92 {offsets = [0, 0], sizes = [6, 32], strides = [1, 1]} : vector<30x32xf32> to vector<6x32xf32>
    %c0_120 = arith.constant 0 : index
    %c0_121 = arith.constant 0 : index
    %94 = vector.load %arg25[%c0_120, %c0_121] : memref<12x320xf32, #tpu.memory_space<vmem>>, vector<6x32xf32>
    tpu.vector_store %arg25[%c0_120, %c0_121], %93 {strides = array<i32>} : memref<12x320xf32, #tpu.memory_space<vmem>>, vector<6x32xf32>,
    %95 = vector.extract_strided_slice %92 {offsets = [1, 0], sizes = [6, 32], strides = [1, 1]} : vector<30x32xf32> to vector<6x32xf32>
    %c0_122 = arith.constant 0 : index
    %c32 = arith.constant 32 : index
    %96 = vector.load %arg25[%c0_122, %c32] : memref<12x320xf32, #tpu.memory_space<vmem>>, vector<6x32xf32>
    tpu.vector_store %arg25[%c0_122, %c32], %95 {strides = array<i32>} : memref<12x320xf32, #tpu.memory_space<vmem>>, vector<6x32xf32>,
    %97 = vector.extract_strided_slice %92 {offsets = [2, 0], sizes = [6, 32], strides = [1, 1]} : vector<30x32xf32> to vector<6x32xf32>
    %c0_123 = arith.constant 0 : index
    %c64_124 = arith.constant 64 : index
    %98 = vector.load %arg25[%c0_123, %c64_124] : memref<12x320xf32, #tpu.memory_space<vmem>>, vector<6x32xf32>
    tpu.vector_store %arg25[%c0_123, %c64_124], %97 {strides = array<i32>} : memref<12x320xf32, #tpu.memory_space<vmem>>, vector<6x32xf32>,
    %99 = vector.extract_strided_slice %92 {offsets = [3, 0], sizes = [6, 32], strides = [1, 1]} : vector<30x32xf32> to vector<6x32xf32>
    %c0_125 = arith.constant 0 : index
    %c96 = arith.constant 96 : index
    %100 = vector.load %arg25[%c0_125, %c96] : memref<12x320xf32, #tpu.memory_space<vmem>>, vector<6x32xf32>
    tpu.vector_store %arg25[%c0_125, %c96], %99 {strides = array<i32>} : memref<12x320xf32, #tpu.memory_space<vmem>>, vector<6x32xf32>,
    %101 = vector.extract_strided_slice %92 {offsets = [4, 0], sizes = [6, 32], strides = [1, 1]} : vector<30x32xf32> to vector<6x32xf32>
    %c0_126 = arith.constant 0 : index
    %c128_127 = arith.constant 128 : index
    %102 = vector.load %arg25[%c0_126, %c128_127] : memref<12x320xf32, #tpu.memory_space<vmem>>, vector<6x32xf32>
    tpu.vector_store %arg25[%c0_126, %c128_127], %101 {strides = array<i32>} : memref<12x320xf32, #tpu.memory_space<vmem>>, vector<6x32xf32>,
    %103 = vector.extract_strided_slice %92 {offsets = [5, 0], sizes = [6, 32], strides = [1, 1]} : vector<30x32xf32> to vector<6x32xf32>
    %c0_128 = arith.constant 0 : index
    %c160 = arith.constant 160 : index
    %104 = vector.load %arg25[%c0_128, %c160] : memref<12x320xf32, #tpu.memory_space<vmem>>, vector<6x32xf32>
    tpu.vector_store %arg25[%c0_128, %c160], %103 {strides = array<i32>} : memref<12x320xf32, #tpu.memory_space<vmem>>, vector<6x32xf32>,
    %105 = vector.extract_strided_slice %92 {offsets = [6, 0], sizes = [6, 32], strides = [1, 1]} : vector<30x32xf32> to vector<6x32xf32>
    %c0_129 = arith.constant 0 : index
    %c192_130 = arith.constant 192 : index
    %106 = vector.load %arg25[%c0_129, %c192_130] : memref<12x320xf32, #tpu.memory_space<vmem>>, vector<6x32xf32>
    tpu.vector_store %arg25[%c0_129, %c192_130], %105 {strides = array<i32>} : memref<12x320xf32, #tpu.memory_space<vmem>>, vector<6x32xf32>,
    %107 = vector.extract_strided_slice %92 {offsets = [7, 0], sizes = [6, 32], strides = [1, 1]} : vector<30x32xf32> to vector<6x32xf32>
    %c0_131 = arith.constant 0 : index
    %c224 = arith.constant 224 : index
    %108 = vector.load %arg25[%c0_131, %c224] : memref<12x320xf32, #tpu.memory_space<vmem>>, vector<6x32xf32>
    tpu.vector_store %arg25[%c0_131, %c224], %107 {strides = array<i32>} : memref<12x320xf32, #tpu.memory_space<vmem>>, vector<6x32xf32>,
    %109 = vector.extract_strided_slice %92 {offsets = [8, 0], sizes = [6, 32], strides = [1, 1]} : vector<30x32xf32> to vector<6x32xf32>
    %c0_132 = arith.constant 0 : index
    %c256_133 = arith.constant 256 : index
    %110 = vector.load %arg25[%c0_132, %c256_133] : memref<12x320xf32, #tpu.memory_space<vmem>>, vector<6x32xf32>
    tpu.vector_store %arg25[%c0_132, %c256_133], %109 {strides = array<i32>} : memref<12x320xf32, #tpu.memory_space<vmem>>, vector<6x32xf32>,
    %111 = vector.extract_strided_slice %92 {offsets = [9, 0], sizes = [6, 32], strides = [1, 1]} : vector<30x32xf32> to vector<6x32xf32>
    %c0_134 = arith.constant 0 : index
    %c288 = arith.constant 288 : index
    %112 = vector.load %arg25[%c0_134, %c288] : memref<12x320xf32, #tpu.memory_space<vmem>>, vector<6x32xf32>
    tpu.vector_store %arg25[%c0_134, %c288], %111 {strides = array<i32>} : memref<12x320xf32, #tpu.memory_space<vmem>>, vector<6x32xf32>,
    %113 = vector.extract_strided_slice %92 {offsets = [15, 0], sizes = [6, 32], strides = [1, 1]} : vector<30x32xf32> to vector<6x32xf32>
    %c6_135 = arith.constant 6 : index
    %c0_136 = arith.constant 0 : index
    %114 = vector.load %arg25[%c6_135, %c0_136] : memref<12x320xf32, #tpu.memory_space<vmem>>, vector<6x32xf32>
    tpu.vector_store %arg25[%c6_135, %c0_136], %113 {strides = array<i32>} : memref<12x320xf32, #tpu.memory_space<vmem>>, vector<6x32xf32>,
    %115 = vector.extract_strided_slice %92 {offsets = [16, 0], sizes = [6, 32], strides = [1, 1]} : vector<30x32xf32> to vector<6x32xf32>
    %c6_137 = arith.constant 6 : index
    %c32_138 = arith.constant 32 : index
    %116 = vector.load %arg25[%c6_137, %c32_138] : memref<12x320xf32, #tpu.memory_space<vmem>>, vector<6x32xf32>
    tpu.vector_store %arg25[%c6_137, %c32_138], %115 {strides = array<i32>} : memref<12x320xf32, #tpu.memory_space<vmem>>, vector<6x32xf32>,
    %117 = vector.extract_strided_slice %92 {offsets = [17, 0], sizes = [6, 32], strides = [1, 1]} : vector<30x32xf32> to vector<6x32xf32>
    %c6_139 = arith.constant 6 : index
    %c64_140 = arith.constant 64 : index
    %118 = vector.load %arg25[%c6_139, %c64_140] : memref<12x320xf32, #tpu.memory_space<vmem>>, vector<6x32xf32>
    tpu.vector_store %arg25[%c6_139, %c64_140], %117 {strides = array<i32>} : memref<12x320xf32, #tpu.memory_space<vmem>>, vector<6x32xf32>,
    %119 = vector.extract_strided_slice %92 {offsets = [18, 0], sizes = [6, 32], strides = [1, 1]} : vector<30x32xf32> to vector<6x32xf32>
    %c6_141 = arith.constant 6 : index
    %c96_142 = arith.constant 96 : index
    %120 = vector.load %arg25[%c6_141, %c96_142] : memref<12x320xf32, #tpu.memory_space<vmem>>, vector<6x32xf32>
    tpu.vector_store %arg25[%c6_141, %c96_142], %119 {strides = array<i32>} : memref<12x320xf32, #tpu.memory_space<vmem>>, vector<6x32xf32>,
    %121 = vector.extract_strided_slice %92 {offsets = [19, 0], sizes = [6, 32], strides = [1, 1]} : vector<30x32xf32> to vector<6x32xf32>
    %c6_143 = arith.constant 6 : index
    %c128_144 = arith.constant 128 : index
    %122 = vector.load %arg25[%c6_143, %c128_144] : memref<12x320xf32, #tpu.memory_space<vmem>>, vector<6x32xf32>
    tpu.vector_store %arg25[%c6_143, %c128_144], %121 {strides = array<i32>} : memref<12x320xf32, #tpu.memory_space<vmem>>, vector<6x32xf32>,
    %123 = vector.extract_strided_slice %92 {offsets = [20, 0], sizes = [6, 32], strides = [1, 1]} : vector<30x32xf32> to vector<6x32xf32>
    %c6_145 = arith.constant 6 : index
    %c160_146 = arith.constant 160 : index
    %124 = vector.load %arg25[%c6_145, %c160_146] : memref<12x320xf32, #tpu.memory_space<vmem>>, vector<6x32xf32>
    tpu.vector_store %arg25[%c6_145, %c160_146], %123 {strides = array<i32>} : memref<12x320xf32, #tpu.memory_space<vmem>>, vector<6x32xf32>,
    %125 = vector.extract_strided_slice %92 {offsets = [21, 0], sizes = [6, 32], strides = [1, 1]} : vector<30x32xf32> to vector<6x32xf32>
    %c6_147 = arith.constant 6 : index
    %c192_148 = arith.constant 192 : index
    %126 = vector.load %arg25[%c6_147, %c192_148] : memref<12x320xf32, #tpu.memory_space<vmem>>, vector<6x32xf32>
    tpu.vector_store %arg25[%c6_147, %c192_148], %125 {strides = array<i32>} : memref<12x320xf32, #tpu.memory_space<vmem>>, vector<6x32xf32>,
    %127 = vector.extract_strided_slice %92 {offsets = [22, 0], sizes = [6, 32], strides = [1, 1]} : vector<30x32xf32> to vector<6x32xf32>
    %c6_149 = arith.constant 6 : index
    %c224_150 = arith.constant 224 : index
    %128 = vector.load %arg25[%c6_149, %c224_150] : memref<12x320xf32, #tpu.memory_space<vmem>>, vector<6x32xf32>
    tpu.vector_store %arg25[%c6_149, %c224_150], %127 {strides = array<i32>} : memref<12x320xf32, #tpu.memory_space<vmem>>, vector<6x32xf32>,
    %129 = vector.extract_strided_slice %92 {offsets = [23, 0], sizes = [6, 32], strides = [1, 1]} : vector<30x32xf32> to vector<6x32xf32>
    %c6_151 = arith.constant 6 : index
    %c256_152 = arith.constant 256 : index
    %130 = vector.load %arg25[%c6_151, %c256_152] : memref<12x320xf32, #tpu.memory_space<vmem>>, vector<6x32xf32>
    tpu.vector_store %arg25[%c6_151, %c256_152], %129 {strides = array<i32>} : memref<12x320xf32, #tpu.memory_space<vmem>>, vector<6x32xf32>,
    %131 = vector.extract_strided_slice %92 {offsets = [24, 0], sizes = [6, 32], strides = [1, 1]} : vector<30x32xf32> to vector<6x32xf32>
    %c6_153 = arith.constant 6 : index
    %c288_154 = arith.constant 288 : index
    %132 = vector.load %arg25[%c6_153, %c288_154] : memref<12x320xf32, #tpu.memory_space<vmem>>, vector<6x32xf32>
    tpu.vector_store %arg25[%c6_153, %c288_154], %131 {strides = array<i32>} : memref<12x320xf32, #tpu.memory_space<vmem>>, vector<6x32xf32>,
    %c0_155 = arith.constant 0 : index
    %c0_156 = arith.constant 0 : index
    %133 = vector.load %arg25[%c0_155, %c0_156] : memref<12x320xf32, #tpu.memory_space<vmem>>, vector<12x320xf32>
    %c0_157 = arith.constant 0 : index
    %c0_158 = arith.constant 0 : index
    %134 = vector.load %arg11[%c0_157, %c0_158] : memref<320x16xf32, #tpu.memory_space<vmem>>, vector<320x16xf32>
    %cst_159 = arith.constant dense<0.000000e+00> : vector<12x16xf32>
    %135 = tpu.matmul %133, %134, %cst_159 {dimension_numbers = #tpu.dot_dimension_numbers<[1], [0], [0], [1], [0, 0, 1, 1], [], []>} : vector<12x320xf32>, vector<320x16xf32>, vector<12x16xf32> -> vector<12x16xf32>
    %c0_160 = arith.constant 0 : index
    %c0_161 = arith.constant 0 : index
    %136 = vector.load %arg12[%c0_160, %c0_161] : memref<1x16xf32, #tpu.memory_space<vmem>>, vector<1x16xf32>
    %137 = vector.broadcast %136 : vector<1x16xf32> to vector<12x16xf32>
    %138 = arith.addf %135, %137 : vector<12x16xf32>
    %cst_162 = arith.constant 0.000000e+00 : f32
    %139 = vector.broadcast %cst_162 : f32 to vector<12x16xf32>
    %140 = arith.maximumf %138, %139 : vector<12x16xf32>
    %141 = vector.extract_strided_slice %140 {offsets = [0, 0], sizes = [1, 16], strides = [1, 1]} : vector<12x16xf32> to vector<1x16xf32>
    %c0_163 = arith.constant 0 : index
    %c0_164 = arith.constant 0 : index
    %142 = vector.load %arg26[%c0_163, %c0_164] : memref<2x96xf32, #tpu.memory_space<vmem>>, vector<1x16xf32>
    tpu.vector_store %arg26[%c0_163, %c0_164], %141 {strides = array<i32>} : memref<2x96xf32, #tpu.memory_space<vmem>>, vector<1x16xf32>,
    %143 = vector.extract_strided_slice %140 {offsets = [1, 0], sizes = [1, 16], strides = [1, 1]} : vector<12x16xf32> to vector<1x16xf32>
    %c0_165 = arith.constant 0 : index
    %c16 = arith.constant 16 : index
    %144 = vector.load %arg26[%c0_165, %c16] : memref<2x96xf32, #tpu.memory_space<vmem>>, vector<1x16xf32>
    tpu.vector_store %arg26[%c0_165, %c16], %143 {strides = array<i32>} : memref<2x96xf32, #tpu.memory_space<vmem>>, vector<1x16xf32>,
    %145 = vector.extract_strided_slice %140 {offsets = [2, 0], sizes = [1, 16], strides = [1, 1]} : vector<12x16xf32> to vector<1x16xf32>
    %c0_166 = arith.constant 0 : index
    %c32_167 = arith.constant 32 : index
    %146 = vector.load %arg26[%c0_166, %c32_167] : memref<2x96xf32, #tpu.memory_space<vmem>>, vector<1x16xf32>
    tpu.vector_store %arg26[%c0_166, %c32_167], %145 {strides = array<i32>} : memref<2x96xf32, #tpu.memory_space<vmem>>, vector<1x16xf32>,
    %147 = vector.extract_strided_slice %140 {offsets = [3, 0], sizes = [1, 16], strides = [1, 1]} : vector<12x16xf32> to vector<1x16xf32>
    %c0_168 = arith.constant 0 : index
    %c48 = arith.constant 48 : index
    %148 = vector.load %arg26[%c0_168, %c48] : memref<2x96xf32, #tpu.memory_space<vmem>>, vector<1x16xf32>
    tpu.vector_store %arg26[%c0_168, %c48], %147 {strides = array<i32>} : memref<2x96xf32, #tpu.memory_space<vmem>>, vector<1x16xf32>,
    %149 = vector.extract_strided_slice %140 {offsets = [4, 0], sizes = [1, 16], strides = [1, 1]} : vector<12x16xf32> to vector<1x16xf32>
    %c0_169 = arith.constant 0 : index
    %c64_170 = arith.constant 64 : index
    %150 = vector.load %arg26[%c0_169, %c64_170] : memref<2x96xf32, #tpu.memory_space<vmem>>, vector<1x16xf32>
    tpu.vector_store %arg26[%c0_169, %c64_170], %149 {strides = array<i32>} : memref<2x96xf32, #tpu.memory_space<vmem>>, vector<1x16xf32>,
    %151 = vector.extract_strided_slice %140 {offsets = [5, 0], sizes = [1, 16], strides = [1, 1]} : vector<12x16xf32> to vector<1x16xf32>
    %c0_171 = arith.constant 0 : index
    %c80 = arith.constant 80 : index
    %152 = vector.load %arg26[%c0_171, %c80] : memref<2x96xf32, #tpu.memory_space<vmem>>, vector<1x16xf32>
    tpu.vector_store %arg26[%c0_171, %c80], %151 {strides = array<i32>} : memref<2x96xf32, #tpu.memory_space<vmem>>, vector<1x16xf32>,
    %153 = vector.extract_strided_slice %140 {offsets = [6, 0], sizes = [1, 16], strides = [1, 1]} : vector<12x16xf32> to vector<1x16xf32>
    %c1_172 = arith.constant 1 : index
    %c0_173 = arith.constant 0 : index
    %154 = vector.load %arg26[%c1_172, %c0_173] : memref<2x96xf32, #tpu.memory_space<vmem>>, vector<1x16xf32>
    tpu.vector_store %arg26[%c1_172, %c0_173], %153 {strides = array<i32>} : memref<2x96xf32, #tpu.memory_space<vmem>>, vector<1x16xf32>,
    %155 = vector.extract_strided_slice %140 {offsets = [7, 0], sizes = [1, 16], strides = [1, 1]} : vector<12x16xf32> to vector<1x16xf32>
    %c1_174 = arith.constant 1 : index
    %c16_175 = arith.constant 16 : index
    %156 = vector.load %arg26[%c1_174, %c16_175] : memref<2x96xf32, #tpu.memory_space<vmem>>, vector<1x16xf32>
    tpu.vector_store %arg26[%c1_174, %c16_175], %155 {strides = array<i32>} : memref<2x96xf32, #tpu.memory_space<vmem>>, vector<1x16xf32>,
    %157 = vector.extract_strided_slice %140 {offsets = [8, 0], sizes = [1, 16], strides = [1, 1]} : vector<12x16xf32> to vector<1x16xf32>
    %c1_176 = arith.constant 1 : index
    %c32_177 = arith.constant 32 : index
    %158 = vector.load %arg26[%c1_176, %c32_177] : memref<2x96xf32, #tpu.memory_space<vmem>>, vector<1x16xf32>
    tpu.vector_store %arg26[%c1_176, %c32_177], %157 {strides = array<i32>} : memref<2x96xf32, #tpu.memory_space<vmem>>, vector<1x16xf32>,
    %159 = vector.extract_strided_slice %140 {offsets = [9, 0], sizes = [1, 16], strides = [1, 1]} : vector<12x16xf32> to vector<1x16xf32>
    %c1_178 = arith.constant 1 : index
    %c48_179 = arith.constant 48 : index
    %160 = vector.load %arg26[%c1_178, %c48_179] : memref<2x96xf32, #tpu.memory_space<vmem>>, vector<1x16xf32>
    tpu.vector_store %arg26[%c1_178, %c48_179], %159 {strides = array<i32>} : memref<2x96xf32, #tpu.memory_space<vmem>>, vector<1x16xf32>,
    %161 = vector.extract_strided_slice %140 {offsets = [10, 0], sizes = [1, 16], strides = [1, 1]} : vector<12x16xf32> to vector<1x16xf32>
    %c1_180 = arith.constant 1 : index
    %c64_181 = arith.constant 64 : index
    %162 = vector.load %arg26[%c1_180, %c64_181] : memref<2x96xf32, #tpu.memory_space<vmem>>, vector<1x16xf32>
    tpu.vector_store %arg26[%c1_180, %c64_181], %161 {strides = array<i32>} : memref<2x96xf32, #tpu.memory_space<vmem>>, vector<1x16xf32>,
    %163 = vector.extract_strided_slice %140 {offsets = [11, 0], sizes = [1, 16], strides = [1, 1]} : vector<12x16xf32> to vector<1x16xf32>
    %c1_182 = arith.constant 1 : index
    %c80_183 = arith.constant 80 : index
    %164 = vector.load %arg26[%c1_182, %c80_183] : memref<2x96xf32, #tpu.memory_space<vmem>>, vector<1x16xf32>
    tpu.vector_store %arg26[%c1_182, %c80_183], %163 {strides = array<i32>} : memref<2x96xf32, #tpu.memory_space<vmem>>, vector<1x16xf32>,
    %c0_184 = arith.constant 0 : index
    %c0_185 = arith.constant 0 : index
    %165 = vector.load %arg13[%c0_184, %c0_185] : memref<32x256xf32, #tpu.memory_space<vmem>>, vector<32x256xf32>
    %cst_186 = arith.constant dense<0.000000e+00> : vector<2x256xf32>
    %166 = tpu.matmul %20, %165, %cst_186 {dimension_numbers = #tpu.dot_dimension_numbers<[1], [0], [0], [1], [0, 0, 1, 1], [], []>} : vector<2x32xf32>, vector<32x256xf32>, vector<2x256xf32> -> vector<2x256xf32>
    %c0_187 = arith.constant 0 : index
    %c0_188 = arith.constant 0 : index
    %167 = vector.load %arg26[%c0_187, %c0_188] : memref<2x96xf32, #tpu.memory_space<vmem>>, vector<2x96xf32>
    %c0_189 = arith.constant 0 : index
    %c0_190 = arith.constant 0 : index
    %168 = vector.load %arg14[%c0_189, %c0_190] : memref<96x256xf32, #tpu.memory_space<vmem>>, vector<96x256xf32>
    %cst_191 = arith.constant dense<0.000000e+00> : vector<2x256xf32>
    %169 = tpu.matmul %167, %168, %cst_191 {dimension_numbers = #tpu.dot_dimension_numbers<[1], [0], [0], [1], [0, 0, 1, 1], [], []>} : vector<2x96xf32>, vector<96x256xf32>, vector<2x256xf32> -> vector<2x256xf32>
    %170 = arith.addf %166, %169 : vector<2x256xf32>
    %c0_192 = arith.constant 0 : index
    %c0_193 = arith.constant 0 : index
    %171 = vector.load %arg15[%c0_192, %c0_193] : memref<1x256xf32, #tpu.memory_space<vmem>>, vector<1x256xf32>
    %172 = vector.broadcast %171 : vector<1x256xf32> to vector<2x256xf32>
    %173 = arith.addf %170, %172 : vector<2x256xf32>
    %cst_194 = arith.constant 0.000000e+00 : f32
    %174 = vector.broadcast %cst_194 : f32 to vector<2x256xf32>
    %175 = arith.maximumf %173, %174 : vector<2x256xf32>
    %c0_195 = arith.constant 0 : index
    %c0_196 = arith.constant 0 : index
    %176 = vector.load %arg16[%c0_195, %c0_196] : memref<256x128xf32, #tpu.memory_space<vmem>>, vector<256x128xf32>
    %cst_197 = arith.constant dense<0.000000e+00> : vector<2x128xf32>
    %177 = tpu.matmul %175, %176, %cst_197 {dimension_numbers = #tpu.dot_dimension_numbers<[1], [0], [0], [1], [0, 0, 1, 1], [], []>} : vector<2x256xf32>, vector<256x128xf32>, vector<2x128xf32> -> vector<2x128xf32>
    %c0_198 = arith.constant 0 : index
    %c0_199 = arith.constant 0 : index
    %178 = vector.load %arg17[%c0_198, %c0_199] : memref<1x128xf32, #tpu.memory_space<vmem>>, vector<1x128xf32>
    %179 = vector.broadcast %178 : vector<1x128xf32> to vector<2x128xf32>
    %180 = arith.addf %177, %179 : vector<2x128xf32>
    %cst_200 = arith.constant 0.000000e+00 : f32
    %181 = vector.broadcast %cst_200 : f32 to vector<2x128xf32>
    %182 = arith.maximumf %180, %181 : vector<2x128xf32>
    %c0_201 = arith.constant 0 : index
    %c0_202 = arith.constant 0 : index
    %183 = vector.load %arg18[%c0_201, %c0_202] : memref<128x64xf32, #tpu.memory_space<vmem>>, vector<128x64xf32>
    %cst_203 = arith.constant dense<0.000000e+00> : vector<2x64xf32>
    %184 = tpu.matmul %182, %183, %cst_203 {dimension_numbers = #tpu.dot_dimension_numbers<[1], [0], [0], [1], [0, 0, 1, 1], [], []>} : vector<2x128xf32>, vector<128x64xf32>, vector<2x64xf32> -> vector<2x64xf32>
    %c0_204 = arith.constant 0 : index
    %c0_205 = arith.constant 0 : index
    %185 = vector.load %arg19[%c0_204, %c0_205] : memref<1x64xf32, #tpu.memory_space<vmem>>, vector<1x64xf32>
    %186 = vector.broadcast %185 : vector<1x64xf32> to vector<2x64xf32>
    %187 = arith.addf %184, %186 : vector<2x64xf32>
    %cst_206 = arith.constant 0.000000e+00 : f32
    %188 = vector.broadcast %cst_206 : f32 to vector<2x64xf32>
    %189 = arith.maximumf %187, %188 : vector<2x64xf32>
    %c0_207 = arith.constant 0 : index
    %c0_208 = arith.constant 0 : index
    %190 = vector.load %arg20[%c0_207, %c0_208] : memref<64x128xf32, #tpu.memory_space<vmem>>, vector<64x128xf32>
    %cst_209 = arith.constant dense<0.000000e+00> : vector<2x128xf32>
    %191 = tpu.matmul %189, %190, %cst_209 {dimension_numbers = #tpu.dot_dimension_numbers<[1], [0], [0], [1], [0, 0, 1, 1], [], []>} : vector<2x64xf32>, vector<64x128xf32>, vector<2x128xf32> -> vector<2x128xf32>
    %c0_210 = arith.constant 0 : index
    %c0_211 = arith.constant 0 : index
    %192 = vector.load %arg21[%c0_210, %c0_211] : memref<1x128xf32, #tpu.memory_space<vmem>>, vector<1x128xf32>
    %193 = vector.broadcast %192 : vector<1x128xf32> to vector<2x128xf32>
    %194 = arith.addf %191, %193 : vector<2x128xf32>
    %195 = arith.negf %194 : vector<2x128xf32>
    %196 = math.exp %195 : vector<2x128xf32>
    %cst_212 = arith.constant 1.000000e+00 : f32
    %197 = vector.broadcast %cst_212 : f32 to vector<2x128xf32>
    %198 = arith.addf %197, %196 : vector<2x128xf32>
    %199 = arith.divf %197, %198 : vector<2x128xf32>
    %c0_213 = arith.constant 0 : index
    %c0_214 = arith.constant 0 : index
    %200 = vector.load %arg22[%c0_213, %c0_214] : memref<2x128xf32, #tpu.memory_space<vmem>>, vector<2x128xf32>
    tpu.vector_store %arg22[%c0_213, %c0_214], %199 {strides = array<i32>} : memref<2x128xf32, #tpu.memory_space<vmem>>, vector<2x128xf32>,
    return
  }
  func.func @transform_0(%arg0: i32) -> (i32, i32) {
    %c0_i32 = arith.constant 0 : i32
    %c0_i32_0 = arith.constant 0 : i32
    %c0_i32_1 = arith.constant 0 : i32
    return %c0_i32, %c0_i32_0 : i32, i32
  }
  func.func @transform_1(%arg0: i32) -> (i32, i32) {
    %c0_i32 = arith.constant 0 : i32
    %c0_i32_0 = arith.constant 0 : i32
    %c0_i32_1 = arith.constant 0 : i32
    return %c0_i32, %c0_i32_0 : i32, i32
  }
  func.func @transform_2(%arg0: i32) -> (i32, i32) {
    %c0_i32 = arith.constant 0 : i32
    %c0_i32_0 = arith.constant 0 : i32
    %c0_i32_1 = arith.constant 0 : i32
    return %c0_i32, %c0_i32_0 : i32, i32
  }
  func.func @transform_3(%arg0: i32) -> (i32, i32) {
    %c0_i32 = arith.constant 0 : i32
    %c0_i32_0 = arith.constant 0 : i32
    %c0_i32_1 = arith.constant 0 : i32
    return %c0_i32, %c0_i32_0 : i32, i32
  }
  func.func @transform_4(%arg0: i32) -> (i32, i32) {
    %c0_i32 = arith.constant 0 : i32
    %c0_i32_0 = arith.constant 0 : i32
    %c0_i32_1 = arith.constant 0 : i32
    return %c0_i32, %c0_i32_0 : i32, i32
  }
  func.func @transform_5(%arg0: i32) -> (i32, i32) {
    %c0_i32 = arith.constant 0 : i32
    %c0_i32_0 = arith.constant 0 : i32
    %c0_i32_1 = arith.constant 0 : i32
    return %c0_i32, %c0_i32_0 : i32, i32
  }
  func.func @transform_6(%arg0: i32) -> (i32, i32) {
    %c0_i32 = arith.constant 0 : i32
    %c0_i32_0 = arith.constant 0 : i32
    %c0_i32_1 = arith.constant 0 : i32
    return %c0_i32, %c0_i32_0 : i32, i32
  }
  func.func @transform_7(%arg0: i32) -> (i32, i32, i32) {
    %c0_i32 = arith.constant 0 : i32
    %c0_i32_0 = arith.constant 0 : i32
    %c0_i32_1 = arith.constant 0 : i32
    %c0_i32_2 = arith.constant 0 : i32
    return %c0_i32, %c0_i32_0, %c0_i32_1 : i32, i32, i32
  }
  func.func @transform_8(%arg0: i32) -> (i32, i32) {
    %c0_i32 = arith.constant 0 : i32
    %c0_i32_0 = arith.constant 0 : i32
    %c0_i32_1 = arith.constant 0 : i32
    return %c0_i32, %c0_i32_0 : i32, i32
  }
  func.func @transform_9(%arg0: i32) -> (i32, i32) {
    %c0_i32 = arith.constant 0 : i32
    %c0_i32_0 = arith.constant 0 : i32
    %c0_i32_1 = arith.constant 0 : i32
    return %c0_i32, %c0_i32_0 : i32, i32
  }
  func.func @transform_10(%arg0: i32) -> (i32, i32) {
    %c0_i32 = arith.constant 0 : i32
    %c0_i32_0 = arith.constant 0 : i32
    %c0_i32_1 = arith.constant 0 : i32
    return %c0_i32, %c0_i32_0 : i32, i32
  }
  func.func @transform_11(%arg0: i32) -> (i32, i32) {
    %c0_i32 = arith.constant 0 : i32
    %c0_i32_0 = arith.constant 0 : i32
    %c0_i32_1 = arith.constant 0 : i32
    return %c0_i32, %c0_i32_0 : i32, i32
  }
  func.func @transform_12(%arg0: i32) -> (i32, i32) {
    %c0_i32 = arith.constant 0 : i32
    %c0_i32_0 = arith.constant 0 : i32
    %c0_i32_1 = arith.constant 0 : i32
    return %c0_i32, %c0_i32_0 : i32, i32
  }
  func.func @transform_13(%arg0: i32) -> (i32, i32) {
    %c0_i32 = arith.constant 0 : i32
    %c0_i32_0 = arith.constant 0 : i32
    %c0_i32_1 = arith.constant 0 : i32
    return %c0_i32, %c0_i32_0 : i32, i32
  }
  func.func @transform_14(%arg0: i32) -> (i32, i32) {
    %c0_i32 = arith.constant 0 : i32
    %c0_i32_0 = arith.constant 0 : i32
    %c0_i32_1 = arith.constant 0 : i32
    return %c0_i32, %c0_i32_0 : i32, i32
  }
  func.func @transform_15(%arg0: i32) -> (i32, i32) {
    %c0_i32 = arith.constant 0 : i32
    %c0_i32_0 = arith.constant 0 : i32
    %c0_i32_1 = arith.constant 0 : i32
    return %c0_i32, %c0_i32_0 : i32, i32
  }
  func.func @transform_16(%arg0: i32) -> (i32, i32) {
    %c0_i32 = arith.constant 0 : i32
    %c0_i32_0 = arith.constant 0 : i32
    %c0_i32_1 = arith.constant 0 : i32
    return %c0_i32, %c0_i32_0 : i32, i32
  }
  func.func @transform_17(%arg0: i32) -> (i32, i32) {
    %c0_i32 = arith.constant 0 : i32
    %c0_i32_0 = arith.constant 0 : i32
    %c0_i32_1 = arith.constant 0 : i32
    return %c0_i32, %c0_i32_0 : i32, i32
  }
  func.func @transform_18(%arg0: i32) -> (i32, i32) {
    %c0_i32 = arith.constant 0 : i32
    %c0_i32_0 = arith.constant 0 : i32
    %c0_i32_1 = arith.constant 0 : i32
    return %c0_i32, %c0_i32_0 : i32, i32
  }
  func.func @transform_19(%arg0: i32) -> (i32, i32) {
    %c0_i32 = arith.constant 0 : i32
    %c0_i32_0 = arith.constant 0 : i32
    %c0_i32_1 = arith.constant 0 : i32
    return %c0_i32, %c0_i32_0 : i32, i32
  }
  func.func @transform_20(%arg0: i32) -> (i32, i32) {
    %c0_i32 = arith.constant 0 : i32
    %c0_i32_0 = arith.constant 0 : i32
    %c0_i32_1 = arith.constant 0 : i32
    return %c0_i32, %c0_i32_0 : i32, i32
  }
  func.func @transform_21(%arg0: i32) -> (i32, i32) {
    %c0_i32 = arith.constant 0 : i32
    %c0_i32_0 = arith.constant 0 : i32
    %c0_i32_1 = arith.constant 0 : i32
    return %c0_i32, %c0_i32_0 : i32, i32
  }
}

</mosaic_0001>

<llo_original>
// kernel: model1_forward.1
$region0: #{model1_forward.1}
  #allocation0 [shape = 'u32[]', space=smem, size = 0x4, offset = 0x4, fixed_abs, tag = 'smem constant byte address 0x4 - core index']
  #allocation1 [shape = 'u32[144,128]{1,0:T(1,128)}', space=vmem, size = 0x12000, scoped, tag = 'internal scratch']
  #allocation2 [shape = 'f32[2,24,64]{2,1,0:T(8,128)}', space=vmem, size = 0x6000, scoped, tag = 'scratch operand']
  #allocation3 [shape = 'f32[30,640]{1,0:T(8,128)}', space=vmem, size = 0x14000, scoped, tag = 'scratch operand']
  #allocation4 [shape = 'f32[12,320]{1,0:T(8,128)}', space=vmem, size = 0x6000, scoped, tag = 'scratch operand']
  #allocation5 [shape = 'f32[2,96]{1,0:T(2,128)}', space=vmem, size = 0x400, scoped, tag = 'scratch operand']
  %s0 = inlined_call_operand.vmem [shape: f32[12,16], index: 0, kind: input, shape index: {}]
  %s1 = inlined_call_operand.vmem [shape: f32[12,12], index: 1, kind: input, shape index: {}]
  %s2 = inlined_call_operand.vmem [shape: f32[2,12], index: 2, kind: input, shape index: {}]
  %s3 = inlined_call_operand.vmem [shape: f32[16,32], index: 3, kind: input, shape index: {}]
  %s4 = inlined_call_operand.vmem [shape: f32[1,32], index: 4, kind: input, shape index: {}]
  %s5 = inlined_call_operand.vmem [shape: f32[32,32], index: 5, kind: input, shape index: {}]
  %s6 = inlined_call_operand.vmem [shape: f32[1,32], index: 6, kind: input, shape index: {}]
  %s7 = inlined_call_operand.vmem [shape: f32[2,8,64], index: 7, kind: input, shape index: {}]
  %s8 = inlined_call_operand.vmem [shape: f32[640,32], index: 8, kind: input, shape index: {}]
  %s9 = inlined_call_operand.vmem [shape: f32[1,32], index: 9, kind: input, shape index: {}]
  %s10 = inlined_call_operand.vmem [shape: f32[320,16], index: 10, kind: input, shape index: {}]
  %s11 = inlined_call_operand.vmem [shape: f32[1,16], index: 11, kind: input, shape index: {}]
  %s12 = inlined_call_operand.vmem [shape: f32[32,256], index: 12, kind: input, shape index: {}]
  %s13 = inlined_call_operand.vmem [shape: f32[96,256], index: 13, kind: input, shape index: {}]
  %s14 = inlined_call_operand.vmem [shape: f32[1,256], index: 14, kind: input, shape index: {}]
  %s15 = inlined_call_operand.vmem [shape: f32[256,128], index: 15, kind: input, shape index: {}]
  %s16 = inlined_call_operand.vmem [shape: f32[1,128], index: 16, kind: input, shape index: {}]
  %s17 = inlined_call_operand.vmem [shape: f32[128,64], index: 17, kind: input, shape index: {}]
  %s18 = inlined_call_operand.vmem [shape: f32[1,64], index: 18, kind: input, shape index: {}]
  %s19 = inlined_call_operand.vmem [shape: f32[64,128], index: 19, kind: input, shape index: {}]
  %s20 = inlined_call_operand.vmem [shape: f32[1,128], index: 20, kind: input, shape index: {}]
  %s21 = inlined_call_operand.vmem [shape: f32[2,128], index: 21, kind: output, shape index: {}]
  %s22 = sld [smem:[#allocation0]]
  $region94: #{model1_forward.1} parent=0
    _
  %s24 = ssub.s32 1, %s22
  %s25 = scalar_select 0, %s24, %s22
  // Predicated region
  $region2: #{model1_forward.1} parent=0 // pred_check
    _
  $region3: #{model1_forward.1} parent=0 // pred_check_branch
    %27 = sbr.rel (0) target = $region5
  $region4: #{model1_forward.1} parent=0 // pred_region
    _
  $region5: #{model1_forward.1} parent=0 // pred_fallthru
    _
  // Predicated region
  $region6: #{model1_forward.1} parent=0 // pred_check
    _
  $region7: #{model1_forward.1} parent=0 // pred_check_branch
    %29 = sbr.rel (0) target = $region9
  $region8: #{model1_forward.1} parent=0 // pred_region
    _
  $region9: #{model1_forward.1} parent=0 // pred_fallthru
    _
  // Predicated region
  $region10: #{model1_forward.1} parent=0 // pred_check
    _
  $region11: #{model1_forward.1} parent=0 // pred_check_branch
    %31 = sbr.rel (0) target = $region13
  $region12: #{model1_forward.1} parent=0 // pred_region
    _
  $region13: #{model1_forward.1} parent=0 // pred_fallthru
    _
  // Predicated region
  $region14: #{model1_forward.1} parent=0 // pred_check
    _
  $region15: #{model1_forward.1} parent=0 // pred_check_branch
    %33 = sbr.rel (0) target = $region17
  $region16: #{model1_forward.1} parent=0 // pred_region
    _
  $region17: #{model1_forward.1} parent=0 // pred_fallthru
    _
  // Predicated region
  $region18: #{model1_forward.1} parent=0 // pred_check
    _
  $region19: #{model1_forward.1} parent=0 // pred_check_branch
    %35 = sbr.rel (0) target = $region21
  $region20: #{model1_forward.1} parent=0 // pred_region
    _
  $region21: #{model1_forward.1} parent=0 // pred_fallthru
    _
  // Predicated region
  $region22: #{model1_forward.1} parent=0 // pred_check
    _
  $region23: #{model1_forward.1} parent=0 // pred_check_branch
    %37 = sbr.rel (0) target = $region25
  $region24: #{model1_forward.1} parent=0 // pred_region
    _
  $region25: #{model1_forward.1} parent=0 // pred_fallthru
    _
  // Predicated region
  $region26: #{model1_forward.1} parent=0 // pred_check
    _
  $region27: #{model1_forward.1} parent=0 // pred_check_branch
    %39 = sbr.rel (0) target = $region29
  $region28: #{model1_forward.1} parent=0 // pred_region
    _
  $region29: #{model1_forward.1} parent=0 // pred_fallthru
    _
  // Predicated region
  $region30: #{model1_forward.1} parent=0 // pred_check
    _
  $region31: #{model1_forward.1} parent=0 // pred_check_branch
    %41 = sbr.rel (0) target = $region33
  $region32: #{model1_forward.1} parent=0 // pred_region
    _
  $region33: #{model1_forward.1} parent=0 // pred_fallthru
    _
  // Predicated region
  $region34: #{model1_forward.1} parent=0 // pred_check
    _
  $region35: #{model1_forward.1} parent=0 // pred_check_branch
    %43 = sbr.rel (0) target = $region37
  $region36: #{model1_forward.1} parent=0 // pred_region
    _
  $region37: #{model1_forward.1} parent=0 // pred_fallthru
    _
  // Predicated region
  $region38: #{model1_forward.1} parent=0 // pred_check
    _
  $region39: #{model1_forward.1} parent=0 // pred_check_branch
    %45 = sbr.rel (0) target = $region41
  $region40: #{model1_forward.1} parent=0 // pred_region
    _
  $region41: #{model1_forward.1} parent=0 // pred_fallthru
    _
  // Predicated region
  $region42: #{model1_forward.1} parent=0 // pred_check
    _
  $region43: #{model1_forward.1} parent=0 // pred_check_branch
    %47 = sbr.rel (0) target = $region45
  $region44: #{model1_forward.1} parent=0 // pred_region
    _
  $region45: #{model1_forward.1} parent=0 // pred_fallthru
    _
  // Predicated region
  $region46: #{model1_forward.1} parent=0 // pred_check
    _
  $region47: #{model1_forward.1} parent=0 // pred_check_branch
    %49 = sbr.rel (0) target = $region49
  $region48: #{model1_forward.1} parent=0 // pred_region
    _
  $region49: #{model1_forward.1} parent=0 // pred_fallthru
    _
  // Predicated region
  $region50: #{model1_forward.1} parent=0 // pred_check
    _
  $region51: #{model1_forward.1} parent=0 // pred_check_branch
    %51 = sbr.rel (0) target = $region53
  $region52: #{model1_forward.1} parent=0 // pred_region
    _
  $region53: #{model1_forward.1} parent=0 // pred_fallthru
    _
  // Predicated region
  $region54: #{model1_forward.1} parent=0 // pred_check
    _
  $region55: #{model1_forward.1} parent=0 // pred_check_branch
    %53 = sbr.rel (0) target = $region57
  $region56: #{model1_forward.1} parent=0 // pred_region
    _
  $region57: #{model1_forward.1} parent=0 // pred_fallthru
    _
  // Predicated region
  $region58: #{model1_forward.1} parent=0 // pred_check
    _
  $region59: #{model1_forward.1} parent=0 // pred_check_branch
    %55 = sbr.rel (0) target = $region61
  $region60: #{model1_forward.1} parent=0 // pred_region
    _
  $region61: #{model1_forward.1} parent=0 // pred_fallthru
    _
  // Predicated region
  $region62: #{model1_forward.1} parent=0 // pred_check
    _
  $region63: #{model1_forward.1} parent=0 // pred_check_branch
    %57 = sbr.rel (0) target = $region65
  $region64: #{model1_forward.1} parent=0 // pred_region
    _
  $region65: #{model1_forward.1} parent=0 // pred_fallthru
    _
  // Predicated region
  $region66: #{model1_forward.1} parent=0 // pred_check
    _
  $region67: #{model1_forward.1} parent=0 // pred_check_branch
    %59 = sbr.rel (0) target = $region69
  $region68: #{model1_forward.1} parent=0 // pred_region
    _
  $region69: #{model1_forward.1} parent=0 // pred_fallthru
    _
  // Predicated region
  $region70: #{model1_forward.1} parent=0 // pred_check
    _
  $region71: #{model1_forward.1} parent=0 // pred_check_branch
    %61 = sbr.rel (0) target = $region73
  $region72: #{model1_forward.1} parent=0 // pred_region
    _
  $region73: #{model1_forward.1} parent=0 // pred_fallthru
    _
  // Predicated region
  $region74: #{model1_forward.1} parent=0 // pred_check
    _
  $region75: #{model1_forward.1} parent=0 // pred_check_branch
    %63 = sbr.rel (0) target = $region77
  $region76: #{model1_forward.1} parent=0 // pred_region
    _
  $region77: #{model1_forward.1} parent=0 // pred_fallthru
    _
  // Predicated region
  $region78: #{model1_forward.1} parent=0 // pred_check
    _
  $region79: #{model1_forward.1} parent=0 // pred_check_branch
    %65 = sbr.rel (0) target = $region81
  $region80: #{model1_forward.1} parent=0 // pred_region
    _
  $region81: #{model1_forward.1} parent=0 // pred_fallthru
    _
  // Predicated region
  $region82: #{model1_forward.1} parent=0 // pred_check
    _
  $region83: #{model1_forward.1} parent=0 // pred_check_branch
    %67 = sbr.rel (0) target = $region85
  $region84: #{model1_forward.1} parent=0 // pred_region
    _
  $region85: #{model1_forward.1} parent=0 // pred_fallthru
    _
  %v68 = vld [vmem:[%s0] sm:$0xff]
  %v69 = vld [vmem:[%s0 + $0x8] sm:$0xf]
  %v70 = vld [vmem:[%s3] sm:$0xff]
  %v71 = vld [vmem:[%s3 + $0x8] sm:$0xff]
  %vm72 = vcmask 130048
  %v74 = vsel %vm72, %v68, 0
  %v77 = vsel %vm72, %v69, 0
  %79 = vmatprep.subr.mxu0 0.0
  %80 = vmatpush1.msra.mxu0 %v70
  %81 = vmatprep.subr.mxu0 0.0
  %82 = vmatpush1.msra.mxu0 %v71
  %83 = vmatprep.subr.mxu0 0.0
  %84 = vmatpush1.msra.mxu0 0.0
  %85 = vmatprep.subr.mxu0 0.0
  %86 = vmatpush1.msra.mxu0 0.0
  %87 = vmatprep.subr.mxu0 0.0
  %88 = vmatpush1.msra.mxu0 0.0
  %89 = vmatprep.subr.mxu0 0.0
  %90 = vmatpush1.msra.mxu0 0.0
  %91 = vmatprep.subr.mxu0 0.0
  %92 = vmatpush1.msra.mxu0 0.0
  %93 = vmatprep.subr.mxu0 0.0
  %94 = vmatpush1.msra.mxu0 0.0
  %95 = vmatprep.subr.mxu0 0.0
  %96 = vmatpush1.msra.mxu0 0.0
  %97 = vmatprep.subr.mxu0 0.0
  %98 = vmatpush1.msra.mxu0 0.0
  %99 = vmatprep.subr.mxu0 0.0
  %100 = vmatpush1.msra.mxu0 0.0
  %101 = vmatprep.subr.mxu0 0.0
  %102 = vmatpush1.msra.mxu0 0.0
  %103 = vmatprep.subr.mxu0 0.0
  %104 = vmatpush1.msra.mxu0 0.0
  %105 = vmatprep.subr.mxu0 0.0
  %106 = vmatpush1.msra.mxu0 0.0
  %107 = vmatprep.subr.mxu0 0.0
  %108 = vmatpush1.msra.mxu0 0.0
  %109 = vmatprep.subr.mxu0 0.0
  %110 = vmatpush1.msra.mxu0 0.0
  %111 = vmatprep.subr.mxu0 0.0
  %112 = vmatpush1.msra.mxu0 0.0
  %113 = vmatprep.subr.mxu0 0.0
  %114 = vmatpush1.msra.mxu0 0.0
  %115 = vmatprep.subr.mxu0 0.0
  %116 = vmatpush1.msra.mxu0 0.0
  %117 = vmatprep.subr.mxu0 0.0
  %118 = vmatpush1.msra.mxu0 0.0
  %119 = vmatprep.subr.mxu0 0.0
  %120 = vmatpush1.msra.mxu0 0.0
  %121 = vmatprep.subr.mxu0 0.0
  %122 = vmatpush1.msra.mxu0 0.0
  %123 = vmatprep.subr.mxu0 0.0
  %124 = vmatpush1.msra.mxu0 0.0
  %125 = vmatprep.subr.mxu0 0.0
  %126 = vmatpush1.msra.mxu0 0.0
  %127 = vmatprep.subr.mxu0 0.0
  %128 = vmatpush1.msra.mxu0 0.0
  %129 = vmatprep.subr.mxu0 0.0
  %130 = vmatpush1.msra.mxu0 0.0
  %131 = vmatprep.subr.mxu0 0.0
  %132 = vmatpush1.msra.mxu0 0.0
  %133 = vmatprep.subr.mxu0 0.0
  %134 = vmatpush1.msra.mxu0 0.0
  %135 = vmatprep.subr.mxu0 0.0
  %136 = vmatpush1.msra.mxu0 0.0
  %137 = vmatprep.subr.mxu0 0.0
  %138 = vmatpush1.msra.mxu0 0.0
  %139 = vmatprep.subr.mxu0 0.0
  %140 = vmatpush1.msra.mxu0 0.0
  %141 = vmatprep.subr.mxu0 0.0
  %142 = vmatpush1.msra.mxu0 0.0
  %143 = vmatprep.mubr.f32.mxu0 0.0
  %144 = vmatmul.mubr.f32.gmra.mrb[0].mxu0 %v74
  %v145 = vpop.f32.mrb[0].mxu0
  %v146 = vadd.f32 0.0, %v145
  %v147 = vpop.f32.mrb[0].mxu0
  %148 = vmatprep.mubr.f32.mxu0 0.0
  %149 = vmatmul.mubr.f32.gmra.mrb[0].mxu0 %v77
  %v150 = vpop.f32.mrb[0].mxu0
  %v151 = vadd.f32 0.0, %v150
  %v152 = vpop.f32.mrb[0].mxu0
  %153 = vdwg.mxu0
  %v154 = vld [vmem:[%s1] sm:$0xff]
  %v155 = vld [vmem:[%s1 + $0x8] sm:$0xf]
  %v156 = vld [vmem:[%s4] sm:$0x1]
  %v158 = vlaneseq
  %v159 = vshrl.u32 %v158, 7
  %v160 = vsub.s32 0, %v159
  %v161 = vrot.slane %v156, %v160
  %vm163 = vcmask 97280
  %v165 = vsel %vm163, %v154, 0
  %v168 = vsel %vm163, %v155, 0
  %vm170 = vcmask 1043456
  %v172 = vsel %vm170, %v151, 0
  %174 = vmatprep.subr.mxu0 0.0
  %175 = vmatpush1.msra.mxu0 %v146
  %176 = vmatprep.subr.mxu0 0.0
  %177 = vmatpush1.msra.mxu0 %v172
  %178 = vmatprep.subr.mxu0 0.0
  %179 = vmatpush1.msra.mxu0 0.0
  %180 = vmatprep.subr.mxu0 0.0
  %181 = vmatpush1.msra.mxu0 0.0
  %182 = vmatprep.subr.mxu0 0.0
  %183 = vmatpush1.msra.mxu0 0.0
  %184 = vmatprep.subr.mxu0 0.0
  %185 = vmatpush1.msra.mxu0 0.0
  %186 = vmatprep.subr.mxu0 0.0
  %187 = vmatpush1.msra.mxu0 0.0
  %188 = vmatprep.subr.mxu0 0.0
  %189 = vmatpush1.msra.mxu0 0.0
  %190 = vmatprep.subr.mxu0 0.0
  %191 = vmatpush1.msra.mxu0 0.0
  %192 = vmatprep.subr.mxu0 0.0
  %193 = vmatpush1.msra.mxu0 0.0
  %194 = vmatprep.subr.mxu0 0.0
  %195 = vmatpush1.msra.mxu0 0.0
  %196 = vmatprep.subr.mxu0 0.0
  %197 = vmatpush1.msra.mxu0 0.0
  %198 = vmatprep.subr.mxu0 0.0
  %199 = vmatpush1.msra.mxu0 0.0
  %200 = vmatprep.subr.mxu0 0.0
  %201 = vmatpush1.msra.mxu0 0.0
  %202 = vmatprep.subr.mxu0 0.0
  %203 = vmatpush1.msra.mxu0 0.0
  %204 = vmatprep.subr.mxu0 0.0
  %205 = vmatpush1.msra.mxu0 0.0
  %206 = vmatprep.subr.mxu0 0.0
  %207 = vmatpush1.msra.mxu0 0.0
  %208 = vmatprep.subr.mxu0 0.0
  %209 = vmatpush1.msra.mxu0 0.0
  %210 = vmatprep.subr.mxu0 0.0
  %211 = vmatpush1.msra.mxu0 0.0
  %212 = vmatprep.subr.mxu0 0.0
  %213 = vmatpush1.msra.mxu0 0.0
  %214 = vmatprep.subr.mxu0 0.0
  %215 = vmatpush1.msra.mxu0 0.0
  %216 = vmatprep.subr.mxu0 0.0
  %217 = vmatpush1.msra.mxu0 0.0
  %218 = vmatprep.subr.mxu0 0.0
  %219 = vmatpush1.msra.mxu0 0.0
  %220 = vmatprep.subr.mxu0 0.0
  %221 = vmatpush1.msra.mxu0 0.0
  %222 = vmatprep.subr.mxu0 0.0
  %223 = vmatpush1.msra.mxu0 0.0
  %224 = vmatprep.subr.mxu0 0.0
  %225 = vmatpush1.msra.mxu0 0.0
  %226 = vmatprep.subr.mxu0 0.0
  %227 = vmatpush1.msra.mxu0 0.0
  %228 = vmatprep.subr.mxu0 0.0
  %229 = vmatpush1.msra.mxu0 0.0
  %230 = vmatprep.subr.mxu0 0.0
  %231 = vmatpush1.msra.mxu0 0.0
  %232 = vmatprep.subr.mxu0 0.0
  %233 = vmatpush1.msra.mxu0 0.0
  %234 = vmatprep.subr.mxu0 0.0
  %235 = vmatpush1.msra.mxu0 0.0
  %236 = vmatprep.subr.mxu0 0.0
  %237 = vmatpush1.msra.mxu0 0.0
  %238 = vmatprep.mubr.f32.mxu0 0.0
  %239 = vmatmul.mubr.f32.gmra.mrb[0].mxu0 %v165
  %v240 = vpop.f32.mrb[0].mxu0
  %v241 = vadd.f32 %v161, %v240
  %v242 = vpop.f32.mrb[0].mxu0
  %243 = vmatprep.mubr.f32.mxu0 0.0
  %244 = vmatmul.mubr.f32.gmra.mrb[0].mxu0 %v168
  %v245 = vpop.f32.mrb[0].mxu0
  %v246 = vadd.f32 %v161, %v245
  %v247 = vpop.f32.mrb[0].mxu0
  %248 = vdwg.mxu0
  %v249 = vmax.f32 %v241, 0.0
  %v250 = vmax.f32 %v246, 0.0
  %v251 = vld [vmem:[%s5] sm:$0xff]
  %v252 = vld [vmem:[%s5 + $0x8] sm:$0xff]
  %v253 = vld [vmem:[%s5 + $0x10] sm:$0xff]
  %v254 = vld [vmem:[%s5 + $0x18] sm:$0xff]
  %vm255 = vcmask 261120
  %v257 = vsel %vm255, %v249, 0
  %v260 = vsel %vm255, %v250, 0
  %262 = vmatprep.subr.mxu0 0.0
  %263 = vmatpush1.msra.mxu0 %v251
  %264 = vmatprep.subr.mxu0 0.0
  %265 = vmatpush1.msra.mxu0 %v252
  %266 = vmatprep.subr.mxu0 0.0
  %267 = vmatpush1.msra.mxu0 %v253
  %268 = vmatprep.subr.mxu0 0.0
  %269 = vmatpush1.msra.mxu0 %v254
  %270 = vmatprep.subr.mxu0 0.0
  %271 = vmatpush1.msra.mxu0 0.0
  %272 = vmatprep.subr.mxu0 0.0
  %273 = vmatpush1.msra.mxu0 0.0
  %274 = vmatprep.subr.mxu0 0.0
  %275 = vmatpush1.msra.mxu0 0.0
  %276 = vmatprep.subr.mxu0 0.0
  %277 = vmatpush1.msra.mxu0 0.0
  %278 = vmatprep.subr.mxu0 0.0
  %279 = vmatpush1.msra.mxu0 0.0
  %280 = vmatprep.subr.mxu0 0.0
  %281 = vmatpush1.msra.mxu0 0.0
  %282 = vmatprep.subr.mxu0 0.0
  %283 = vmatpush1.msra.mxu0 0.0
  %284 = vmatprep.subr.mxu0 0.0
  %285 = vmatpush1.msra.mxu0 0.0
  %286 = vmatprep.subr.mxu0 0.0
  %287 = vmatpush1.msra.mxu0 0.0
  %288 = vmatprep.subr.mxu0 0.0
  %289 = vmatpush1.msra.mxu0 0.0
  %290 = vmatprep.subr.mxu0 0.0
  %291 = vmatpush1.msra.mxu0 0.0
  %292 = vmatprep.subr.mxu0 0.0
  %293 = vmatpush1.msra.mxu0 0.0
  %294 = vmatprep.subr.mxu0 0.0
  %295 = vmatpush1.msra.mxu0 0.0
  %296 = vmatprep.subr.mxu0 0.0
  %297 = vmatpush1.msra.mxu0 0.0
  %298 = vmatprep.subr.mxu0 0.0
  %299 = vmatpush1.msra.mxu0 0.0
  %300 = vmatprep.subr.mxu0 0.0
  %301 = vmatpush1.msra.mxu0 0.0
  %302 = vmatprep.subr.mxu0 0.0
  %303 = vmatpush1.msra.mxu0 0.0
  %304 = vmatprep.subr.mxu0 0.0
  %305 = vmatpush1.msra.mxu0 0.0
  %306 = vmatprep.subr.mxu0 0.0
  %307 = vmatpush1.msra.mxu0 0.0
  %308 = vmatprep.subr.mxu0 0.0
  %309 = vmatpush1.msra.mxu0 0.0
  %310 = vmatprep.subr.mxu0 0.0
  %311 = vmatpush1.msra.mxu0 0.0
  %312 = vmatprep.subr.mxu0 0.0
  %313 = vmatpush1.msra.mxu0 0.0
  %314 = vmatprep.subr.mxu0 0.0
  %315 = vmatpush1.msra.mxu0 0.0
  %316 = vmatprep.subr.mxu0 0.0
  %317 = vmatpush1.msra.mxu0 0.0
  %318 = vmatprep.subr.mxu0 0.0
  %319 = vmatpush1.msra.mxu0 0.0
  %320 = vmatprep.subr.mxu0 0.0
  %321 = vmatpush1.msra.mxu0 0.0
  %322 = vmatprep.subr.mxu0 0.0
  %323 = vmatpush1.msra.mxu0 0.0
  %324 = vmatprep.subr.mxu0 0.0
  %325 = vmatpush1.msra.mxu0 0.0
  %326 = vmatprep.mubr.f32.mxu0 0.0
  %327 = vmatmul.mubr.f32.gmra.mrb[0].mxu0 %v257
  %v328 = vpop.f32.mrb[0].mxu0
  %v329 = vadd.f32 0.0, %v328
  %v330 = vpop.f32.mrb[0].mxu0
  %331 = vmatprep.mubr.f32.mxu0 0.0
  %332 = vmatmul.mubr.f32.gmra.mrb[0].mxu0 %v260
  %v333 = vpop.f32.mrb[0].mxu0
  %v334 = vadd.f32 0.0, %v333
  %v335 = vpop.f32.mrb[0].mxu0
  %336 = vdwg.mxu0
  %v337 = vld [vmem:[%s6] sm:$0x1]
  %v339 = vlaneseq
  %v340 = vshrl.u32 %v339, 7
  %v341 = vsub.s32 0, %v340
  %v342 = vrot.slane %v337, %v341
  %v345 = vsel %vm170, %v334, 0
  %347 = vmatprep.subr.mxu0 0.0
  %348 = vmatpush1.msra.mxu0 %v329
  %349 = vmatprep.subr.mxu0 0.0
  %350 = vmatpush1.msra.mxu0 %v345
  %351 = vmatprep.subr.mxu0 0.0
  %352 = vmatpush1.msra.mxu0 0.0
  %353 = vmatprep.subr.mxu0 0.0
  %354 = vmatpush1.msra.mxu0 0.0
  %355 = vmatprep.subr.mxu0 0.0
  %356 = vmatpush1.msra.mxu0 0.0
  %357 = vmatprep.subr.mxu0 0.0
  %358 = vmatpush1.msra.mxu0 0.0
  %359 = vmatprep.subr.mxu0 0.0
  %360 = vmatpush1.msra.mxu0 0.0
  %361 = vmatprep.subr.mxu0 0.0
  %362 = vmatpush1.msra.mxu0 0.0
  %363 = vmatprep.subr.mxu0 0.0
  %364 = vmatpush1.msra.mxu0 0.0
  %365 = vmatprep.subr.mxu0 0.0
  %366 = vmatpush1.msra.mxu0 0.0
  %367 = vmatprep.subr.mxu0 0.0
  %368 = vmatpush1.msra.mxu0 0.0
  %369 = vmatprep.subr.mxu0 0.0
  %370 = vmatpush1.msra.mxu0 0.0
  %371 = vmatprep.subr.mxu0 0.0
  %372 = vmatpush1.msra.mxu0 0.0
  %373 = vmatprep.subr.mxu0 0.0
  %374 = vmatpush1.msra.mxu0 0.0
  %375 = vmatprep.subr.mxu0 0.0
  %376 = vmatpush1.msra.mxu0 0.0
  %377 = vmatprep.subr.mxu0 0.0
  %378 = vmatpush1.msra.mxu0 0.0
  %379 = vmatprep.subr.mxu0 0.0
  %380 = vmatpush1.msra.mxu0 0.0
  %381 = vmatprep.subr.mxu0 0.0
  %382 = vmatpush1.msra.mxu0 0.0
  %383 = vmatprep.subr.mxu0 0.0
  %384 = vmatpush1.msra.mxu0 0.0
  %385 = vmatprep.subr.mxu0 0.0
  %386 = vmatpush1.msra.mxu0 0.0
  %387 = vmatprep.subr.mxu0 0.0
  %388 = vmatpush1.msra.mxu0 0.0
  %389 = vmatprep.subr.mxu0 0.0
  %390 = vmatpush1.msra.mxu0 0.0
  %391 = vmatprep.subr.mxu0 0.0
  %392 = vmatpush1.msra.mxu0 0.0
  %393 = vmatprep.subr.mxu0 0.0
  %394 = vmatpush1.msra.mxu0 0.0
  %395 = vmatprep.subr.mxu0 0.0
  %396 = vmatpush1.msra.mxu0 0.0
  %397 = vmatprep.subr.mxu0 0.0
  %398 = vmatpush1.msra.mxu0 0.0
  %399 = vmatprep.subr.mxu0 0.0
  %400 = vmatpush1.msra.mxu0 0.0
  %401 = vmatprep.subr.mxu0 0.0
  %402 = vmatpush1.msra.mxu0 0.0
  %403 = vmatprep.subr.mxu0 0.0
  %404 = vmatpush1.msra.mxu0 0.0
  %405 = vmatprep.subr.mxu0 0.0
  %406 = vmatpush1.msra.mxu0 0.0
  %407 = vmatprep.subr.mxu0 0.0
  %408 = vmatpush1.msra.mxu0 0.0
  %409 = vmatprep.subr.mxu0 0.0
  %410 = vmatpush1.msra.mxu0 0.0
  %411 = vmatprep.mubr.f32.mxu0 0.0
  %412 = vmatmul.mubr.f32.gmra.mrb[0].mxu0 %v165
  %v413 = vpop.f32.mrb[0].mxu0
  %v414 = vadd.f32 %v342, %v413
  %v415 = vpop.f32.mrb[0].mxu0
  %416 = vmatprep.mubr.f32.mxu0 0.0
  %417 = vmatmul.mubr.f32.gmra.mrb[0].mxu0 %v168
  %v418 = vpop.f32.mrb[0].mxu0
  %v419 = vadd.f32 %v342, %v418
  %v420 = vpop.f32.mrb[0].mxu0
  %421 = vdwg.mxu0
  %v422 = vmax.f32 %v414, 0.0
  %v423 = vmax.f32 %v419, 0.0
  %v424 = vld [vmem:[%s2] sm:$0x3]
  %v426 = vsel %vm163, %v424, 0
  %v429 = vsel %vm170, %v423, 0
  %431 = vmatprep.subr.mxu0 0.0
  %432 = vmatpush1.msra.mxu0 %v422
  %433 = vmatprep.subr.mxu0 0.0
  %434 = vmatpush1.msra.mxu0 %v429
  %435 = vmatprep.subr.mxu0 0.0
  %436 = vmatpush1.msra.mxu0 0.0
  %437 = vmatprep.subr.mxu0 0.0
  %438 = vmatpush1.msra.mxu0 0.0
  %439 = vmatprep.subr.mxu0 0.0
  %440 = vmatpush1.msra.mxu0 0.0
  %441 = vmatprep.subr.mxu0 0.0
  %442 = vmatpush1.msra.mxu0 0.0
  %443 = vmatprep.subr.mxu0 0.0
  %444 = vmatpush1.msra.mxu0 0.0
  %445 = vmatprep.subr.mxu0 0.0
  %446 = vmatpush1.msra.mxu0 0.0
  %447 = vmatprep.subr.mxu0 0.0
  %448 = vmatpush1.msra.mxu0 0.0
  %449 = vmatprep.subr.mxu0 0.0
  %450 = vmatpush1.msra.mxu0 0.0
  %451 = vmatprep.subr.mxu0 0.0
  %452 = vmatpush1.msra.mxu0 0.0
  %453 = vmatprep.subr.mxu0 0.0
  %454 = vmatpush1.msra.mxu0 0.0
  %455 = vmatprep.subr.mxu0 0.0
  %456 = vmatpush1.msra.mxu0 0.0
  %457 = vmatprep.subr.mxu0 0.0
  %458 = vmatpush1.msra.mxu0 0.0
  %459 = vmatprep.subr.mxu0 0.0
  %460 = vmatpush1.msra.mxu0 0.0
  %461 = vmatprep.subr.mxu0 0.0
  %462 = vmatpush1.msra.mxu0 0.0
  %463 = vmatprep.subr.mxu0 0.0
  %464 = vmatpush1.msra.mxu0 0.0
  %465 = vmatprep.subr.mxu0 0.0
  %466 = vmatpush1.msra.mxu0 0.0
  %467 = vmatprep.subr.mxu0 0.0
  %468 = vmatpush1.msra.mxu0 0.0
  %469 = vmatprep.subr.mxu0 0.0
  %470 = vmatpush1.msra.mxu0 0.0
  %471 = vmatprep.subr.mxu0 0.0
  %472 = vmatpush1.msra.mxu0 0.0
  %473 = vmatprep.subr.mxu0 0.0
  %474 = vmatpush1.msra.mxu0 0.0
  %475 = vmatprep.subr.mxu0 0.0
  %476 = vmatpush1.msra.mxu0 0.0
  %477 = vmatprep.subr.mxu0 0.0
  %478 = vmatpush1.msra.mxu0 0.0
  %479 = vmatprep.subr.mxu0 0.0
  %480 = vmatpush1.msra.mxu0 0.0
  %481 = vmatprep.subr.mxu0 0.0
  %482 = vmatpush1.msra.mxu0 0.0
  %483 = vmatprep.subr.mxu0 0.0
  %484 = vmatpush1.msra.mxu0 0.0
  %485 = vmatprep.subr.mxu0 0.0
  %486 = vmatpush1.msra.mxu0 0.0
  %487 = vmatprep.subr.mxu0 0.0
  %488 = vmatpush1.msra.mxu0 0.0
  %489 = vmatprep.subr.mxu0 0.0
  %490 = vmatpush1.msra.mxu0 0.0
  %491 = vmatprep.subr.mxu0 0.0
  %492 = vmatpush1.msra.mxu0 0.0
  %493 = vmatprep.subr.mxu0 0.0
  %494 = vmatpush1.msra.mxu0 0.0
  %495 = vmatprep.mubr.f32.mxu0 0.0
  %496 = vmatmul.mubr.f32.gmra.mrb[0].mxu0 %v426
  %v497 = vpop.f32.mrb[0].mxu0
  %v498 = vadd.f32 0.0, %v497
  %v499 = vpop.f32.mrb[0].mxu0
  %500 = vdwg.mxu0
  %vm501 = vcmask 523264
  %502 = vst.msk [vmem:[#allocation2] sm:$0xff] %vm501, 0.0
  %503 = vst.msk [vmem:[#allocation2 + $0x8] sm:$0xff] %vm501, 0.0
  %504 = vst.msk [vmem:[#allocation2 + $0x10] sm:$0xff] %vm501, 0.0
  %505 = vst.msk [vmem:[#allocation2 + $0x18] sm:$0xff] %vm501, 0.0
  %506 = vst.msk [vmem:[#allocation2 + $0x20] sm:$0xff] %vm501, 0.0
  %507 = vst.msk [vmem:[#allocation2 + $0x28] sm:$0xff] %vm501, 0.0
  %v508 = vld [vmem:[%s7] sm:$0xff]
  %v509 = vld [vmem:[%s7 + $0x8] sm:$0xff]
  %510 = vst.msk [vmem:[#allocation2 + $0x8] sm:$0xff] %vm501, %v508
  %511 = vst.msk [vmem:[#allocation2 + $0x20] sm:$0xff] %vm501, %v509
  %v512 = vld [vmem:[#allocation2] sm:$0xff]
  %v513 = vld [vmem:[#allocation2 + $0x8] sm:$0x7f]
  %514 = vst.msk [vmem:[#allocation3] sm:$0xff] %vm501, %v512
  %vm515 = vcmask 522240
  %516 = vst.msk [vmem:[#allocation3 + $0x28] sm:$0x7f] %vm515, %v513
  %v517 = vld [vmem:[#allocation2 + $0x1] sm:$0xff]
  %v518 = vld [vmem:[#allocation2 + $0x9] sm:$0x7f]
  %521 = vrot.lane.b32.xlu0 %v517, 64
  %v522 = vpop.permute.xlu0 %521
  %523 = vrot.lane.b32.xlu0 %v518, 64
  %v524 = vpop.permute.xlu0 %523
  %vm527 = vcmask 1048064
  %528 = vst.msk [vmem:[#allocation3] sm:$0xff] %vm527, %v522
  %vm529 = vcmask 1047040
  %530 = vst.msk [vmem:[#allocation3 + $0x28] sm:$0x7f] %vm529, %v524
  %v531 = vld [vmem:[#allocation2 + $0x2] sm:$0xff]
  %v532 = vld [vmem:[#allocation2 + $0xa] sm:$0x7f]
  %533 = vst.msk [vmem:[#allocation3 + $0x8] sm:$0xff] %vm501, %v531
  %534 = vst.msk [vmem:[#allocation3 + $0x30] sm:$0x7f] %vm515, %v532
  %v535 = vld [vmem:[#allocation2 + $0x3] sm:$0xff]
  %v536 = vld [vmem:[#allocation2 + $0xb] sm:$0x7f]
  %539 = vrot.lane.b32.xlu0 %v535, 64
  %v540 = vpop.permute.xlu0 %539
  %541 = vrot.lane.b32.xlu0 %v536, 64
  %v542 = vpop.permute.xlu0 %541
  %545 = vst.msk [vmem:[#allocation3 + $0x8] sm:$0xff] %vm527, %v540
  %546 = vst.msk [vmem:[#allocation3 + $0x30] sm:$0x7f] %vm529, %v542
  %v547 = vld [vmem:[#allocation2 + $0x4] sm:$0xff]
  %v548 = vld [vmem:[#allocation2 + $0xc] sm:$0x7f]
  %549 = vst.msk [vmem:[#allocation3 + $0x10] sm:$0xff] %vm501, %v547
  %550 = vst.msk [vmem:[#allocation3 + $0x38] sm:$0x7f] %vm515, %v548
  %v551 = vld [vmem:[#allocation2 + $0x5] sm:$0xff]
  %v552 = vld [vmem:[#allocation2 + $0xd] sm:$0x7f]
  %555 = vrot.lane.b32.xlu0 %v551, 64
  %v556 = vpop.permute.xlu0 %555
  %557 = vrot.lane.b32.xlu0 %v552, 64
  %v558 = vpop.permute.xlu0 %557
  %561 = vst.msk [vmem:[#allocation3 + $0x10] sm:$0xff] %vm527, %v556
  %562 = vst.msk [vmem:[#allocation3 + $0x38] sm:$0x7f] %vm529, %v558
  %v563 = vld [vmem:[#allocation2 + $0x6] sm:$0xff]
  %v564 = vld [vmem:[#allocation2 + $0xe] sm:$0x7f]
  %565 = vst.msk [vmem:[#allocation3 + $0x18] sm:$0xff] %vm501, %v563
  %566 = vst.msk [vmem:[#allocation3 + $0x40] sm:$0x7f] %vm515, %v564
  %v567 = vld [vmem:[#allocation2 + $0x7] sm:$0xff]
  %v568 = vld [vmem:[#allocation2 + $0xf] sm:$0x7f]
  %571 = vrot.lane.b32.xlu0 %v567, 64
  %v572 = vpop.permute.xlu0 %571
  %573 = vrot.lane.b32.xlu0 %v568, 64
  %v574 = vpop.permute.xlu0 %573
  %577 = vst.msk [vmem:[#allocation3 + $0x18] sm:$0xff] %vm527, %v572
  %578 = vst.msk [vmem:[#allocation3 + $0x40] sm:$0x7f] %vm529, %v574
  %v579 = vld [vmem:[#allocation2 + $0x8] sm:$0xff]
  %v580 = vld [vmem:[#allocation2 + $0x10] sm:$0x7f]
  %581 = vst.msk [vmem:[#allocation3 + $0x20] sm:$0xff] %vm501, %v579
  %582 = vst.msk [vmem:[#allocation3 + $0x48] sm:$0x7f] %vm515, %v580
  %v583 = vld [vmem:[#allocation2 + $0x9] sm:$0xff]
  %v584 = vld [vmem:[#allocation2 + $0x11] sm:$0x7f]
  %587 = vrot.lane.b32.xlu0 %v583, 64
  %v588 = vpop.permute.xlu0 %587
  %589 = vrot.lane.b32.xlu0 %v584, 64
  %v590 = vpop.permute.xlu0 %589
  %593 = vst.msk [vmem:[#allocation3 + $0x20] sm:$0xff] %vm527, %v588
  %594 = vst.msk [vmem:[#allocation3 + $0x48] sm:$0x7f] %vm529, %v590
  %s595 = scalar_lea.vmem [#allocation2], 24
  %v596 = vld [vmem:[%s595] sm:$0xff]
  %v597 = vld [vmem:[%s595 + $0x8] sm:$0x7f]
  %vm600 = vcmask 1046528
  %v601 = vrot.slane %v596, 1
  %v602 = vrot.slane %v597, 1
  %v603 = vsel %vm600, %v601, %v602
  %vm607 = vcmask 523271
  %608 = vst.msk [vmem:[#allocation3 + $0x28] sm:$0x80] %vm607, %v601
  %609 = vst.msk [vmem:[#allocation3 + $0x50] sm:$0xff] %vm501, %v603
  %vm610 = vcmask 521216
  %611 = vst.msk [vmem:[#allocation3 + $0x78] sm:$0x3f] %vm610, %v602
  %v612 = vld [vmem:[%s595 + $0x1] sm:$0xff]
  %v613 = vld [vmem:[%s595 + $0x9] sm:$0x7f]
  %v616 = vrot.slane %v612, 1
  %v617 = vrot.slane %v613, 1
  %v618 = vsel %vm600, %v616, %v617
  %619 = vrot.lane.b32.xlu0 %v616, 64
  %v620 = vpop.permute.xlu0 %619
  %621 = vrot.lane.b32.xlu0 %v618, 64
  %v622 = vpop.permute.xlu0 %621
  %623 = vrot.lane.b32.xlu0 %v617, 64
  %v624 = vpop.permute.xlu0 %623
  %vm628 = vcmask 1048071
  %629 = vst.msk [vmem:[#allocation3 + $0x28] sm:$0x80] %vm628, %v620
  %630 = vst.msk [vmem:[#allocation3 + $0x50] sm:$0xff] %vm527, %v622
  %vm631 = vcmask 1046016
  %632 = vst.msk [vmem:[#allocation3 + $0x78] sm:$0x3f] %vm631, %v624
  %v633 = vld [vmem:[%s595 + $0x2] sm:$0xff]
  %v634 = vld [vmem:[%s595 + $0xa] sm:$0x7f]
  %v637 = vrot.slane %v633, 1
  %v638 = vrot.slane %v634, 1
  %v639 = vsel %vm600, %v637, %v638
  %643 = vst.msk [vmem:[#allocation3 + $0x30] sm:$0x80] %vm607, %v637
  %644 = vst.msk [vmem:[#allocation3 + $0x58] sm:$0xff] %vm501, %v639
  %645 = vst.msk [vmem:[#allocation3 + $0x80] sm:$0x3f] %vm610, %v638
  %v646 = vld [vmem:[%s595 + $0x3] sm:$0xff]
  %v647 = vld [vmem:[%s595 + $0xb] sm:$0x7f]
  %v650 = vrot.slane %v646, 1
  %v651 = vrot.slane %v647, 1
  %v652 = vsel %vm600, %v650, %v651
  %653 = vrot.lane.b32.xlu0 %v650, 64
  %v654 = vpop.permute.xlu0 %653
  %655 = vrot.lane.b32.xlu0 %v652, 64
  %v656 = vpop.permute.xlu0 %655
  %657 = vrot.lane.b32.xlu0 %v651, 64
  %v658 = vpop.permute.xlu0 %657
  %662 = vst.msk [vmem:[#allocation3 + $0x30] sm:$0x80] %vm628, %v654
  %663 = vst.msk [vmem:[#allocation3 + $0x58] sm:$0xff] %vm527, %v656
  %664 = vst.msk [vmem:[#allocation3 + $0x80] sm:$0x3f] %vm631, %v658
  %v665 = vld [vmem:[%s595 + $0x4] sm:$0xff]
  %v666 = vld [vmem:[%s595 + $0xc] sm:$0x7f]
  %v669 = vrot.slane %v665, 1
  %v670 = vrot.slane %v666, 1
  %v671 = vsel %vm600, %v669, %v670
  %675 = vst.msk [vmem:[#allocation3 + $0x38] sm:$0x80] %vm607, %v669
  %676 = vst.msk [vmem:[#allocation3 + $0x60] sm:$0xff] %vm501, %v671
  %677 = vst.msk [vmem:[#allocation3 + $0x88] sm:$0x3f] %vm610, %v670
  %v678 = vld [vmem:[%s595 + $0x5] sm:$0xff]
  %v679 = vld [vmem:[%s595 + $0xd] sm:$0x7f]
  %v682 = vrot.slane %v678, 1
  %v683 = vrot.slane %v679, 1
  %v684 = vsel %vm600, %v682, %v683
  %685 = vrot.lane.b32.xlu0 %v682, 64
  %v686 = vpop.permute.xlu0 %685
  %687 = vrot.lane.b32.xlu0 %v684, 64
  %v688 = vpop.permute.xlu0 %687
  %689 = vrot.lane.b32.xlu0 %v683, 64
  %v690 = vpop.permute.xlu0 %689
  %694 = vst.msk [vmem:[#allocation3 + $0x38] sm:$0x80] %vm628, %v686
  %695 = vst.msk [vmem:[#allocation3 + $0x60] sm:$0xff] %vm527, %v688
  %696 = vst.msk [vmem:[#allocation3 + $0x88] sm:$0x3f] %vm631, %v690
  %v697 = vld [vmem:[%s595 + $0x6] sm:$0xff]
  %v698 = vld [vmem:[%s595 + $0xe] sm:$0x7f]
  %v701 = vrot.slane %v697, 1
  %v702 = vrot.slane %v698, 1
  %v703 = vsel %vm600, %v701, %v702
  %707 = vst.msk [vmem:[#allocation3 + $0x40] sm:$0x80] %vm607, %v701
  %708 = vst.msk [vmem:[#allocation3 + $0x68] sm:$0xff] %vm501, %v703
  %709 = vst.msk [vmem:[#allocation3 + $0x90] sm:$0x3f] %vm610, %v702
  %v710 = vld [vmem:[%s595 + $0x7] sm:$0xff]
  %v711 = vld [vmem:[%s595 + $0xf] sm:$0x7f]
  %v714 = vrot.slane %v710, 1
  %v715 = vrot.slane %v711, 1
  %v716 = vsel %vm600, %v714, %v715
  %717 = vrot.lane.b32.xlu0 %v714, 64
  %v718 = vpop.permute.xlu0 %717
  %719 = vrot.lane.b32.xlu0 %v716, 64
  %v720 = vpop.permute.xlu0 %719
  %721 = vrot.lane.b32.xlu0 %v715, 64
  %v722 = vpop.permute.xlu0 %721
  %726 = vst.msk [vmem:[#allocation3 + $0x40] sm:$0x80] %vm628, %v718
  %727 = vst.msk [vmem:[#allocation3 + $0x68] sm:$0xff] %vm527, %v720
  %728 = vst.msk [vmem:[#allocation3 + $0x90] sm:$0x3f] %vm631, %v722
  %v729 = vld [vmem:[%s595 + $0x8] sm:$0xff]
  %v730 = vld [vmem:[%s595 + $0x10] sm:$0x7f]
  %v733 = vrot.slane %v729, 1
  %v734 = vrot.slane %v730, 1
  %v735 = vsel %vm600, %v733, %v734
  %739 = vst.msk [vmem:[#allocation3 + $0x48] sm:$0x80] %vm607, %v733
  %740 = vst.msk [vmem:[#allocation3 + $0x70] sm:$0xff] %vm501, %v735
  %741 = vst.msk [vmem:[#allocation3 + $0x98] sm:$0x3f] %vm610, %v734
  %v742 = vld [vmem:[%s595 + $0x9] sm:$0xff]
  %v743 = vld [vmem:[%s595 + $0x11] sm:$0x7f]
  %v746 = vrot.slane %v742, 1
  %v747 = vrot.slane %v743, 1
  %v748 = vsel %vm600, %v746, %v747
  %749 = vrot.lane.b32.xlu0 %v746, 64
  %v750 = vpop.permute.xlu0 %749
  %751 = vrot.lane.b32.xlu0 %v748, 64
  %v752 = vpop.permute.xlu0 %751
  %753 = vrot.lane.b32.xlu0 %v747, 64
  %v754 = vpop.permute.xlu0 %753
  %758 = vst.msk [vmem:[#allocation3 + $0x48] sm:$0x80] %vm628, %v750
  %759 = vst.msk [vmem:[#allocation3 + $0x70] sm:$0xff] %vm527, %v752
  %760 = vst.msk [vmem:[#allocation3 + $0x98] sm:$0x3f] %vm631, %v754
  %v761 = vld [vmem:[#allocation3] sm:$0xff]
  %v762 = vld [vmem:[#allocation3 + $0x8] sm:$0xff]
  %v763 = vld [vmem:[#allocation3 + $0x10] sm:$0xff]
  %v764 = vld [vmem:[#allocation3 + $0x18] sm:$0xff]
  %v765 = vld [vmem:[#allocation3 + $0x20] sm:$0xff]
  %v766 = vld [vmem:[#allocation3 + $0x28] sm:$0xff]
  %v767 = vld [vmem:[#allocation3 + $0x30] sm:$0xff]
  %v768 = vld [vmem:[#allocation3 + $0x38] sm:$0xff]
  %v769 = vld [vmem:[#allocation3 + $0x40] sm:$0xff]
  %v770 = vld [vmem:[#allocation3 + $0x48] sm:$0xff]
  %v771 = vld [vmem:[#allocation3 + $0x50] sm:$0xff]
  %v772 = vld [vmem:[#allocation3 + $0x58] sm:$0xff]
  %v773 = vld [vmem:[#allocation3 + $0x60] sm:$0xff]
  %v774 = vld [vmem:[#allocation3 + $0x68] sm:$0xff]
  %v775 = vld [vmem:[#allocation3 + $0x70] sm:$0xff]
  %v776 = vld [vmem:[#allocation3 + $0x78] sm:$0x3f]
  %v777 = vld [vmem:[#allocation3 + $0x80] sm:$0x3f]
  %v778 = vld [vmem:[#allocation3 + $0x88] sm:$0x3f]
  %v779 = vld [vmem:[#allocation3 + $0x90] sm:$0x3f]
  %v780 = vld [vmem:[#allocation3 + $0x98] sm:$0x3f]
  %v781 = vld [vmem:[%s8] sm:$0xff]
  %v782 = vld [vmem:[%s8 + $0x8] sm:$0xff]
  %v783 = vld [vmem:[%s8 + $0x10] sm:$0xff]
  %v784 = vld [vmem:[%s8 + $0x18] sm:$0xff]
  %v785 = vld [vmem:[%s8 + $0x20] sm:$0xff]
  %v786 = vld [vmem:[%s8 + $0x28] sm:$0xff]
  %v787 = vld [vmem:[%s8 + $0x30] sm:$0xff]
  %v788 = vld [vmem:[%s8 + $0x38] sm:$0xff]
  %v789 = vld [vmem:[%s8 + $0x40] sm:$0xff]
  %v790 = vld [vmem:[%s8 + $0x48] sm:$0xff]
  %v791 = vld [vmem:[%s8 + $0x50] sm:$0xff]
  %v792 = vld [vmem:[%s8 + $0x58] sm:$0xff]
  %v793 = vld [vmem:[%s8 + $0x60] sm:$0xff]
  %v794 = vld [vmem:[%s8 + $0x68] sm:$0xff]
  %v795 = vld [vmem:[%s8 + $0x70] sm:$0xff]
  %v796 = vld [vmem:[%s8 + $0x78] sm:$0xff]
  %v797 = vld [vmem:[%s8 + $0x80] sm:$0xff]
  %v798 = vld [vmem:[%s8 + $0x88] sm:$0xff]
  %v799 = vld [vmem:[%s8 + $0x90] sm:$0xff]
  %v800 = vld [vmem:[%s8 + $0x98] sm:$0xff]
  %v801 = vld [vmem:[%s8 + $0xa0] sm:$0xff]
  %v802 = vld [vmem:[%s8 + $0xa8] sm:$0xff]
  %v803 = vld [vmem:[%s8 + $0xb0] sm:$0xff]
  %v804 = vld [vmem:[%s8 + $0xb8] sm:$0xff]
  %v805 = vld [vmem:[%s8 + $0xc0] sm:$0xff]
  %v806 = vld [vmem:[%s8 + $0xc8] sm:$0xff]
  %v807 = vld [vmem:[%s8 + $0xd0] sm:$0xff]
  %v808 = vld [vmem:[%s8 + $0xd8] sm:$0xff]
  %v809 = vld [vmem:[%s8 + $0xe0] sm:$0xff]
  %v810 = vld [vmem:[%s8 + $0xe8] sm:$0xff]
  %v811 = vld [vmem:[%s8 + $0xf0] sm:$0xff]
  %v812 = vld [vmem:[%s8 + $0xf8] sm:$0xff]
  %v813 = vld [vmem:[%s8 + $0x100] sm:$0xff]
  %v814 = vld [vmem:[%s8 + $0x108] sm:$0xff]
  %v815 = vld [vmem:[%s8 + $0x110] sm:$0xff]
  %v816 = vld [vmem:[%s8 + $0x118] sm:$0xff]
  %v817 = vld [vmem:[%s8 + $0x120] sm:$0xff]
  %v818 = vld [vmem:[%s8 + $0x128] sm:$0xff]
  %v819 = vld [vmem:[%s8 + $0x130] sm:$0xff]
  %v820 = vld [vmem:[%s8 + $0x138] sm:$0xff]
  %v821 = vld [vmem:[%s8 + $0x140] sm:$0xff]
  %v822 = vld [vmem:[%s8 + $0x148] sm:$0xff]
  %v823 = vld [vmem:[%s8 + $0x150] sm:$0xff]
  %v824 = vld [vmem:[%s8 + $0x158] sm:$0xff]
  %v825 = vld [vmem:[%s8 + $0x160] sm:$0xff]
  %v826 = vld [vmem:[%s8 + $0x168] sm:$0xff]
  %v827 = vld [vmem:[%s8 + $0x170] sm:$0xff]
  %v828 = vld [vmem:[%s8 + $0x178] sm:$0xff]
  %v829 = vld [vmem:[%s8 + $0x180] sm:$0xff]
  %v830 = vld [vmem:[%s8 + $0x188] sm:$0xff]
  %v831 = vld [vmem:[%s8 + $0x190] sm:$0xff]
  %v832 = vld [vmem:[%s8 + $0x198] sm:$0xff]
  %v833 = vld [vmem:[%s8 + $0x1a0] sm:$0xff]
  %v834 = vld [vmem:[%s8 + $0x1a8] sm:$0xff]
  %v835 = vld [vmem:[%s8 + $0x1b0] sm:$0xff]
  %v836 = vld [vmem:[%s8 + $0x1b8] sm:$0xff]
  %v837 = vld [vmem:[%s8 + $0x1c0] sm:$0xff]
  %v838 = vld [vmem:[%s8 + $0x1c8] sm:$0xff]
  %v839 = vld [vmem:[%s8 + $0x1d0] sm:$0xff]
  %v840 = vld [vmem:[%s8 + $0x1d8] sm:$0xff]
  %v841 = vld [vmem:[%s8 + $0x1e0] sm:$0xff]
  %v842 = vld [vmem:[%s8 + $0x1e8] sm:$0xff]
  %v843 = vld [vmem:[%s8 + $0x1f0] sm:$0xff]
  %v844 = vld [vmem:[%s8 + $0x1f8] sm:$0xff]
  %v845 = vld [vmem:[%s8 + $0x200] sm:$0xff]
  %v846 = vld [vmem:[%s8 + $0x208] sm:$0xff]
  %v847 = vld [vmem:[%s8 + $0x210] sm:$0xff]
  %v848 = vld [vmem:[%s8 + $0x218] sm:$0xff]
  %v849 = vld [vmem:[%s8 + $0x220] sm:$0xff]
  %v850 = vld [vmem:[%s8 + $0x228] sm:$0xff]
  %v851 = vld [vmem:[%s8 + $0x230] sm:$0xff]
  %v852 = vld [vmem:[%s8 + $0x238] sm:$0xff]
  %v853 = vld [vmem:[%s8 + $0x240] sm:$0xff]
  %v854 = vld [vmem:[%s8 + $0x248] sm:$0xff]
  %v855 = vld [vmem:[%s8 + $0x250] sm:$0xff]
  %v856 = vld [vmem:[%s8 + $0x258] sm:$0xff]
  %v857 = vld [vmem:[%s8 + $0x260] sm:$0xff]
  %v858 = vld [vmem:[%s8 + $0x268] sm:$0xff]
  %v859 = vld [vmem:[%s8 + $0x270] sm:$0xff]
  %v860 = vld [vmem:[%s8 + $0x278] sm:$0xff]
  %v861 = vld [vmem:[%s9] sm:$0x1]
  %v863 = vlaneseq
  %v864 = vshrl.u32 %v863, 7
  %v865 = vsub.s32 0, %v864
  %v866 = vrot.slane %v861, %v865
  %868 = vmatprep.subr.mxu0 0.0
  %869 = vmatpush1.msra.mxu0 %v781
  %870 = vmatprep.subr.mxu0 0.0
  %871 = vmatpush1.msra.mxu0 %v782
  %872 = vmatprep.subr.mxu0 0.0
  %873 = vmatpush1.msra.mxu0 %v783
  %874 = vmatprep.subr.mxu0 0.0
  %875 = vmatpush1.msra.mxu0 %v784
  %876 = vmatprep.subr.mxu0 0.0
  %877 = vmatpush1.msra.mxu0 %v785
  %878 = vmatprep.subr.mxu0 0.0
  %879 = vmatpush1.msra.mxu0 %v786
  %880 = vmatprep.subr.mxu0 0.0
  %881 = vmatpush1.msra.mxu0 %v787
  %882 = vmatprep.subr.mxu0 0.0
  %883 = vmatpush1.msra.mxu0 %v788
  %884 = vmatprep.subr.mxu0 0.0
  %885 = vmatpush1.msra.mxu0 %v789
  %886 = vmatprep.subr.mxu0 0.0
  %887 = vmatpush1.msra.mxu0 %v790
  %888 = vmatprep.subr.mxu0 0.0
  %889 = vmatpush1.msra.mxu0 %v791
  %890 = vmatprep.subr.mxu0 0.0
  %891 = vmatpush1.msra.mxu0 %v792
  %892 = vmatprep.subr.mxu0 0.0
  %893 = vmatpush1.msra.mxu0 %v793
  %894 = vmatprep.subr.mxu0 0.0
  %895 = vmatpush1.msra.mxu0 %v794
  %896 = vmatprep.subr.mxu0 0.0
  %897 = vmatpush1.msra.mxu0 %v795
  %898 = vmatprep.subr.mxu0 0.0
  %899 = vmatpush1.msra.mxu0 %v796
  %900 = vmatprep.subr.mxu0 0.0
  %901 = vmatpush1.msra.mxu0 %v797
  %902 = vmatprep.subr.mxu0 0.0
  %903 = vmatpush1.msra.mxu0 %v798
  %904 = vmatprep.subr.mxu0 0.0
  %905 = vmatpush1.msra.mxu0 %v799
  %906 = vmatprep.subr.mxu0 0.0
  %907 = vmatpush1.msra.mxu0 %v800
  %908 = vmatprep.subr.mxu0 0.0
  %909 = vmatpush1.msra.mxu0 %v801
  %910 = vmatprep.subr.mxu0 0.0
  %911 = vmatpush1.msra.mxu0 %v802
  %912 = vmatprep.subr.mxu0 0.0
  %913 = vmatpush1.msra.mxu0 %v803
  %914 = vmatprep.subr.mxu0 0.0
  %915 = vmatpush1.msra.mxu0 %v804
  %916 = vmatprep.subr.mxu0 0.0
  %917 = vmatpush1.msra.mxu0 %v805
  %918 = vmatprep.subr.mxu0 0.0
  %919 = vmatpush1.msra.mxu0 %v806
  %920 = vmatprep.subr.mxu0 0.0
  %921 = vmatpush1.msra.mxu0 %v807
  %922 = vmatprep.subr.mxu0 0.0
  %923 = vmatpush1.msra.mxu0 %v808
  %924 = vmatprep.subr.mxu0 0.0
  %925 = vmatpush1.msra.mxu0 %v809
  %926 = vmatprep.subr.mxu0 0.0
  %927 = vmatpush1.msra.mxu0 %v810
  %928 = vmatprep.subr.mxu0 0.0
  %929 = vmatpush1.msra.mxu0 %v811
  %930 = vmatprep.subr.mxu0 0.0
  %931 = vmatpush1.msra.mxu0 %v812
  %932 = vmatprep.mubr.f32.mxu0 %v762
  %933 = vmatmul.mubr.f32.gmra.mrb[0].mxu0 %v761
  %v934 = vpop.f32.mrb[0].mxu0
  %v935 = vadd.f32 %v866, %v934
  %v936 = vpop.f32.mrb[0].mxu0
  %937 = vmatprep.mubr.f32.mxu0 %v767
  %938 = vmatmul.mubr.f32.gmra.mrb[0].mxu0 %v766
  %v939 = vpop.f32.mrb[0].mxu0
  %v940 = vadd.f32 %v866, %v939
  %v941 = vpop.f32.mrb[0].mxu0
  %942 = vmatprep.mubr.f32.mxu0 %v772
  %943 = vmatmul.mubr.f32.gmra.mrb[0].mxu0 %v771
  %v944 = vpop.f32.mrb[0].mxu0
  %v945 = vadd.f32 %v866, %v944
  %v946 = vpop.f32.mrb[0].mxu0
  %947 = vmatprep.mubr.f32.mxu0 %v777
  %948 = vmatmul.mubr.f32.gmra.mrb[0].mxu0 %v776
  %v949 = vpop.f32.mrb[0].mxu0
  %v950 = vadd.f32 %v866, %v949
  %v951 = vpop.f32.mrb[0].mxu0
  %952 = vdwg.mxu0
  %953 = vmatprep.subr.mxu0 0.0
  %954 = vmatpush1.msra.mxu0 %v813
  %955 = vmatprep.subr.mxu0 0.0
  %956 = vmatpush1.msra.mxu0 %v814
  %957 = vmatprep.subr.mxu0 0.0
  %958 = vmatpush1.msra.mxu0 %v815
  %959 = vmatprep.subr.mxu0 0.0
  %960 = vmatpush1.msra.mxu0 %v816
  %961 = vmatprep.subr.mxu0 0.0
  %962 = vmatpush1.msra.mxu0 %v817
  %963 = vmatprep.subr.mxu0 0.0
  %964 = vmatpush1.msra.mxu0 %v818
  %965 = vmatprep.subr.mxu0 0.0
  %966 = vmatpush1.msra.mxu0 %v819
  %967 = vmatprep.subr.mxu0 0.0
  %968 = vmatpush1.msra.mxu0 %v820
  %969 = vmatprep.subr.mxu0 0.0
  %970 = vmatpush1.msra.mxu0 %v821
  %971 = vmatprep.subr.mxu0 0.0
  %972 = vmatpush1.msra.mxu0 %v822
  %973 = vmatprep.subr.mxu0 0.0
  %974 = vmatpush1.msra.mxu0 %v823
  %975 = vmatprep.subr.mxu0 0.0
  %976 = vmatpush1.msra.mxu0 %v824
  %977 = vmatprep.subr.mxu0 0.0
  %978 = vmatpush1.msra.mxu0 %v825
  %979 = vmatprep.subr.mxu0 0.0
  %980 = vmatpush1.msra.mxu0 %v826
  %981 = vmatprep.subr.mxu0 0.0
  %982 = vmatpush1.msra.mxu0 %v827
  %983 = vmatprep.subr.mxu0 0.0
  %984 = vmatpush1.msra.mxu0 %v828
  %985 = vmatprep.subr.mxu0 0.0
  %986 = vmatpush1.msra.mxu0 %v829
  %987 = vmatprep.subr.mxu0 0.0
  %988 = vmatpush1.msra.mxu0 %v830
  %989 = vmatprep.subr.mxu0 0.0
  %990 = vmatpush1.msra.mxu0 %v831
  %991 = vmatprep.subr.mxu0 0.0
  %992 = vmatpush1.msra.mxu0 %v832
  %993 = vmatprep.subr.mxu0 0.0
  %994 = vmatpush1.msra.mxu0 %v833
  %995 = vmatprep.subr.mxu0 0.0
  %996 = vmatpush1.msra.mxu0 %v834
  %997 = vmatprep.subr.mxu0 0.0
  %998 = vmatpush1.msra.mxu0 %v835
  %999 = vmatprep.subr.mxu0 0.0
  %1000 = vmatpush1.msra.mxu0 %v836
  %1001 = vmatprep.subr.mxu0 0.0
  %1002 = vmatpush1.msra.mxu0 %v837
  %1003 = vmatprep.subr.mxu0 0.0
  %1004 = vmatpush1.msra.mxu0 %v838
  %1005 = vmatprep.subr.mxu0 0.0
  %1006 = vmatpush1.msra.mxu0 %v839
  %1007 = vmatprep.subr.mxu0 0.0
  %1008 = vmatpush1.msra.mxu0 %v840
  %1009 = vmatprep.subr.mxu0 0.0
  %1010 = vmatpush1.msra.mxu0 %v841
  %1011 = vmatprep.subr.mxu0 0.0
  %1012 = vmatpush1.msra.mxu0 %v842
  %1013 = vmatprep.subr.mxu0 0.0
  %1014 = vmatpush1.msra.mxu0 %v843
  %1015 = vmatprep.subr.mxu0 0.0
  %1016 = vmatpush1.msra.mxu0 %v844
  %1017 = vmatprep.mubr.f32.mxu0 %v764
  %1018 = vmatmul.mubr.f32.gmra.mrb[0].mxu0 %v763
  %v1019 = vpop.f32.mrb[0].mxu0
  %v1020 = vadd.f32 %v935, %v1019
  %v1021 = vpop.f32.mrb[0].mxu0
  %1022 = vmatprep.mubr.f32.mxu0 %v769
  %1023 = vmatmul.mubr.f32.gmra.mrb[0].mxu0 %v768
  %v1024 = vpop.f32.mrb[0].mxu0
  %v1025 = vadd.f32 %v940, %v1024
  %v1026 = vpop.f32.mrb[0].mxu0
  %1027 = vmatprep.mubr.f32.mxu0 %v774
  %1028 = vmatmul.mubr.f32.gmra.mrb[0].mxu0 %v773
  %v1029 = vpop.f32.mrb[0].mxu0
  %v1030 = vadd.f32 %v945, %v1029
  %v1031 = vpop.f32.mrb[0].mxu0
  %1032 = vmatprep.mubr.f32.mxu0 %v779
  %1033 = vmatmul.mubr.f32.gmra.mrb[0].mxu0 %v778
  %v1034 = vpop.f32.mrb[0].mxu0
  %v1035 = vadd.f32 %v950, %v1034
  %v1036 = vpop.f32.mrb[0].mxu0
  %1037 = vdwg.mxu0
  %1038 = vmatprep.subr.mxu0 0.0
  %1039 = vmatpush1.msra.mxu0 %v845
  %1040 = vmatprep.subr.mxu0 0.0
  %1041 = vmatpush1.msra.mxu0 %v846
  %1042 = vmatprep.subr.mxu0 0.0
  %1043 = vmatpush1.msra.mxu0 %v847
  %1044 = vmatprep.subr.mxu0 0.0
  %1045 = vmatpush1.msra.mxu0 %v848
  %1046 = vmatprep.subr.mxu0 0.0
  %1047 = vmatpush1.msra.mxu0 %v849
  %1048 = vmatprep.subr.mxu0 0.0
  %1049 = vmatpush1.msra.mxu0 %v850
  %1050 = vmatprep.subr.mxu0 0.0
  %1051 = vmatpush1.msra.mxu0 %v851
  %1052 = vmatprep.subr.mxu0 0.0
  %1053 = vmatpush1.msra.mxu0 %v852
  %1054 = vmatprep.subr.mxu0 0.0
  %1055 = vmatpush1.msra.mxu0 %v853
  %1056 = vmatprep.subr.mxu0 0.0
  %1057 = vmatpush1.msra.mxu0 %v854
  %1058 = vmatprep.subr.mxu0 0.0
  %1059 = vmatpush1.msra.mxu0 %v855
  %1060 = vmatprep.subr.mxu0 0.0
  %1061 = vmatpush1.msra.mxu0 %v856
  %1062 = vmatprep.subr.mxu0 0.0
  %1063 = vmatpush1.msra.mxu0 %v857
  %1064 = vmatprep.subr.mxu0 0.0
  %1065 = vmatpush1.msra.mxu0 %v858
  %1066 = vmatprep.subr.mxu0 0.0
  %1067 = vmatpush1.msra.mxu0 %v859
  %1068 = vmatprep.subr.mxu0 0.0
  %1069 = vmatpush1.msra.mxu0 %v860
  %1070 = vmatprep.subr.mxu0 0.0
  %1071 = vmatpush1.msra.mxu0 0.0
  %1072 = vmatprep.subr.mxu0 0.0
  %1073 = vmatpush1.msra.mxu0 0.0
  %1074 = vmatprep.subr.mxu0 0.0
  %1075 = vmatpush1.msra.mxu0 0.0
  %1076 = vmatprep.subr.mxu0 0.0
  %1077 = vmatpush1.msra.mxu0 0.0
  %1078 = vmatprep.subr.mxu0 0.0
  %1079 = vmatpush1.msra.mxu0 0.0
  %1080 = vmatprep.subr.mxu0 0.0
  %1081 = vmatpush1.msra.mxu0 0.0
  %1082 = vmatprep.subr.mxu0 0.0
  %1083 = vmatpush1.msra.mxu0 0.0
  %1084 = vmatprep.subr.mxu0 0.0
  %1085 = vmatpush1.msra.mxu0 0.0
  %1086 = vmatprep.subr.mxu0 0.0
  %1087 = vmatpush1.msra.mxu0 0.0
  %1088 = vmatprep.subr.mxu0 0.0
  %1089 = vmatpush1.msra.mxu0 0.0
  %1090 = vmatprep.subr.mxu0 0.0
  %1091 = vmatpush1.msra.mxu0 0.0
  %1092 = vmatprep.subr.mxu0 0.0
  %1093 = vmatpush1.msra.mxu0 0.0
  %1094 = vmatprep.subr.mxu0 0.0
  %1095 = vmatpush1.msra.mxu0 0.0
  %1096 = vmatprep.subr.mxu0 0.0
  %1097 = vmatpush1.msra.mxu0 0.0
  %1098 = vmatprep.subr.mxu0 0.0
  %1099 = vmatpush1.msra.mxu0 0.0
  %1100 = vmatprep.subr.mxu0 0.0
  %1101 = vmatpush1.msra.mxu0 0.0
  %1102 = vmatprep.mubr.f32.mxu0 0.0
  %1103 = vmatmul.mubr.f32.gmra.mrb[0].mxu0 %v765
  %v1104 = vpop.f32.mrb[0].mxu0
  %v1105 = vadd.f32 %v1020, %v1104
  %v1106 = vpop.f32.mrb[0].mxu0
  %1107 = vmatprep.mubr.f32.mxu0 0.0
  %1108 = vmatmul.mubr.f32.gmra.mrb[0].mxu0 %v770
  %v1109 = vpop.f32.mrb[0].mxu0
  %v1110 = vadd.f32 %v1025, %v1109
  %v1111 = vpop.f32.mrb[0].mxu0
  %1112 = vmatprep.mubr.f32.mxu0 0.0
  %1113 = vmatmul.mubr.f32.gmra.mrb[0].mxu0 %v775
  %v1114 = vpop.f32.mrb[0].mxu0
  %v1115 = vadd.f32 %v1030, %v1114
  %v1116 = vpop.f32.mrb[0].mxu0
  %1117 = vmatprep.mubr.f32.mxu0 0.0
  %1118 = vmatmul.mubr.f32.gmra.mrb[0].mxu0 %v780
  %v1119 = vpop.f32.mrb[0].mxu0
  %v1120 = vadd.f32 %v1035, %v1119
  %v1121 = vpop.f32.mrb[0].mxu0
  %1122 = vdwg.mxu0
  %v1123 = vmax.f32 %v1105, 0.0
  %v1124 = vmax.f32 %v1110, 0.0
  %v1125 = vmax.f32 %v1115, 0.0
  %v1126 = vmax.f32 %v1120, 0.0
  %vm1127 = vcmask 259072
  %1128 = vst.msk [vmem:[#allocation4] sm:$0x3f] %vm1127, %v1123
  %v1130 = vrot.slane %v1123, 1
  %1131 = vrot.lane.b32.xlu0 %v1130, 32
  %v1132 = vpop.permute.xlu0 %1131
  %vm1134 = vcmask 521472
  %1135 = vst.msk [vmem:[#allocation4] sm:$0x3f] %vm1134, %v1132
  %v1136 = vrot.slane %v1123, 2
  %1137 = vrot.lane.b32.xlu0 %v1136, 64
  %v1138 = vpop.permute.xlu0 %1137
  %vm1140 = vcmask 783872
  %1141 = vst.msk [vmem:[#allocation4] sm:$0x3f] %vm1140, %v1138
  %vm1143 = vcmask 1044480
  %v1144 = vrot.slane %v1123, 3
  %v1145 = vrot.slane %v1124, 3
  %v1146 = vsel %vm1143, %v1144, %v1145
  %1147 = vrot.lane.b32.xlu0 %v1146, 96
  %v1148 = vpop.permute.xlu0 %1147
  %vm1150 = vcmask 1046272
  %1151 = vst.msk [vmem:[#allocation4] sm:$0x3f] %vm1150, %v1148
  %v1152 = vrot.slane %v1123, 4
  %v1153 = vrot.slane %v1124, 4
  %v1154 = vsel %vm170, %v1152, %v1153
  %1156 = vst.msk [vmem:[#allocation4 + $0x8] sm:$0x3f] %vm1127, %v1154
  %vm1157 = vcmask 1042432
  %v1158 = vrot.slane %v1123, 5
  %v1159 = vrot.slane %v1124, 5
  %v1160 = vsel %vm1157, %v1158, %v1159
  %1161 = vrot.lane.b32.xlu0 %v1160, 32
  %v1162 = vpop.permute.xlu0 %1161
  %1164 = vst.msk [vmem:[#allocation4 + $0x8] sm:$0x3f] %vm1134, %v1162
  %vm1165 = vcmask 1041408
  %v1166 = vrot.slane %v1123, 6
  %v1167 = vrot.slane %v1124, 6
  %v1168 = vsel %vm1165, %v1166, %v1167
  %1169 = vrot.lane.b32.xlu0 %v1168, 64
  %v1170 = vpop.permute.xlu0 %1169
  %1172 = vst.msk [vmem:[#allocation4 + $0x8] sm:$0x3f] %vm1140, %v1170
  %vm1173 = vcmask 1040384
  %v1174 = vrot.slane %v1123, 7
  %v1175 = vrot.slane %v1124, 7
  %v1176 = vsel %vm1173, %v1174, %v1175
  %1177 = vrot.lane.b32.xlu0 %v1176, 96
  %v1178 = vpop.permute.xlu0 %1177
  %1180 = vst.msk [vmem:[#allocation4 + $0x8] sm:$0x3f] %vm1150, %v1178
  %1181 = vst.msk [vmem:[#allocation4 + $0x10] sm:$0x3f] %vm1127, %v1124
  %v1182 = vrot.slane %v1124, 1
  %1183 = vrot.lane.b32.xlu0 %v1182, 32
  %v1184 = vpop.permute.xlu0 %1183
  %1186 = vst.msk [vmem:[#allocation4 + $0x10] sm:$0x3f] %vm1134, %v1184
  %v1188 = vrot.slane %v1125, 1
  %v1189 = vsel %vm600, %v1182, %v1188
  %vm1192 = vcmask 261126
  %1193 = vst.msk [vmem:[#allocation4] sm:$0xc0] %vm1192, %v1189
  %vm1194 = vcmask 257024
  %1195 = vst.msk [vmem:[#allocation4 + $0x18] sm:$0xf] %vm1194, %v1188
  %v1196 = vrot.slane %v1125, 2
  %1197 = vrot.lane.b32.xlu0 %v1196, 32
  %v1198 = vpop.permute.xlu0 %1197
  %vm1200 = vcmask 523526
  %1201 = vst.msk [vmem:[#allocation4] sm:$0xc0] %vm1200, %v1198
  %vm1202 = vcmask 519424
  %1203 = vst.msk [vmem:[#allocation4 + $0x18] sm:$0xf] %vm1202, %v1198
  %v1204 = vrot.slane %v1125, 3
  %1205 = vrot.lane.b32.xlu0 %v1204, 64
  %v1206 = vpop.permute.xlu0 %1205
  %vm1208 = vcmask 785926
  %1209 = vst.msk [vmem:[#allocation4] sm:$0xc0] %vm1208, %v1206
  %vm1210 = vcmask 781824
  %1211 = vst.msk [vmem:[#allocation4 + $0x18] sm:$0xf] %vm1210, %v1206
  %v1212 = vrot.slane %v1125, 4
  %1213 = vrot.lane.b32.xlu0 %v1212, 96
  %v1214 = vpop.permute.xlu0 %1213
  %vm1216 = vcmask 1048326
  %1217 = vst.msk [vmem:[#allocation4] sm:$0xc0] %vm1216, %v1214
  %vm1218 = vcmask 1044224
  %1219 = vst.msk [vmem:[#allocation4 + $0x18] sm:$0xf] %vm1218, %v1214
  %v1221 = vrot.slane %v1125, 5
  %v1222 = vrot.slane %v1126, 5
  %v1223 = vsel %vm1157, %v1221, %v1222
  %1226 = vst.msk [vmem:[#allocation4 + $0x8] sm:$0xc0] %vm1192, %v1221
  %1227 = vst.msk [vmem:[#allocation4 + $0x20] sm:$0xf] %vm1194, %v1223
  %v1228 = vrot.slane %v1125, 6
  %v1229 = vrot.slane %v1126, 6
  %v1230 = vsel %vm1165, %v1228, %v1229
  %1231 = vrot.lane.b32.xlu0 %v1228, 32
  %v1232 = vpop.permute.xlu0 %1231
  %1233 = vrot.lane.b32.xlu0 %v1230, 32
  %v1234 = vpop.permute.xlu0 %1233
  %1237 = vst.msk [vmem:[#allocation4 + $0x8] sm:$0xc0] %vm1200, %v1232
  %1238 = vst.msk [vmem:[#allocation4 + $0x20] sm:$0xf] %vm1202, %v1234
  %v1239 = vrot.slane %v1125, 7
  %v1240 = vrot.slane %v1126, 7
  %v1241 = vsel %vm1173, %v1239, %v1240
  %1242 = vrot.lane.b32.xlu0 %v1239, 64
  %v1243 = vpop.permute.xlu0 %1242
  %1244 = vrot.lane.b32.xlu0 %v1241, 64
  %v1245 = vpop.permute.xlu0 %1244
  %1248 = vst.msk [vmem:[#allocation4 + $0x8] sm:$0xc0] %vm1208, %v1243
  %1249 = vst.msk [vmem:[#allocation4 + $0x20] sm:$0xf] %vm1210, %v1245
  %1250 = vrot.lane.b32.xlu0 %v1125, 96
  %v1251 = vpop.permute.xlu0 %1250
  %1252 = vrot.lane.b32.xlu0 %v1126, 96
  %v1253 = vpop.permute.xlu0 %1252
  %1256 = vst.msk [vmem:[#allocation4 + $0x8] sm:$0xc0] %vm1216, %v1251
  %1257 = vst.msk [vmem:[#allocation4 + $0x20] sm:$0xf] %vm1218, %v1253
  %v1258 = vrot.slane %v1126, 1
  %v1259 = vsel %vm600, %v1188, %v1258
  %1262 = vst.msk [vmem:[#allocation4 + $0x10] sm:$0xc0] %vm1192, %v1259
  %1263 = vst.msk [vmem:[#allocation4 + $0x28] sm:$0xf] %vm1194, %v1258
  %v1264 = vrot.slane %v1126, 2
  %1265 = vrot.lane.b32.xlu0 %v1264, 32
  %v1266 = vpop.permute.xlu0 %1265
  %1268 = vst.msk [vmem:[#allocation4 + $0x10] sm:$0xc0] %vm1200, %v1266
  %1269 = vst.msk [vmem:[#allocation4 + $0x28] sm:$0xf] %vm1202, %v1266
  %v1270 = vld [vmem:[#allocation4] sm:$0xff]
  %v1271 = vld [vmem:[#allocation4 + $0x8] sm:$0xff]
  %v1272 = vld [vmem:[#allocation4 + $0x10] sm:$0xff]
  %v1273 = vld [vmem:[#allocation4 + $0x18] sm:$0xf]
  %v1274 = vld [vmem:[#allocation4 + $0x20] sm:$0xf]
  %v1275 = vld [vmem:[#allocation4 + $0x28] sm:$0xf]
  %v1276 = vld [vmem:[%s10] sm:$0xff]
  %v1277 = vld [vmem:[%s10 + $0x8] sm:$0xff]
  %v1278 = vld [vmem:[%s10 + $0x10] sm:$0xff]
  %v1279 = vld [vmem:[%s10 + $0x18] sm:$0xff]
  %v1280 = vld [vmem:[%s10 + $0x20] sm:$0xff]
  %v1281 = vld [vmem:[%s10 + $0x28] sm:$0xff]
  %v1282 = vld [vmem:[%s10 + $0x30] sm:$0xff]
  %v1283 = vld [vmem:[%s10 + $0x38] sm:$0xff]
  %v1284 = vld [vmem:[%s10 + $0x40] sm:$0xff]
  %v1285 = vld [vmem:[%s10 + $0x48] sm:$0xff]
  %v1286 = vld [vmem:[%s10 + $0x50] sm:$0xff]
  %v1287 = vld [vmem:[%s10 + $0x58] sm:$0xff]
  %v1288 = vld [vmem:[%s10 + $0x60] sm:$0xff]
  %v1289 = vld [vmem:[%s10 + $0x68] sm:$0xff]
  %v1290 = vld [vmem:[%s10 + $0x70] sm:$0xff]
  %v1291 = vld [vmem:[%s10 + $0x78] sm:$0xff]
  %v1292 = vld [vmem:[%s10 + $0x80] sm:$0xff]
  %v1293 = vld [vmem:[%s10 + $0x88] sm:$0xff]
  %v1294 = vld [vmem:[%s10 + $0x90] sm:$0xff]
  %v1295 = vld [vmem:[%s10 + $0x98] sm:$0xff]
  %v1296 = vld [vmem:[%s10 + $0xa0] sm:$0xff]
  %v1297 = vld [vmem:[%s10 + $0xa8] sm:$0xff]
  %v1298 = vld [vmem:[%s10 + $0xb0] sm:$0xff]
  %v1299 = vld [vmem:[%s10 + $0xb8] sm:$0xff]
  %v1300 = vld [vmem:[%s10 + $0xc0] sm:$0xff]
  %v1301 = vld [vmem:[%s10 + $0xc8] sm:$0xff]
  %v1302 = vld [vmem:[%s10 + $0xd0] sm:$0xff]
  %v1303 = vld [vmem:[%s10 + $0xd8] sm:$0xff]
  %v1304 = vld [vmem:[%s10 + $0xe0] sm:$0xff]
  %v1305 = vld [vmem:[%s10 + $0xe8] sm:$0xff]
  %v1306 = vld [vmem:[%s10 + $0xf0] sm:$0xff]
  %v1307 = vld [vmem:[%s10 + $0xf8] sm:$0xff]
  %v1308 = vld [vmem:[%s10 + $0x100] sm:$0xff]
  %v1309 = vld [vmem:[%s10 + $0x108] sm:$0xff]
  %v1310 = vld [vmem:[%s10 + $0x110] sm:$0xff]
  %v1311 = vld [vmem:[%s10 + $0x118] sm:$0xff]
  %v1312 = vld [vmem:[%s10 + $0x120] sm:$0xff]
  %v1313 = vld [vmem:[%s10 + $0x128] sm:$0xff]
  %v1314 = vld [vmem:[%s10 + $0x130] sm:$0xff]
  %v1315 = vld [vmem:[%s10 + $0x138] sm:$0xff]
  %v1316 = vld [vmem:[%s11] sm:$0x1]
  %v1318 = vlaneseq
  %v1319 = vshrl.u32 %v1318, 7
  %v1320 = vsub.s32 0, %v1319
  %v1321 = vrot.slane %v1316, %v1320
  %v1324 = vsel %vm501, %v1272, 0
  %v1327 = vsel %vm501, %v1275, 0
  %1329 = vmatprep.subr.mxu0 0.0
  %1330 = vmatpush1.msra.mxu0 %v1276
  %1331 = vmatprep.subr.mxu0 0.0
  %1332 = vmatpush1.msra.mxu0 %v1277
  %1333 = vmatprep.subr.mxu0 0.0
  %1334 = vmatpush1.msra.mxu0 %v1278
  %1335 = vmatprep.subr.mxu0 0.0
  %1336 = vmatpush1.msra.mxu0 %v1279
  %1337 = vmatprep.subr.mxu0 0.0
  %1338 = vmatpush1.msra.mxu0 %v1280
  %1339 = vmatprep.subr.mxu0 0.0
  %1340 = vmatpush1.msra.mxu0 %v1281
  %1341 = vmatprep.subr.mxu0 0.0
  %1342 = vmatpush1.msra.mxu0 %v1282
  %1343 = vmatprep.subr.mxu0 0.0
  %1344 = vmatpush1.msra.mxu0 %v1283
  %1345 = vmatprep.subr.mxu0 0.0
  %1346 = vmatpush1.msra.mxu0 %v1284
  %1347 = vmatprep.subr.mxu0 0.0
  %1348 = vmatpush1.msra.mxu0 %v1285
  %1349 = vmatprep.subr.mxu0 0.0
  %1350 = vmatpush1.msra.mxu0 %v1286
  %1351 = vmatprep.subr.mxu0 0.0
  %1352 = vmatpush1.msra.mxu0 %v1287
  %1353 = vmatprep.subr.mxu0 0.0
  %1354 = vmatpush1.msra.mxu0 %v1288
  %1355 = vmatprep.subr.mxu0 0.0
  %1356 = vmatpush1.msra.mxu0 %v1289
  %1357 = vmatprep.subr.mxu0 0.0
  %1358 = vmatpush1.msra.mxu0 %v1290
  %1359 = vmatprep.subr.mxu0 0.0
  %1360 = vmatpush1.msra.mxu0 %v1291
  %1361 = vmatprep.subr.mxu0 0.0
  %1362 = vmatpush1.msra.mxu0 %v1292
  %1363 = vmatprep.subr.mxu0 0.0
  %1364 = vmatpush1.msra.mxu0 %v1293
  %1365 = vmatprep.subr.mxu0 0.0
  %1366 = vmatpush1.msra.mxu0 %v1294
  %1367 = vmatprep.subr.mxu0 0.0
  %1368 = vmatpush1.msra.mxu0 %v1295
  %1369 = vmatprep.subr.mxu0 0.0
  %1370 = vmatpush1.msra.mxu0 %v1296
  %1371 = vmatprep.subr.mxu0 0.0
  %1372 = vmatpush1.msra.mxu0 %v1297
  %1373 = vmatprep.subr.mxu0 0.0
  %1374 = vmatpush1.msra.mxu0 %v1298
  %1375 = vmatprep.subr.mxu0 0.0
  %1376 = vmatpush1.msra.mxu0 %v1299
  %1377 = vmatprep.subr.mxu0 0.0
  %1378 = vmatpush1.msra.mxu0 %v1300
  %1379 = vmatprep.subr.mxu0 0.0
  %1380 = vmatpush1.msra.mxu0 %v1301
  %1381 = vmatprep.subr.mxu0 0.0
  %1382 = vmatpush1.msra.mxu0 %v1302
  %1383 = vmatprep.subr.mxu0 0.0
  %1384 = vmatpush1.msra.mxu0 %v1303
  %1385 = vmatprep.subr.mxu0 0.0
  %1386 = vmatpush1.msra.mxu0 %v1304
  %1387 = vmatprep.subr.mxu0 0.0
  %1388 = vmatpush1.msra.mxu0 %v1305
  %1389 = vmatprep.subr.mxu0 0.0
  %1390 = vmatpush1.msra.mxu0 %v1306
  %1391 = vmatprep.subr.mxu0 0.0
  %1392 = vmatpush1.msra.mxu0 %v1307
  %1393 = vmatprep.mubr.f32.mxu0 %v1271
  %1394 = vmatmul.mubr.f32.gmra.mrb[0].mxu0 %v1270
  %v1395 = vpop.f32.mrb[0].mxu0
  %v1396 = vadd.f32 %v1321, %v1395
  %v1397 = vpop.f32.mrb[0].mxu0
  %1398 = vmatprep.mubr.f32.mxu0 %v1274
  %1399 = vmatmul.mubr.f32.gmra.mrb[0].mxu0 %v1273
  %v1400 = vpop.f32.mrb[0].mxu0
  %v1401 = vadd.f32 %v1321, %v1400
  %v1402 = vpop.f32.mrb[0].mxu0
  %1403 = vdwg.mxu0
  %1404 = vmatprep.subr.mxu0 0.0
  %1405 = vmatpush1.msra.mxu0 %v1308
  %1406 = vmatprep.subr.mxu0 0.0
  %1407 = vmatpush1.msra.mxu0 %v1309
  %1408 = vmatprep.subr.mxu0 0.0
  %1409 = vmatpush1.msra.mxu0 %v1310
  %1410 = vmatprep.subr.mxu0 0.0
  %1411 = vmatpush1.msra.mxu0 %v1311
  %1412 = vmatprep.subr.mxu0 0.0
  %1413 = vmatpush1.msra.mxu0 %v1312
  %1414 = vmatprep.subr.mxu0 0.0
  %1415 = vmatpush1.msra.mxu0 %v1313
  %1416 = vmatprep.subr.mxu0 0.0
  %1417 = vmatpush1.msra.mxu0 %v1314
  %1418 = vmatprep.subr.mxu0 0.0
  %1419 = vmatpush1.msra.mxu0 %v1315
  %1420 = vmatprep.subr.mxu0 0.0
  %1421 = vmatpush1.msra.mxu0 0.0
  %1422 = vmatprep.subr.mxu0 0.0
  %1423 = vmatpush1.msra.mxu0 0.0
  %1424 = vmatprep.subr.mxu0 0.0
  %1425 = vmatpush1.msra.mxu0 0.0
  %1426 = vmatprep.subr.mxu0 0.0
  %1427 = vmatpush1.msra.mxu0 0.0
  %1428 = vmatprep.subr.mxu0 0.0
  %1429 = vmatpush1.msra.mxu0 0.0
  %1430 = vmatprep.subr.mxu0 0.0
  %1431 = vmatpush1.msra.mxu0 0.0
  %1432 = vmatprep.subr.mxu0 0.0
  %1433 = vmatpush1.msra.mxu0 0.0
  %1434 = vmatprep.subr.mxu0 0.0
  %1435 = vmatpush1.msra.mxu0 0.0
  %1436 = vmatprep.subr.mxu0 0.0
  %1437 = vmatpush1.msra.mxu0 0.0
  %1438 = vmatprep.subr.mxu0 0.0
  %1439 = vmatpush1.msra.mxu0 0.0
  %1440 = vmatprep.subr.mxu0 0.0
  %1441 = vmatpush1.msra.mxu0 0.0
  %1442 = vmatprep.subr.mxu0 0.0
  %1443 = vmatpush1.msra.mxu0 0.0
  %1444 = vmatprep.subr.mxu0 0.0
  %1445 = vmatpush1.msra.mxu0 0.0
  %1446 = vmatprep.subr.mxu0 0.0
  %1447 = vmatpush1.msra.mxu0 0.0
  %1448 = vmatprep.subr.mxu0 0.0
  %1449 = vmatpush1.msra.mxu0 0.0
  %1450 = vmatprep.subr.mxu0 0.0
  %1451 = vmatpush1.msra.mxu0 0.0
  %1452 = vmatprep.subr.mxu0 0.0
  %1453 = vmatpush1.msra.mxu0 0.0
  %1454 = vmatprep.subr.mxu0 0.0
  %1455 = vmatpush1.msra.mxu0 0.0
  %1456 = vmatprep.subr.mxu0 0.0
  %1457 = vmatpush1.msra.mxu0 0.0
  %1458 = vmatprep.subr.mxu0 0.0
  %1459 = vmatpush1.msra.mxu0 0.0
  %1460 = vmatprep.subr.mxu0 0.0
  %1461 = vmatpush1.msra.mxu0 0.0
  %1462 = vmatprep.subr.mxu0 0.0
  %1463 = vmatpush1.msra.mxu0 0.0
  %1464 = vmatprep.subr.mxu0 0.0
  %1465 = vmatpush1.msra.mxu0 0.0
  %1466 = vmatprep.subr.mxu0 0.0
  %1467 = vmatpush1.msra.mxu0 0.0
  %1468 = vmatprep.mubr.f32.mxu0 0.0
  %1469 = vmatmul.mubr.f32.gmra.mrb[0].mxu0 %v1324
  %v1470 = vpop.f32.mrb[0].mxu0
  %v1471 = vadd.f32 %v1396, %v1470
  %v1472 = vpop.f32.mrb[0].mxu0
  %1473 = vmatprep.mubr.f32.mxu0 0.0
  %1474 = vmatmul.mubr.f32.gmra.mrb[0].mxu0 %v1327
  %v1475 = vpop.f32.mrb[0].mxu0
  %v1476 = vadd.f32 %v1401, %v1475
  %v1477 = vpop.f32.mrb[0].mxu0
  %1478 = vdwg.mxu0
  %v1479 = vmax.f32 %v1471, 0.0
  %v1480 = vmax.f32 %v1476, 0.0
  %vm1481 = vcmask 122880
  %1482 = vst.msk [vmem:[#allocation5] sm:$0x1] %vm1481, %v1479
  %1484 = vrot.lane.b32.xlu0 %v1479, 16
  %v1485 = vpop.permute.xlu0 %1484
  %vm1487 = vcmask 255105
  %1488 = vst.msk [vmem:[#allocation5 - $0x1] sm:$0x2] %vm1487, %v1485
  %1489 = vrot.lane.b32.xlu0 %v1479, 32
  %v1490 = vpop.permute.xlu0 %1489
  %vm1492 = vcmask 387330
  %1493 = vst.msk [vmem:[#allocation5 - $0x2] sm:$0x4] %vm1492, %v1490
  %1494 = vrot.lane.b32.xlu0 %v1479, 48
  %v1495 = vpop.permute.xlu0 %1494
  %vm1497 = vcmask 519555
  %1498 = vst.msk [vmem:[#allocation5 - $0x3] sm:$0x8] %vm1497, %v1495
  %1499 = vrot.lane.b32.xlu0 %v1479, 64
  %v1500 = vpop.permute.xlu0 %1499
  %vm1502 = vcmask 651780
  %1503 = vst.msk [vmem:[#allocation5 - $0x4] sm:$0x10] %vm1502, %v1500
  %1504 = vrot.lane.b32.xlu0 %v1479, 80
  %v1505 = vpop.permute.xlu0 %1504
  %vm1507 = vcmask 784005
  %1508 = vst.msk [vmem:[#allocation5 - $0x5] sm:$0x20] %vm1507, %v1505
  %vm1509 = vcmask 129030
  %1510 = vst.msk [vmem:[#allocation5 - $0x5] sm:$0x40] %vm1509, %v1479
  %vm1511 = vcmask 261255
  %1512 = vst.msk [vmem:[#allocation5 - $0x6] sm:$0x80] %vm1511, %v1485
  %1514 = vrot.lane.b32.xlu0 %v1480, 32
  %v1515 = vpop.permute.xlu0 %1514
  %vm1517 = vcmask 385280
  %1518 = vst.msk [vmem:[#allocation5 + $0x1] sm:$0x1] %vm1517, %v1515
  %1519 = vrot.lane.b32.xlu0 %v1480, 48
  %v1520 = vpop.permute.xlu0 %1519
  %vm1522 = vcmask 517505
  %1523 = vst.msk [vmem:[#allocation5] sm:$0x2] %vm1522, %v1520
  %1524 = vrot.lane.b32.xlu0 %v1480, 64
  %v1525 = vpop.permute.xlu0 %1524
  %vm1527 = vcmask 649730
  %1528 = vst.msk [vmem:[#allocation5 - $0x1] sm:$0x4] %vm1527, %v1525
  %1529 = vrot.lane.b32.xlu0 %v1480, 80
  %v1530 = vpop.permute.xlu0 %1529
  %vm1532 = vcmask 781955
  %1533 = vst.msk [vmem:[#allocation5 - $0x2] sm:$0x8] %vm1532, %v1530
  %v1534 = vld [vmem:[%s12] sm:$0xff]
  %v1535 = vld [vmem:[%s12 + $0x8] sm:$0xff]
  %v1536 = vld [vmem:[%s12 + $0x10] sm:$0xff]
  %v1537 = vld [vmem:[%s12 + $0x18] sm:$0xff]
  %v1538 = vld [vmem:[%s12 + $0x20] sm:$0xff]
  %v1539 = vld [vmem:[%s12 + $0x28] sm:$0xff]
  %v1540 = vld [vmem:[%s12 + $0x30] sm:$0xff]
  %v1541 = vld [vmem:[%s12 + $0x38] sm:$0xff]
  %v1542 = vld [vmem:[#allocation5] sm:$0x3]
  %v1543 = vld [vmem:[%s13] sm:$0xff]
  %v1544 = vld [vmem:[%s13 + $0x8] sm:$0xff]
  %v1545 = vld [vmem:[%s13 + $0x10] sm:$0xff]
  %v1546 = vld [vmem:[%s13 + $0x18] sm:$0xff]
  %v1547 = vld [vmem:[%s13 + $0x20] sm:$0xff]
  %v1548 = vld [vmem:[%s13 + $0x28] sm:$0xff]
  %v1549 = vld [vmem:[%s13 + $0x30] sm:$0xff]
  %v1550 = vld [vmem:[%s13 + $0x38] sm:$0xff]
  %v1551 = vld [vmem:[%s13 + $0x40] sm:$0xff]
  %v1552 = vld [vmem:[%s13 + $0x48] sm:$0xff]
  %v1553 = vld [vmem:[%s13 + $0x50] sm:$0xff]
  %v1554 = vld [vmem:[%s13 + $0x58] sm:$0xff]
  %v1555 = vld [vmem:[%s13 + $0x60] sm:$0xff]
  %v1556 = vld [vmem:[%s13 + $0x68] sm:$0xff]
  %v1557 = vld [vmem:[%s13 + $0x70] sm:$0xff]
  %v1558 = vld [vmem:[%s13 + $0x78] sm:$0xff]
  %v1559 = vld [vmem:[%s13 + $0x80] sm:$0xff]
  %v1560 = vld [vmem:[%s13 + $0x88] sm:$0xff]
  %v1561 = vld [vmem:[%s13 + $0x90] sm:$0xff]
  %v1562 = vld [vmem:[%s13 + $0x98] sm:$0xff]
  %v1563 = vld [vmem:[%s13 + $0xa0] sm:$0xff]
  %v1564 = vld [vmem:[%s13 + $0xa8] sm:$0xff]
  %v1565 = vld [vmem:[%s13 + $0xb0] sm:$0xff]
  %v1566 = vld [vmem:[%s13 + $0xb8] sm:$0xff]
  %vm1567 = vcmask 785408
  %v1569 = vsel %vm1567, %v1542, 0
  %1571 = vmatprep.subr.mxu0 %v1544
  %1572 = vmatpush1.msra.mxu0 %v1543
  %1573 = vmatprep.subr.mxu0 %v1546
  %1574 = vmatpush1.msra.mxu0 %v1545
  %1575 = vmatprep.subr.mxu0 %v1548
  %1576 = vmatpush1.msra.mxu0 %v1547
  %1577 = vmatprep.subr.mxu0 %v1550
  %1578 = vmatpush1.msra.mxu0 %v1549
  %1579 = vmatprep.subr.mxu0 %v1552
  %1580 = vmatpush1.msra.mxu0 %v1551
  %1581 = vmatprep.subr.mxu0 %v1554
  %1582 = vmatpush1.msra.mxu0 %v1553
  %1583 = vmatprep.subr.mxu0 %v1556
  %1584 = vmatpush1.msra.mxu0 %v1555
  %1585 = vmatprep.subr.mxu0 %v1558
  %1586 = vmatpush1.msra.mxu0 %v1557
  %1587 = vmatprep.subr.mxu0 %v1560
  %1588 = vmatpush1.msra.mxu0 %v1559
  %1589 = vmatprep.subr.mxu0 %v1562
  %1590 = vmatpush1.msra.mxu0 %v1561
  %1591 = vmatprep.subr.mxu0 %v1564
  %1592 = vmatpush1.msra.mxu0 %v1563
  %1593 = vmatprep.subr.mxu0 %v1566
  %1594 = vmatpush1.msra.mxu0 %v1565
  %1595 = vmatprep.subr.mxu0 0.0
  %1596 = vmatpush1.msra.mxu0 0.0
  %1597 = vmatprep.subr.mxu0 0.0
  %1598 = vmatpush1.msra.mxu0 0.0
  %1599 = vmatprep.subr.mxu0 0.0
  %1600 = vmatpush1.msra.mxu0 0.0
  %1601 = vmatprep.subr.mxu0 0.0
  %1602 = vmatpush1.msra.mxu0 0.0
  %1603 = vmatprep.subr.mxu0 0.0
  %1604 = vmatpush1.msra.mxu0 0.0
  %1605 = vmatprep.subr.mxu0 0.0
  %1606 = vmatpush1.msra.mxu0 0.0
  %1607 = vmatprep.subr.mxu0 0.0
  %1608 = vmatpush1.msra.mxu0 0.0
  %1609 = vmatprep.subr.mxu0 0.0
  %1610 = vmatpush1.msra.mxu0 0.0
  %1611 = vmatprep.subr.mxu0 0.0
  %1612 = vmatpush1.msra.mxu0 0.0
  %1613 = vmatprep.subr.mxu0 0.0
  %1614 = vmatpush1.msra.mxu0 0.0
  %1615 = vmatprep.subr.mxu0 0.0
  %1616 = vmatpush1.msra.mxu0 0.0
  %1617 = vmatprep.subr.mxu0 0.0
  %1618 = vmatpush1.msra.mxu0 0.0
  %1619 = vmatprep.subr.mxu0 0.0
  %1620 = vmatpush1.msra.mxu0 0.0
  %1621 = vmatprep.subr.mxu0 0.0
  %1622 = vmatpush1.msra.mxu0 0.0
  %1623 = vmatprep.subr.mxu0 0.0
  %1624 = vmatpush1.msra.mxu0 0.0
  %1625 = vmatprep.subr.mxu0 0.0
  %1626 = vmatpush1.msra.mxu0 0.0
  %1627 = vmatprep.subr.mxu0 0.0
  %1628 = vmatpush1.msra.mxu0 0.0
  %1629 = vmatprep.subr.mxu0 0.0
  %1630 = vmatpush1.msra.mxu0 0.0
  %1631 = vmatprep.subr.mxu0 0.0
  %1632 = vmatpush1.msra.mxu0 0.0
  %1633 = vmatprep.subr.mxu0 0.0
  %1634 = vmatpush1.msra.mxu0 0.0
  %1635 = vmatprep.mubr.f32.mxu0 0.0
  %1636 = vmatmul.mubr.f32.gmra.mrb[0].mxu0 %v1569
  %v1637 = vpop.f32.mrb[0].mxu0
  %v1638 = vadd.f32 0.0, %v1637
  %v1639 = vpop.f32.mrb[0].mxu0
  %v1640 = vadd.f32 0.0, %v1639
  %1641 = vdwg.mxu0
  %v1643 = vsel %vm255, %v498, 0
  %1645 = vmatprep.subr.mxu0 %v1535
  %1646 = vmatpush1.msra.mxu0 %v1534
  %1647 = vmatprep.subr.mxu0 %v1537
  %1648 = vmatpush1.msra.mxu0 %v1536
  %1649 = vmatprep.subr.mxu0 %v1539
  %1650 = vmatpush1.msra.mxu0 %v1538
  %1651 = vmatprep.subr.mxu0 %v1541
  %1652 = vmatpush1.msra.mxu0 %v1540
  %1653 = vmatprep.subr.mxu0 0.0
  %1654 = vmatpush1.msra.mxu0 0.0
  %1655 = vmatprep.subr.mxu0 0.0
  %1656 = vmatpush1.msra.mxu0 0.0
  %1657 = vmatprep.subr.mxu0 0.0
  %1658 = vmatpush1.msra.mxu0 0.0
  %1659 = vmatprep.subr.mxu0 0.0
  %1660 = vmatpush1.msra.mxu0 0.0
  %1661 = vmatprep.subr.mxu0 0.0
  %1662 = vmatpush1.msra.mxu0 0.0
  %1663 = vmatprep.subr.mxu0 0.0
  %1664 = vmatpush1.msra.mxu0 0.0
  %1665 = vmatprep.subr.mxu0 0.0
  %1666 = vmatpush1.msra.mxu0 0.0
  %1667 = vmatprep.subr.mxu0 0.0
  %1668 = vmatpush1.msra.mxu0 0.0
  %1669 = vmatprep.subr.mxu0 0.0
  %1670 = vmatpush1.msra.mxu0 0.0
  %1671 = vmatprep.subr.mxu0 0.0
  %1672 = vmatpush1.msra.mxu0 0.0
  %1673 = vmatprep.subr.mxu0 0.0
  %1674 = vmatpush1.msra.mxu0 0.0
  %1675 = vmatprep.subr.mxu0 0.0
  %1676 = vmatpush1.msra.mxu0 0.0
  %1677 = vmatprep.subr.mxu0 0.0
  %1678 = vmatpush1.msra.mxu0 0.0
  %1679 = vmatprep.subr.mxu0 0.0
  %1680 = vmatpush1.msra.mxu0 0.0
  %1681 = vmatprep.subr.mxu0 0.0
  %1682 = vmatpush1.msra.mxu0 0.0
  %1683 = vmatprep.subr.mxu0 0.0
  %1684 = vmatpush1.msra.mxu0 0.0
  %1685 = vmatprep.subr.mxu0 0.0
  %1686 = vmatpush1.msra.mxu0 0.0
  %1687 = vmatprep.subr.mxu0 0.0
  %1688 = vmatpush1.msra.mxu0 0.0
  %1689 = vmatprep.subr.mxu0 0.0
  %1690 = vmatpush1.msra.mxu0 0.0
  %1691 = vmatprep.subr.mxu0 0.0
  %1692 = vmatpush1.msra.mxu0 0.0
  %1693 = vmatprep.subr.mxu0 0.0
  %1694 = vmatpush1.msra.mxu0 0.0
  %1695 = vmatprep.subr.mxu0 0.0
  %1696 = vmatpush1.msra.mxu0 0.0
  %1697 = vmatprep.subr.mxu0 0.0
  %1698 = vmatpush1.msra.mxu0 0.0
  %1699 = vmatprep.subr.mxu0 0.0
  %1700 = vmatpush1.msra.mxu0 0.0
  %1701 = vmatprep.subr.mxu0 0.0
  %1702 = vmatpush1.msra.mxu0 0.0
  %1703 = vmatprep.subr.mxu0 0.0
  %1704 = vmatpush1.msra.mxu0 0.0
  %1705 = vmatprep.subr.mxu0 0.0
  %1706 = vmatpush1.msra.mxu0 0.0
  %1707 = vmatprep.subr.mxu0 0.0
  %1708 = vmatpush1.msra.mxu0 0.0
  %1709 = vmatprep.mubr.f32.mxu0 0.0
  %1710 = vmatmul.mubr.f32.gmra.mrb[0].mxu0 %v1643
  %v1711 = vpop.f32.mrb[0].mxu0
  %v1712 = vadd.f32 %v1638, %v1711
  %v1713 = vpop.f32.mrb[0].mxu0
  %v1714 = vadd.f32 %v1640, %v1713
  %1715 = vdwg.mxu0
  %v1716 = vld [vmem:[%s14] sm:$0x3]
  %v1718 = vlaneseq
  %v1719 = vshrl.u32 %v1718, 7
  %v1720 = vsub.s32 0, %v1719
  %v1721 = vrot.slane %v1716, %v1720
  %v1722 = vlaneseq
  %v1723 = vshrl.u32 %v1722, 7
  %v1724 = vsub.s32 1, %v1723
  %v1725 = vrot.slane %v1716, %v1724
  %v1728 = vadd.f32 %v1712, %v1721
  %v1729 = vadd.f32 %v1714, %v1725
  %v1730 = vmax.f32 %v1728, 0.0
  %v1731 = vmax.f32 %v1729, 0.0
  %v1732 = vld [vmem:[%s15] sm:$0xff]
  %v1733 = vld [vmem:[%s15 + $0x8] sm:$0xff]
  %v1734 = vld [vmem:[%s15 + $0x10] sm:$0xff]
  %v1735 = vld [vmem:[%s15 + $0x18] sm:$0xff]
  %v1736 = vld [vmem:[%s15 + $0x20] sm:$0xff]
  %v1737 = vld [vmem:[%s15 + $0x28] sm:$0xff]
  %v1738 = vld [vmem:[%s15 + $0x30] sm:$0xff]
  %v1739 = vld [vmem:[%s15 + $0x38] sm:$0xff]
  %v1740 = vld [vmem:[%s15 + $0x40] sm:$0xff]
  %v1741 = vld [vmem:[%s15 + $0x48] sm:$0xff]
  %v1742 = vld [vmem:[%s15 + $0x50] sm:$0xff]
  %v1743 = vld [vmem:[%s15 + $0x58] sm:$0xff]
  %v1744 = vld [vmem:[%s15 + $0x60] sm:$0xff]
  %v1745 = vld [vmem:[%s15 + $0x68] sm:$0xff]
  %v1746 = vld [vmem:[%s15 + $0x70] sm:$0xff]
  %v1747 = vld [vmem:[%s15 + $0x78] sm:$0xff]
  %v1748 = vld [vmem:[%s15 + $0x80] sm:$0xff]
  %v1749 = vld [vmem:[%s15 + $0x88] sm:$0xff]
  %v1750 = vld [vmem:[%s15 + $0x90] sm:$0xff]
  %v1751 = vld [vmem:[%s15 + $0x98] sm:$0xff]
  %v1752 = vld [vmem:[%s15 + $0xa0] sm:$0xff]
  %v1753 = vld [vmem:[%s15 + $0xa8] sm:$0xff]
  %v1754 = vld [vmem:[%s15 + $0xb0] sm:$0xff]
  %v1755 = vld [vmem:[%s15 + $0xb8] sm:$0xff]
  %v1756 = vld [vmem:[%s15 + $0xc0] sm:$0xff]
  %v1757 = vld [vmem:[%s15 + $0xc8] sm:$0xff]
  %v1758 = vld [vmem:[%s15 + $0xd0] sm:$0xff]
  %v1759 = vld [vmem:[%s15 + $0xd8] sm:$0xff]
  %v1760 = vld [vmem:[%s15 + $0xe0] sm:$0xff]
  %v1761 = vld [vmem:[%s15 + $0xe8] sm:$0xff]
  %v1762 = vld [vmem:[%s15 + $0xf0] sm:$0xff]
  %v1763 = vld [vmem:[%s15 + $0xf8] sm:$0xff]
  %v1764 = vld [vmem:[%s16] sm:$0x1]
  %v1766 = vlaneseq
  %v1767 = vshrl.u32 %v1766, 7
  %v1768 = vsub.s32 0, %v1767
  %v1769 = vrot.slane %v1764, %v1768
  %1771 = vmatprep.subr.mxu0 0.0
  %1772 = vmatpush1.msra.mxu0 %v1732
  %1773 = vmatprep.subr.mxu0 0.0
  %1774 = vmatpush1.msra.mxu0 %v1733
  %1775 = vmatprep.subr.mxu0 0.0
  %1776 = vmatpush1.msra.mxu0 %v1734
  %1777 = vmatprep.subr.mxu0 0.0
  %1778 = vmatpush1.msra.mxu0 %v1735
  %1779 = vmatprep.subr.mxu0 0.0
  %1780 = vmatpush1.msra.mxu0 %v1736
  %1781 = vmatprep.subr.mxu0 0.0
  %1782 = vmatpush1.msra.mxu0 %v1737
  %1783 = vmatprep.subr.mxu0 0.0
  %1784 = vmatpush1.msra.mxu0 %v1738
  %1785 = vmatprep.subr.mxu0 0.0
  %1786 = vmatpush1.msra.mxu0 %v1739
  %1787 = vmatprep.subr.mxu0 0.0
  %1788 = vmatpush1.msra.mxu0 %v1740
  %1789 = vmatprep.subr.mxu0 0.0
  %1790 = vmatpush1.msra.mxu0 %v1741
  %1791 = vmatprep.subr.mxu0 0.0
  %1792 = vmatpush1.msra.mxu0 %v1742
  %1793 = vmatprep.subr.mxu0 0.0
  %1794 = vmatpush1.msra.mxu0 %v1743
  %1795 = vmatprep.subr.mxu0 0.0
  %1796 = vmatpush1.msra.mxu0 %v1744
  %1797 = vmatprep.subr.mxu0 0.0
  %1798 = vmatpush1.msra.mxu0 %v1745
  %1799 = vmatprep.subr.mxu0 0.0
  %1800 = vmatpush1.msra.mxu0 %v1746
  %1801 = vmatprep.subr.mxu0 0.0
  %1802 = vmatpush1.msra.mxu0 %v1747
  %1803 = vmatprep.subr.mxu0 0.0
  %1804 = vmatpush1.msra.mxu0 %v1748
  %1805 = vmatprep.subr.mxu0 0.0
  %1806 = vmatpush1.msra.mxu0 %v1749
  %1807 = vmatprep.subr.mxu0 0.0
  %1808 = vmatpush1.msra.mxu0 %v1750
  %1809 = vmatprep.subr.mxu0 0.0
  %1810 = vmatpush1.msra.mxu0 %v1751
  %1811 = vmatprep.subr.mxu0 0.0
  %1812 = vmatpush1.msra.mxu0 %v1752
  %1813 = vmatprep.subr.mxu0 0.0
  %1814 = vmatpush1.msra.mxu0 %v1753
  %1815 = vmatprep.subr.mxu0 0.0
  %1816 = vmatpush1.msra.mxu0 %v1754
  %1817 = vmatprep.subr.mxu0 0.0
  %1818 = vmatpush1.msra.mxu0 %v1755
  %1819 = vmatprep.subr.mxu0 0.0
  %1820 = vmatpush1.msra.mxu0 %v1756
  %1821 = vmatprep.subr.mxu0 0.0
  %1822 = vmatpush1.msra.mxu0 %v1757
  %1823 = vmatprep.subr.mxu0 0.0
  %1824 = vmatpush1.msra.mxu0 %v1758
  %1825 = vmatprep.subr.mxu0 0.0
  %1826 = vmatpush1.msra.mxu0 %v1759
  %1827 = vmatprep.subr.mxu0 0.0
  %1828 = vmatpush1.msra.mxu0 %v1760
  %1829 = vmatprep.subr.mxu0 0.0
  %1830 = vmatpush1.msra.mxu0 %v1761
  %1831 = vmatprep.subr.mxu0 0.0
  %1832 = vmatpush1.msra.mxu0 %v1762
  %1833 = vmatprep.subr.mxu0 0.0
  %1834 = vmatpush1.msra.mxu0 %v1763
  %1835 = vmatprep.mubr.f32.mxu0 %v1731
  %1836 = vmatmul.mubr.f32.gmra.mrb[0].mxu0 %v1730
  %v1837 = vpop.f32.mrb[0].mxu0
  %v1838 = vadd.f32 %v1769, %v1837
  %v1839 = vpop.f32.mrb[0].mxu0
  %1840 = vdwg.mxu0
  %v1841 = vmax.f32 %v1838, 0.0
  %v1842 = vld [vmem:[%s17] sm:$0xff]
  %v1843 = vld [vmem:[%s17 + $0x8] sm:$0xff]
  %v1844 = vld [vmem:[%s17 + $0x10] sm:$0xff]
  %v1845 = vld [vmem:[%s17 + $0x18] sm:$0xff]
  %v1846 = vld [vmem:[%s17 + $0x20] sm:$0xff]
  %v1847 = vld [vmem:[%s17 + $0x28] sm:$0xff]
  %v1848 = vld [vmem:[%s17 + $0x30] sm:$0xff]
  %v1849 = vld [vmem:[%s17 + $0x38] sm:$0xff]
  %v1850 = vld [vmem:[%s17 + $0x40] sm:$0xff]
  %v1851 = vld [vmem:[%s17 + $0x48] sm:$0xff]
  %v1852 = vld [vmem:[%s17 + $0x50] sm:$0xff]
  %v1853 = vld [vmem:[%s17 + $0x58] sm:$0xff]
  %v1854 = vld [vmem:[%s17 + $0x60] sm:$0xff]
  %v1855 = vld [vmem:[%s17 + $0x68] sm:$0xff]
  %v1856 = vld [vmem:[%s17 + $0x70] sm:$0xff]
  %v1857 = vld [vmem:[%s17 + $0x78] sm:$0xff]
  %v1858 = vld [vmem:[%s18] sm:$0x1]
  %v1860 = vlaneseq
  %v1861 = vshrl.u32 %v1860, 7
  %v1862 = vsub.s32 0, %v1861
  %v1863 = vrot.slane %v1858, %v1862
  %1865 = vmatprep.subr.mxu0 0.0
  %1866 = vmatpush1.msra.mxu0 %v1842
  %1867 = vmatprep.subr.mxu0 0.0
  %1868 = vmatpush1.msra.mxu0 %v1843
  %1869 = vmatprep.subr.mxu0 0.0
  %1870 = vmatpush1.msra.mxu0 %v1844
  %1871 = vmatprep.subr.mxu0 0.0
  %1872 = vmatpush1.msra.mxu0 %v1845
  %1873 = vmatprep.subr.mxu0 0.0
  %1874 = vmatpush1.msra.mxu0 %v1846
  %1875 = vmatprep.subr.mxu0 0.0
  %1876 = vmatpush1.msra.mxu0 %v1847
  %1877 = vmatprep.subr.mxu0 0.0
  %1878 = vmatpush1.msra.mxu0 %v1848
  %1879 = vmatprep.subr.mxu0 0.0
  %1880 = vmatpush1.msra.mxu0 %v1849
  %1881 = vmatprep.subr.mxu0 0.0
  %1882 = vmatpush1.msra.mxu0 %v1850
  %1883 = vmatprep.subr.mxu0 0.0
  %1884 = vmatpush1.msra.mxu0 %v1851
  %1885 = vmatprep.subr.mxu0 0.0
  %1886 = vmatpush1.msra.mxu0 %v1852
  %1887 = vmatprep.subr.mxu0 0.0
  %1888 = vmatpush1.msra.mxu0 %v1853
  %1889 = vmatprep.subr.mxu0 0.0
  %1890 = vmatpush1.msra.mxu0 %v1854
  %1891 = vmatprep.subr.mxu0 0.0
  %1892 = vmatpush1.msra.mxu0 %v1855
  %1893 = vmatprep.subr.mxu0 0.0
  %1894 = vmatpush1.msra.mxu0 %v1856
  %1895 = vmatprep.subr.mxu0 0.0
  %1896 = vmatpush1.msra.mxu0 %v1857
  %1897 = vmatprep.subr.mxu0 0.0
  %1898 = vmatpush1.msra.mxu0 0.0
  %1899 = vmatprep.subr.mxu0 0.0
  %1900 = vmatpush1.msra.mxu0 0.0
  %1901 = vmatprep.subr.mxu0 0.0
  %1902 = vmatpush1.msra.mxu0 0.0
  %1903 = vmatprep.subr.mxu0 0.0
  %1904 = vmatpush1.msra.mxu0 0.0
  %1905 = vmatprep.subr.mxu0 0.0
  %1906 = vmatpush1.msra.mxu0 0.0
  %1907 = vmatprep.subr.mxu0 0.0
  %1908 = vmatpush1.msra.mxu0 0.0
  %1909 = vmatprep.subr.mxu0 0.0
  %1910 = vmatpush1.msra.mxu0 0.0
  %1911 = vmatprep.subr.mxu0 0.0
  %1912 = vmatpush1.msra.mxu0 0.0
  %1913 = vmatprep.subr.mxu0 0.0
  %1914 = vmatpush1.msra.mxu0 0.0
  %1915 = vmatprep.subr.mxu0 0.0
  %1916 = vmatpush1.msra.mxu0 0.0
  %1917 = vmatprep.subr.mxu0 0.0
  %1918 = vmatpush1.msra.mxu0 0.0
  %1919 = vmatprep.subr.mxu0 0.0
  %1920 = vmatpush1.msra.mxu0 0.0
  %1921 = vmatprep.subr.mxu0 0.0
  %1922 = vmatpush1.msra.mxu0 0.0
  %1923 = vmatprep.subr.mxu0 0.0
  %1924 = vmatpush1.msra.mxu0 0.0
  %1925 = vmatprep.subr.mxu0 0.0
  %1926 = vmatpush1.msra.mxu0 0.0
  %1927 = vmatprep.subr.mxu0 0.0
  %1928 = vmatpush1.msra.mxu0 0.0
  %1929 = vmatprep.mubr.f32.mxu0 0.0
  %1930 = vmatmul.mubr.f32.gmra.mrb[0].mxu0 %v1841
  %v1931 = vpop.f32.mrb[0].mxu0
  %v1932 = vadd.f32 %v1863, %v1931
  %v1933 = vpop.f32.mrb[0].mxu0
  %1934 = vdwg.mxu0
  %v1935 = vmax.f32 %v1932, 0.0
  %v1936 = vld [vmem:[%s19] sm:$0xff]
  %v1937 = vld [vmem:[%s19 + $0x8] sm:$0xff]
  %v1938 = vld [vmem:[%s19 + $0x10] sm:$0xff]
  %v1939 = vld [vmem:[%s19 + $0x18] sm:$0xff]
  %v1940 = vld [vmem:[%s19 + $0x20] sm:$0xff]
  %v1941 = vld [vmem:[%s19 + $0x28] sm:$0xff]
  %v1942 = vld [vmem:[%s19 + $0x30] sm:$0xff]
  %v1943 = vld [vmem:[%s19 + $0x38] sm:$0xff]
  %v1944 = vld [vmem:[%s20] sm:$0x1]
  %v1946 = vlaneseq
  %v1947 = vshrl.u32 %v1946, 7
  %v1948 = vsub.s32 0, %v1947
  %v1949 = vrot.slane %v1944, %v1948
  %v1952 = vsel %vm501, %v1935, 0
  %1954 = vmatprep.subr.mxu0 0.0
  %1955 = vmatpush1.msra.mxu0 %v1936
  %1956 = vmatprep.subr.mxu0 0.0
  %1957 = vmatpush1.msra.mxu0 %v1937
  %1958 = vmatprep.subr.mxu0 0.0
  %1959 = vmatpush1.msra.mxu0 %v1938
  %1960 = vmatprep.subr.mxu0 0.0
  %1961 = vmatpush1.msra.mxu0 %v1939
  %1962 = vmatprep.subr.mxu0 0.0
  %1963 = vmatpush1.msra.mxu0 %v1940
  %1964 = vmatprep.subr.mxu0 0.0
  %1965 = vmatpush1.msra.mxu0 %v1941
  %1966 = vmatprep.subr.mxu0 0.0
  %1967 = vmatpush1.msra.mxu0 %v1942
  %1968 = vmatprep.subr.mxu0 0.0
  %1969 = vmatpush1.msra.mxu0 %v1943
  %1970 = vmatprep.subr.mxu0 0.0
  %1971 = vmatpush1.msra.mxu0 0.0
  %1972 = vmatprep.subr.mxu0 0.0
  %1973 = vmatpush1.msra.mxu0 0.0
  %1974 = vmatprep.subr.mxu0 0.0
  %1975 = vmatpush1.msra.mxu0 0.0
  %1976 = vmatprep.subr.mxu0 0.0
  %1977 = vmatpush1.msra.mxu0 0.0
  %1978 = vmatprep.subr.mxu0 0.0
  %1979 = vmatpush1.msra.mxu0 0.0
  %1980 = vmatprep.subr.mxu0 0.0
  %1981 = vmatpush1.msra.mxu0 0.0
  %1982 = vmatprep.subr.mxu0 0.0
  %1983 = vmatpush1.msra.mxu0 0.0
  %1984 = vmatprep.subr.mxu0 0.0
  %1985 = vmatpush1.msra.mxu0 0.0
  %1986 = vmatprep.subr.mxu0 0.0
  %1987 = vmatpush1.msra.mxu0 0.0
  %1988 = vmatprep.subr.mxu0 0.0
  %1989 = vmatpush1.msra.mxu0 0.0
  %1990 = vmatprep.subr.mxu0 0.0
  %1991 = vmatpush1.msra.mxu0 0.0
  %1992 = vmatprep.subr.mxu0 0.0
  %1993 = vmatpush1.msra.mxu0 0.0
  %1994 = vmatprep.subr.mxu0 0.0
  %1995 = vmatpush1.msra.mxu0 0.0
  %1996 = vmatprep.subr.mxu0 0.0
  %1997 = vmatpush1.msra.mxu0 0.0
  %1998 = vmatprep.subr.mxu0 0.0
  %1999 = vmatpush1.msra.mxu0 0.0
  %2000 = vmatprep.subr.mxu0 0.0
  %2001 = vmatpush1.msra.mxu0 0.0
  %2002 = vmatprep.subr.mxu0 0.0
  %2003 = vmatpush1.msra.mxu0 0.0
  %2004 = vmatprep.subr.mxu0 0.0
  %2005 = vmatpush1.msra.mxu0 0.0
  %2006 = vmatprep.subr.mxu0 0.0
  %2007 = vmatpush1.msra.mxu0 0.0
  %2008 = vmatprep.subr.mxu0 0.0
  %2009 = vmatpush1.msra.mxu0 0.0
  %2010 = vmatprep.subr.mxu0 0.0
  %2011 = vmatpush1.msra.mxu0 0.0
  %2012 = vmatprep.subr.mxu0 0.0
  %2013 = vmatpush1.msra.mxu0 0.0
  %2014 = vmatprep.subr.mxu0 0.0
  %2015 = vmatpush1.msra.mxu0 0.0
  %2016 = vmatprep.subr.mxu0 0.0
  %2017 = vmatpush1.msra.mxu0 0.0
  %2018 = vmatprep.mubr.f32.mxu0 0.0
  %2019 = vmatmul.mubr.f32.gmra.mrb[0].mxu0 %v1952
  %v2020 = vpop.f32.mrb[0].mxu0
  %v2021 = vadd.f32 %v1949, %v2020
  %v2022 = vpop.f32.mrb[0].mxu0
  %2023 = vdwg.mxu0
  %v2024 = vxor.u32 %v2021, 2147483648
  %v2025 = vmul.f32 %v2024, 1.442695
  %v2026 = vpow.pop %v2025
  %v2027 = vadd.f32 %v2026, 1.0
  %v2028 = vrcp.pop %v2027
  %v2029 = vmul.f32 1.0, %v2028
  %2030 = vst [vmem:[%s21] sm:$0x3] %v2029
  // Predicated region
  $region86: #{model1_forward.1} parent=0 // pred_check
    _
  $region87: #{model1_forward.1} parent=0 // pred_check_branch
    %2032 = sbr.rel (0) target = $region89
  $region88: #{model1_forward.1} parent=0 // pred_region
    _
  $region89: #{model1_forward.1} parent=0 // pred_fallthru
    _
  // Predicated region
  $region90: #{model1_forward.1} parent=0 // pred_check
    _
  $region91: #{model1_forward.1} parent=0 // pred_check_branch
    %2034 = sbr.rel (0) target = $region93
  $region92: #{model1_forward.1} parent=0 // pred_region
    _
  $region93: #{model1_forward.1} parent=0 // pred_fallthru
    _

</llo_original>
